<compile_context>
chip_gen: v7x
topology: tpu7x:2x2x1
jax: 0.10.0
libtpu: 0.0.40
codegen_flags: <defaults>
</compile_context>

<pallas_src>
import functools

import jax
import jax.numpy as jnp
from jax.experimental import pallas as pl
from jax.experimental.pallas import tpu as pltpu


# ---------------------------------------------------------------------------
# Fused GCN_block body (per batch).  All activations are flat (T*N, C), rows ordered (t, n).
#   sg   = relu( sum_k blockdiag_t(T_k^T) @ (X @ Theta_k) )              (Chebyshev conv)
#   tc   = sum_{dk=0..2} sg_pad[stride*t + dk] @ Wt[dk] + b_time         ((1,3) time conv)
#   res  = X[stride*t] @ Wr + b_res                                      ((1,1) residual conv)
#   out  = LayerNorm_Ft( relu(tc + res) ) * gamma + beta
# ---------------------------------------------------------------------------
def _gcn_block_kernel(x_ref, chebbig_ref, theta_ref, wt_ref, wr_ref, pvec_ref,
                      o_ref, sgpad_ref, *, n, stride, t_out, eps):
    tn, _ = x_ref.shape                        # (T*N, C)
    t_in = tn // n
    k_order = theta_ref.shape[0]
    f_c = theta_ref.shape[2]
    f_t = wt_ref.shape[2]

    x = x_ref[...]                             # (T*N, C) f32

    # --- Chebyshev graph convolution (2*K matmuls, M = T*N) ---
    acc = jnp.zeros((tn, f_c), jnp.float32)
    for k in range(k_order):
        yk = jnp.dot(x, theta_ref[k], preferred_element_type=jnp.float32)            # (T*N, Fc)
        acc = acc + jnp.dot(chebbig_ref[k], yk, preferred_element_type=jnp.float32)  # (T*N, Fc)
    sg = jnp.maximum(acc, 0.0)                 # ReLU

    # --- stash sg in the time-padded VMEM scratch (first/last N rows = conv zero-padding) ---
    zero_row = jnp.zeros((n, f_c), jnp.float32)
    sgpad_ref[pl.ds(0, n)] = zero_row
    sgpad_ref[pl.ds((t_in + 1) * n, n)] = zero_row
    sgpad_ref[pl.ds(n, tn)] = sg

    pv = pvec_ref[...]                         # (4, Ft): [b_time, b_res, gamma, beta]

    # --- (1,3) time conv + (1,1) strided residual conv ---
    if stride == 1:
        # vectorized over all t_out = T output steps: 3 + 1 matmuls with M = T*N
        tc = jnp.zeros((t_out * n, f_t), jnp.float32)
        for dk in range(3):
            win = sgpad_ref[pl.ds(dk * n, t_out * n)]                                 # (T*N, Fc)
            tc = tc + jnp.dot(win, wt_ref[dk], preferred_element_type=jnp.float32)
        res = jnp.dot(x, wr_ref[...], preferred_element_type=jnp.float32)
    else:
        # general-stride fallback: small per-output-step loop (still fully in VMEM)
        tc_rows, res_rows = [], []
        for t in range(t_out):
            a = jnp.zeros((n, f_t), jnp.float32)
            for dk in range(3):
                a = a + jnp.dot(sgpad_ref[pl.ds((stride * t + dk) * n, n)], wt_ref[dk],
                                preferred_element_type=jnp.float32)
            tc_rows.append(a)
            res_rows.append(jnp.dot(x_ref[pl.ds(stride * t * n, n)], wr_ref[...],
                                    preferred_element_type=jnp.float32))
        tc = jnp.concatenate(tc_rows, axis=0)
        res = jnp.concatenate(res_rows, axis=0)

    y = jnp.maximum(tc + res + pv[0:1, :] + pv[1:2, :], 0.0)          # (t_out*N, Ft)

    # --- LayerNorm over the nb_time_filter dimension ---
    mu = jnp.mean(y, axis=-1, keepdims=True)
    var = jnp.mean(jnp.square(y - mu), axis=-1, keepdims=True)
    y_n = (y - mu) * jax.lax.rsqrt(var + eps)
    o_ref[...] = y_n * pv[2:3, :] + pv[3:4, :]                        # (t_out*N, Ft)


# ---------------------------------------------------------------------------
# Wrapper: one pallas_call == one GCN_block.forward.
# Takes / returns PyTorch layout: (B, N, C, T) -> (B, N, Ft, T_out).
# ---------------------------------------------------------------------------
def gcn_block_pallas(x_bnct, p, time_strides):
    b_dim, n, c, t_in = x_bnct.shape
    t_out = (t_in - 1) // time_strides + 1
    tn = t_in * n

    k_order, tn2, _ = p["cheb_big"].shape
    assert tn2 == tn, (tn2, tn)
    f_c = p["theta"].shape[2]
    f_t = p["wt"].shape[2]

    # (B, N, C, T) -> (B, T, N, C) -> flat (B, T*N, C)   (cheap XLA layout plumbing)
    x_flat = jnp.transpose(x_bnct, (0, 3, 1, 2)).reshape(b_dim, tn, c)

    kernel = functools.partial(_gcn_block_kernel, n=n, stride=time_strides,
                               t_out=t_out, eps=1e-5)
    out_flat = pl.pallas_call(
        kernel,
        out_shape=jax.ShapeDtypeStruct((b_dim, t_out * n, f_t), jnp.float32),
        grid=(b_dim,),
        in_specs=[
            pl.BlockSpec((None, tn, c), lambda b: (b, 0, 0)),
            pl.BlockSpec((k_order, tn, tn), lambda b: (0, 0, 0)),
            pl.BlockSpec((k_order, c, f_c), lambda b: (0, 0, 0)),
            pl.BlockSpec((3, f_c, f_t), lambda b: (0, 0, 0)),
            pl.BlockSpec((c, f_t), lambda b: (0, 0)),
            pl.BlockSpec((4, f_t), lambda b: (0, 0)),
        ],
        out_specs=pl.BlockSpec((None, t_out * n, f_t), lambda b: (b, 0, 0)),
        scratch_shapes=[pltpu.VMEM(((t_in + 2) * n, f_c), jnp.float32)],
        compiler_params=pltpu.CompilerParams(dimension_semantics=("parallel",)),
    )(x_flat, p["cheb_big"], p["theta"], p["wt"], p["wr"], p["pvec"])

    # flat (B, t_out*N, Ft) -> (B, t_out, N, Ft) -> PyTorch (B, N, Ft, t_out)
    return jnp.transpose(out_flat.reshape(b_dim, t_out, n, f_t), (0, 2, 3, 1))


# ---------------------------------------------------------------------------
# Deterministic synthetic parameters (module __init__ shapes; no checkpoint load).
# ---------------------------------------------------------------------------
def make_cheb_polynomials(key, K, N):
    A = jax.random.normal(key, (N, N), jnp.float32)
    A = 0.5 * (A + A.T)
    L = A / (jnp.abs(A).sum(axis=1).max() + 1.0)       # rough spectral scaling
    polys = [jnp.eye(N, dtype=jnp.float32), L]
    for _ in range(2, K):
        polys.append(2.0 * L @ polys[-1] - polys[-2])
    return jnp.stack(polys[:K])                        # (K, N, N)


def init_block_params(key, K, N, c_in, f_chev, f_time, t_in):
    ks = jax.random.split(key, 6)
    cheb = make_cheb_polynomials(ks[0], K, N)                                    # K x (N, N)
    theta = 0.1 * jax.random.normal(ks[1], (K, c_in, f_chev), jnp.float32)       # Theta list
    w_time = 0.1 * jax.random.normal(ks[2], (f_time, f_chev, 1, 3), jnp.float32)  # Conv2d (1,3)
    b_time = 0.1 * jax.random.normal(ks[3], (f_time,), jnp.float32)
    w_res = 0.1 * jax.random.normal(ks[4], (f_time, c_in, 1, 1), jnp.float32)     # Conv2d (1,1)
    b_res = 0.1 * jax.random.normal(ks[5], (f_time,), jnp.float32)
    gamma = jnp.ones((f_time,), jnp.float32)                                      # LayerNorm
    beta = jnp.zeros((f_time,), jnp.float32)

    # Kernel-friendly layouts.
    chebT = jnp.transpose(cheb, (0, 2, 1))                                  # (K, N, N): T_k^T
    eye_t = jnp.eye(t_in, dtype=jnp.float32)
    cheb_big = jnp.einsum("ts,knm->ktnsm", eye_t, chebT).reshape(K, t_in * N, t_in * N)

    return {
        "cheb_big": cheb_big,                                  # (K, T*N, T*N) blockdiag(T_k^T)
        "theta": theta,                                        # (K, c_in, f_chev)
        "wt": jnp.transpose(w_time[:, :, 0, :], (2, 1, 0)),    # (3, f_chev, f_time)
        "wr": jnp.transpose(w_res[:, :, 0, 0], (1, 0)),        # (c_in, f_time)
        "pvec": jnp.stack([b_time, b_res, gamma, beta], 0),    # (4, f_time)
        # raw (PyTorch-layout) copies for the pure-JAX reference
        "cheb": cheb, "w_time": w_time, "b_time": b_time,
        "w_res": w_res, "b_res": b_res, "gamma": gamma, "beta": beta,
    }


# ---------------------------------------------------------------------------
# Pure-JAX reference of GCN_block.forward (correctness checking only).
# Takes / returns PyTorch layout (B, N, C, T) -> (B, N, Ft, T_out).
# ---------------------------------------------------------------------------
def ref_gcn_block(x_bnct, p, stride):
    x = jnp.transpose(x_bnct, (0, 3, 1, 2))                                  # (B, T, N, C)
    sg = jax.nn.relu(jnp.einsum("knm,btnc,kcf->btmf", p["cheb"], x, p["theta"]))
    B, T, N, _ = sg.shape
    Ft = p["w_time"].shape[0]
    t_out = (T - 1) // stride + 1
    sgp = jnp.pad(sg, ((0, 0), (1, 1), (0, 0), (0, 0)))
    tidx = jnp.arange(t_out) * stride
    tc = jnp.zeros((B, t_out, N, Ft), jnp.float32)
    for dk in range(3):
        tc = tc + jnp.einsum("btnc,fc->btnf", sgp[:, tidx + dk], p["w_time"][:, :, 0, dk])
    tc = tc + p["b_time"]
    res = jnp.einsum("btnc,fc->btnf", x[:, tidx], p["w_res"][:, :, 0, 0]) + p["b_res"]
    y = jax.nn.relu(tc + res)
    mu = y.mean(-1, keepdims=True)
    var = ((y - mu) ** 2).mean(-1, keepdims=True)
    y = (y - mu) / jnp.sqrt(var + 1e-5) * p["gamma"] + p["beta"]             # (B, t_out, N, Ft)
    return jnp.transpose(y, (0, 2, 3, 1))                                    # (B, N, Ft, t_out)


if __name__ == "__main__":
    # Small shapes consistent with the module:
    # x: (batch=2, num_vertices=8, in_channels=4, len_input=8)
    B, N, C_in, T = 2, 8, 4, 8
    K, Fc, Ft = 3, 16, 16                # K, nb_chev_filter, nb_time_filter
    time_strides = 1
    t_after_block1 = (T - 1) // time_strides + 1

    root = jax.random.PRNGKey(0)
    kx, k1, k2 = jax.random.split(root, 3)

    # Two GCN_blocks: first with in_channels=C_in, second with in_channels=nb_time_filter
    # (exercises both weight configurations of the same kernel).
    p1 = init_block_params(k1, K, N, C_in, Fc, Ft, T)
    p2 = init_block_params(k2, K, N, Ft, Fc, Ft, t_after_block1)

    # PyTorch-layout input (B, N, C_in, T)
    x = jax.random.normal(kx, (B, N, C_in, T), jnp.float32)

    @functools.partial(jax.jit, static_argnums=(3,))
    def fwd(x, p1, p2, stride):
        h = gcn_block_pallas(x, p1, stride)     # (B, N, Ft, t_after_block1)
        return gcn_block_pallas(h, p2, 1)       # (B, N, Ft, t_after_block1)

    out = jax.block_until_ready(fwd(x, p1, p2, time_strides))
    ref = jax.block_until_ready(ref_gcn_block(ref_gcn_block(x, p1, time_strides), p2, 1))

    assert out.shape == (B, N, Ft, t_after_block1), out.shape
    max_err = float(jnp.max(jnp.abs(out - ref)))
    assert jnp.allclose(out, ref, atol=1e-3, rtol=1e-3), max_err
    print("KERNEL_OK")
</pallas_src>

<mosaic_0001>
module attributes {stable_mosaic.version = 11 : i64} {
  func.func @_gcn_block_kernel(%arg0: i32, %arg1: memref<1x64x4xf32, #tpu.memory_space<vmem>>, %arg2: memref<3x64x64xf32, #tpu.memory_space<vmem>>, %arg3: memref<3x4x16xf32, #tpu.memory_space<vmem>>, %arg4: memref<3x16x16xf32, #tpu.memory_space<vmem>>, %arg5: memref<4x16xf32, #tpu.memory_space<vmem>>, %arg6: memref<4x16xf32, #tpu.memory_space<vmem>>, %arg7: memref<1x64x16xf32, #tpu.memory_space<vmem>>, %arg8: memref<80x16xf32, #tpu.memory_space<vmem>>) attributes {dimension_semantics = [#tpu.dimension_semantics<parallel>], iteration_bounds = array<i64: 2>, scalar_prefetch = 0 : i64, scratch_operands = 1 : i64, tpu.core_type = #tpu.core_type<tc>, window_params = [{transform_indices = @transform_0, window_bounds = array<i64: 1, 64, 4>}, {pipeline_mode = #tpu.pipeline_mode<synchronous>, transform_indices = @transform_1, window_bounds = array<i64: 3, 64, 64>}, {pipeline_mode = #tpu.pipeline_mode<synchronous>, transform_indices = @transform_2, window_bounds = array<i64: 3, 4, 16>}, {pipeline_mode = #tpu.pipeline_mode<synchronous>, transform_indices = @transform_3, window_bounds = array<i64: 3, 16, 16>}, {pipeline_mode = #tpu.pipeline_mode<synchronous>, transform_indices = @transform_4, window_bounds = array<i64: 4, 16>}, {pipeline_mode = #tpu.pipeline_mode<synchronous>, transform_indices = @transform_5, window_bounds = array<i64: 4, 16>}, {transform_indices = @transform_6, window_bounds = array<i64: 1, 64, 16>}]} {
    %c0 = arith.constant 0 : index
    %c0_0 = arith.constant 0 : index
    %c0_1 = arith.constant 0 : index
    %0 = vector.load %arg1[%c0, %c0_0, %c0_1] : memref<1x64x4xf32, #tpu.memory_space<vmem>>, vector<1x64x4xf32>
    %1 = vector.shape_cast %0 : vector<1x64x4xf32> to vector<64x4xf32>
    %cst = arith.constant 0.000000e+00 : f32
    %2 = vector.broadcast %cst : f32 to vector<64x16xf32>
    %c0_2 = arith.constant 0 : index
    %c0_3 = arith.constant 0 : index
    %c0_4 = arith.constant 0 : index
    %3 = vector.load %arg3[%c0_2, %c0_3, %c0_4] : memref<3x4x16xf32, #tpu.memory_space<vmem>>, vector<1x4x16xf32>
    %4 = vector.shape_cast %3 : vector<1x4x16xf32> to vector<4x16xf32>
    %cst_5 = arith.constant dense<0.000000e+00> : vector<64x16xf32>
    %5 = tpu.matmul %1, %4, %cst_5 {dimension_numbers = #tpu.dot_dimension_numbers<[1], [0], [0], [1], [0, 0, 1, 1], [], []>} : vector<64x4xf32>, vector<4x16xf32>, vector<64x16xf32> -> vector<64x16xf32>
    %c0_6 = arith.constant 0 : index
    %c0_7 = arith.constant 0 : index
    %c0_8 = arith.constant 0 : index
    %6 = vector.load %arg2[%c0_6, %c0_7, %c0_8] : memref<3x64x64xf32, #tpu.memory_space<vmem>>, vector<1x64x64xf32>
    %7 = vector.shape_cast %6 : vector<1x64x64xf32> to vector<64x64xf32>
    %cst_9 = arith.constant dense<0.000000e+00> : vector<64x16xf32>
    %8 = tpu.matmul %7, %5, %cst_9 {dimension_numbers = #tpu.dot_dimension_numbers<[1], [0], [0], [1], [0, 0, 1, 1], [], []>} : vector<64x64xf32>, vector<64x16xf32>, vector<64x16xf32> -> vector<64x16xf32>
    %9 = arith.addf %2, %8 : vector<64x16xf32>
    %c1 = arith.constant 1 : index
    %c0_10 = arith.constant 0 : index
    %c0_11 = arith.constant 0 : index
    %10 = vector.load %arg3[%c1, %c0_10, %c0_11] : memref<3x4x16xf32, #tpu.memory_space<vmem>>, vector<1x4x16xf32>
    %11 = vector.shape_cast %10 : vector<1x4x16xf32> to vector<4x16xf32>
    %cst_12 = arith.constant dense<0.000000e+00> : vector<64x16xf32>
    %12 = tpu.matmul %1, %11, %cst_12 {dimension_numbers = #tpu.dot_dimension_numbers<[1], [0], [0], [1], [0, 0, 1, 1], [], []>} : vector<64x4xf32>, vector<4x16xf32>, vector<64x16xf32> -> vector<64x16xf32>
    %c1_13 = arith.constant 1 : index
    %c0_14 = arith.constant 0 : index
    %c0_15 = arith.constant 0 : index
    %13 = vector.load %arg2[%c1_13, %c0_14, %c0_15] : memref<3x64x64xf32, #tpu.memory_space<vmem>>, vector<1x64x64xf32>
    %14 = vector.shape_cast %13 : vector<1x64x64xf32> to vector<64x64xf32>
    %cst_16 = arith.constant dense<0.000000e+00> : vector<64x16xf32>
    %15 = tpu.matmul %14, %12, %cst_16 {dimension_numbers = #tpu.dot_dimension_numbers<[1], [0], [0], [1], [0, 0, 1, 1], [], []>} : vector<64x64xf32>, vector<64x16xf32>, vector<64x16xf32> -> vector<64x16xf32>
    %16 = arith.addf %9, %15 : vector<64x16xf32>
    %c2 = arith.constant 2 : index
    %c0_17 = arith.constant 0 : index
    %c0_18 = arith.constant 0 : index
    %17 = vector.load %arg3[%c2, %c0_17, %c0_18] : memref<3x4x16xf32, #tpu.memory_space<vmem>>, vector<1x4x16xf32>
    %18 = vector.shape_cast %17 : vector<1x4x16xf32> to vector<4x16xf32>
    %cst_19 = arith.constant dense<0.000000e+00> : vector<64x16xf32>
    %19 = tpu.matmul %1, %18, %cst_19 {dimension_numbers = #tpu.dot_dimension_numbers<[1], [0], [0], [1], [0, 0, 1, 1], [], []>} : vector<64x4xf32>, vector<4x16xf32>, vector<64x16xf32> -> vector<64x16xf32>
    %c2_20 = arith.constant 2 : index
    %c0_21 = arith.constant 0 : index
    %c0_22 = arith.constant 0 : index
    %20 = vector.load %arg2[%c2_20, %c0_21, %c0_22] : memref<3x64x64xf32, #tpu.memory_space<vmem>>, vector<1x64x64xf32>
    %21 = vector.shape_cast %20 : vector<1x64x64xf32> to vector<64x64xf32>
    %cst_23 = arith.constant dense<0.000000e+00> : vector<64x16xf32>
    %22 = tpu.matmul %21, %19, %cst_23 {dimension_numbers = #tpu.dot_dimension_numbers<[1], [0], [0], [1], [0, 0, 1, 1], [], []>} : vector<64x64xf32>, vector<64x16xf32>, vector<64x16xf32> -> vector<64x16xf32>
    %23 = arith.addf %16, %22 : vector<64x16xf32>
    %cst_24 = arith.constant 0.000000e+00 : f32
    %24 = vector.broadcast %cst_24 : f32 to vector<64x16xf32>
    %25 = arith.maximumf %23, %24 : vector<64x16xf32>
    %cst_25 = arith.constant 0.000000e+00 : f32
    %26 = vector.broadcast %cst_25 : f32 to vector<8x16xf32>
    %c0_26 = arith.constant 0 : index
    %c0_27 = arith.constant 0 : index
    %27 = vector.load %arg8[%c0_26, %c0_27] : memref<80x16xf32, #tpu.memory_space<vmem>>, vector<8x16xf32>
    tpu.vector_store %arg8[%c0_26, %c0_27], %26 {strides = array<i32>} : memref<80x16xf32, #tpu.memory_space<vmem>>, vector<8x16xf32>,
    %c72 = arith.constant 72 : index
    %c0_28 = arith.constant 0 : index
    %28 = vector.load %arg8[%c72, %c0_28] : memref<80x16xf32, #tpu.memory_space<vmem>>, vector<8x16xf32>
    tpu.vector_store %arg8[%c72, %c0_28], %26 {strides = array<i32>} : memref<80x16xf32, #tpu.memory_space<vmem>>, vector<8x16xf32>,
    %c8 = arith.constant 8 : index
    %c0_29 = arith.constant 0 : index
    %29 = vector.load %arg8[%c8, %c0_29] : memref<80x16xf32, #tpu.memory_space<vmem>>, vector<64x16xf32>
    tpu.vector_store %arg8[%c8, %c0_29], %25 {strides = array<i32>} : memref<80x16xf32, #tpu.memory_space<vmem>>, vector<64x16xf32>,
    %c0_30 = arith.constant 0 : index
    %c0_31 = arith.constant 0 : index
    %30 = vector.load %arg6[%c0_30, %c0_31] : memref<4x16xf32, #tpu.memory_space<vmem>>, vector<4x16xf32>
    %cst_32 = arith.constant 0.000000e+00 : f32
    %31 = vector.broadcast %cst_32 : f32 to vector<64x16xf32>
    %c0_33 = arith.constant 0 : index
    %c0_34 = arith.constant 0 : index
    %32 = vector.load %arg8[%c0_33, %c0_34] : memref<80x16xf32, #tpu.memory_space<vmem>>, vector<64x16xf32>
    %c0_35 = arith.constant 0 : index
    %c0_36 = arith.constant 0 : index
    %c0_37 = arith.constant 0 : index
    %33 = vector.load %arg4[%c0_35, %c0_36, %c0_37] : memref<3x16x16xf32, #tpu.memory_space<vmem>>, vector<1x16x16xf32>
    %34 = vector.shape_cast %33 : vector<1x16x16xf32> to vector<16x16xf32>
    %cst_38 = arith.constant dense<0.000000e+00> : vector<64x16xf32>
    %35 = tpu.matmul %32, %34, %cst_38 {dimension_numbers = #tpu.dot_dimension_numbers<[1], [0], [0], [1], [0, 0, 1, 1], [], []>} : vector<64x16xf32>, vector<16x16xf32>, vector<64x16xf32> -> vector<64x16xf32>
    %36 = arith.addf %31, %35 : vector<64x16xf32>
    %c8_39 = arith.constant 8 : index
    %c0_40 = arith.constant 0 : index
    %37 = vector.load %arg8[%c8_39, %c0_40] : memref<80x16xf32, #tpu.memory_space<vmem>>, vector<64x16xf32>
    %c1_41 = arith.constant 1 : index
    %c0_42 = arith.constant 0 : index
    %c0_43 = arith.constant 0 : index
    %38 = vector.load %arg4[%c1_41, %c0_42, %c0_43] : memref<3x16x16xf32, #tpu.memory_space<vmem>>, vector<1x16x16xf32>
    %39 = vector.shape_cast %38 : vector<1x16x16xf32> to vector<16x16xf32>
    %cst_44 = arith.constant dense<0.000000e+00> : vector<64x16xf32>
    %40 = tpu.matmul %37, %39, %cst_44 {dimension_numbers = #tpu.dot_dimension_numbers<[1], [0], [0], [1], [0, 0, 1, 1], [], []>} : vector<64x16xf32>, vector<16x16xf32>, vector<64x16xf32> -> vector<64x16xf32>
    %41 = arith.addf %36, %40 : vector<64x16xf32>
    %c16 = arith.constant 16 : index
    %c0_45 = arith.constant 0 : index
    %42 = vector.load %arg8[%c16, %c0_45] : memref<80x16xf32, #tpu.memory_space<vmem>>, vector<64x16xf32>
    %c2_46 = arith.constant 2 : index
    %c0_47 = arith.constant 0 : index
    %c0_48 = arith.constant 0 : index
    %43 = vector.load %arg4[%c2_46, %c0_47, %c0_48] : memref<3x16x16xf32, #tpu.memory_space<vmem>>, vector<1x16x16xf32>
    %44 = vector.shape_cast %43 : vector<1x16x16xf32> to vector<16x16xf32>
    %cst_49 = arith.constant dense<0.000000e+00> : vector<64x16xf32>
    %45 = tpu.matmul %42, %44, %cst_49 {dimension_numbers = #tpu.dot_dimension_numbers<[1], [0], [0], [1], [0, 0, 1, 1], [], []>} : vector<64x16xf32>, vector<16x16xf32>, vector<64x16xf32> -> vector<64x16xf32>
    %46 = arith.addf %41, %45 : vector<64x16xf32>
    %c0_50 = arith.constant 0 : index
    %c0_51 = arith.constant 0 : index
    %47 = vector.load %arg5[%c0_50, %c0_51] : memref<4x16xf32, #tpu.memory_space<vmem>>, vector<4x16xf32>
    %cst_52 = arith.constant dense<0.000000e+00> : vector<64x16xf32>
    %48 = tpu.matmul %1, %47, %cst_52 {dimension_numbers = #tpu.dot_dimension_numbers<[1], [0], [0], [1], [0, 0, 1, 1], [], []>} : vector<64x4xf32>, vector<4x16xf32>, vector<64x16xf32> -> vector<64x16xf32>
    %49 = arith.addf %46, %48 : vector<64x16xf32>
    %50 = vector.extract_strided_slice %30 {offsets = [0, 0], sizes = [1, 16], strides = [1, 1]} : vector<4x16xf32> to vector<1x16xf32>
    %51 = vector.broadcast %50 : vector<1x16xf32> to vector<64x16xf32>
    %52 = arith.addf %49, %51 : vector<64x16xf32>
    %53 = vector.extract_strided_slice %30 {offsets = [1, 0], sizes = [1, 16], strides = [1, 1]} : vector<4x16xf32> to vector<1x16xf32>
    %54 = vector.broadcast %53 : vector<1x16xf32> to vector<64x16xf32>
    %55 = arith.addf %52, %54 : vector<64x16xf32>
    %cst_53 = arith.constant 0.000000e+00 : f32
    %56 = vector.broadcast %cst_53 : f32 to vector<64x16xf32>
    %57 = arith.maximumf %55, %56 : vector<64x16xf32>
    %cst_54 = arith.constant dense<0.000000e+00> : vector<64xf32>
    %58 = vector.multi_reduction <add>, %57, %cst_54 [1] : vector<64x16xf32> to vector<64xf32>
    %59 = vector.shape_cast %58 : vector<64xf32> to vector<64x1xf32>
    %cst_55 = arith.constant 1.600000e+01 : f32
    %60 = vector.broadcast %cst_55 : f32 to vector<64x1xf32>
    %61 = arith.divf %59, %60 : vector<64x1xf32>
    %62 = vector.broadcast %61 : vector<64x1xf32> to vector<64x16xf32>
    %63 = arith.subf %57, %62 : vector<64x16xf32>
    %64 = arith.mulf %63, %63 : vector<64x16xf32>
    %cst_56 = arith.constant dense<0.000000e+00> : vector<64xf32>
    %65 = vector.multi_reduction <add>, %64, %cst_56 [1] : vector<64x16xf32> to vector<64xf32>
    %66 = vector.shape_cast %65 : vector<64xf32> to vector<64x1xf32>
    %cst_57 = arith.constant 1.600000e+01 : f32
    %67 = vector.broadcast %cst_57 : f32 to vector<64x1xf32>
    %68 = arith.divf %66, %67 : vector<64x1xf32>
    %69 = vector.broadcast %61 : vector<64x1xf32> to vector<64x16xf32>
    %70 = arith.subf %57, %69 : vector<64x16xf32>
    %cst_58 = arith.constant 9.99999974E-6 : f32
    %71 = vector.broadcast %cst_58 : f32 to vector<64x1xf32>
    %72 = arith.addf %68, %71 : vector<64x1xf32>
    %73 = math.rsqrt %72 : vector<64x1xf32>
    %74 = vector.broadcast %73 : vector<64x1xf32> to vector<64x16xf32>
    %75 = arith.mulf %70, %74 : vector<64x16xf32>
    %76 = vector.extract_strided_slice %30 {offsets = [2, 0], sizes = [1, 16], strides = [1, 1]} : vector<4x16xf32> to vector<1x16xf32>
    %77 = vector.broadcast %76 : vector<1x16xf32> to vector<64x16xf32>
    %78 = arith.mulf %75, %77 : vector<64x16xf32>
    %79 = vector.extract_strided_slice %30 {offsets = [3, 0], sizes = [1, 16], strides = [1, 1]} : vector<4x16xf32> to vector<1x16xf32>
    %80 = vector.broadcast %79 : vector<1x16xf32> to vector<64x16xf32>
    %81 = arith.addf %78, %80 : vector<64x16xf32>
    %c0_59 = arith.constant 0 : index
    %c0_60 = arith.constant 0 : index
    %c0_61 = arith.constant 0 : index
    %82 = vector.load %arg7[%c0_59, %c0_60, %c0_61] : memref<1x64x16xf32, #tpu.memory_space<vmem>>, vector<1x64x16xf32>
    %83 = vector.shape_cast %82 : vector<1x64x16xf32> to vector<64x16xf32>
    %84 = vector.shape_cast %81 : vector<64x16xf32> to vector<1x64x16xf32>
    tpu.vector_store %arg7[%c0_59, %c0_60, %c0_61], %84 {strides = array<i32>} : memref<1x64x16xf32, #tpu.memory_space<vmem>>, vector<1x64x16xf32>,
    return
  }
  func.func @transform_0(%arg0: i32) -> (i32, i32, i32) {
    %c0_i32 = arith.constant 0 : i32
    %c0_i32_0 = arith.constant 0 : i32
    %c0_i32_1 = arith.constant 0 : i32
    return %arg0, %c0_i32, %c0_i32_0 : i32, i32, i32
  }
  func.func @transform_1(%arg0: i32) -> (i32, i32, i32) {
    %c0_i32 = arith.constant 0 : i32
    %c0_i32_0 = arith.constant 0 : i32
    %c0_i32_1 = arith.constant 0 : i32
    %c0_i32_2 = arith.constant 0 : i32
    return %c0_i32, %c0_i32_0, %c0_i32_1 : i32, i32, i32
  }
  func.func @transform_2(%arg0: i32) -> (i32, i32, i32) {
    %c0_i32 = arith.constant 0 : i32
    %c0_i32_0 = arith.constant 0 : i32
    %c0_i32_1 = arith.constant 0 : i32
    %c0_i32_2 = arith.constant 0 : i32
    return %c0_i32, %c0_i32_0, %c0_i32_1 : i32, i32, i32
  }
  func.func @transform_3(%arg0: i32) -> (i32, i32, i32) {
    %c0_i32 = arith.constant 0 : i32
    %c0_i32_0 = arith.constant 0 : i32
    %c0_i32_1 = arith.constant 0 : i32
    %c0_i32_2 = arith.constant 0 : i32
    return %c0_i32, %c0_i32_0, %c0_i32_1 : i32, i32, i32
  }
  func.func @transform_4(%arg0: i32) -> (i32, i32) {
    %c0_i32 = arith.constant 0 : i32
    %c0_i32_0 = arith.constant 0 : i32
    %c0_i32_1 = arith.constant 0 : i32
    return %c0_i32, %c0_i32_0 : i32, i32
  }
  func.func @transform_5(%arg0: i32) -> (i32, i32) {
    %c0_i32 = arith.constant 0 : i32
    %c0_i32_0 = arith.constant 0 : i32
    %c0_i32_1 = arith.constant 0 : i32
    return %c0_i32, %c0_i32_0 : i32, i32
  }
  func.func @transform_6(%arg0: i32) -> (i32, i32, i32) {
    %c0_i32 = arith.constant 0 : i32
    %c0_i32_0 = arith.constant 0 : i32
    %c0_i32_1 = arith.constant 0 : i32
    return %arg0, %c0_i32, %c0_i32_0 : i32, i32, i32
  }
}

module attributes {stable_mosaic.version = 11 : i64} {
  func.func @_gcn_block_kernel(%arg0: i32, %arg1: memref<1x64x16xf32, #tpu.memory_space<vmem>>, %arg2: memref<3x64x64xf32, #tpu.memory_space<vmem>>, %arg3: memref<3x16x16xf32, #tpu.memory_space<vmem>>, %arg4: memref<3x16x16xf32, #tpu.memory_space<vmem>>, %arg5: memref<16x16xf32, #tpu.memory_space<vmem>>, %arg6: memref<4x16xf32, #tpu.memory_space<vmem>>, %arg7: memref<1x64x16xf32, #tpu.memory_space<vmem>>, %arg8: memref<80x16xf32, #tpu.memory_space<vmem>>) attributes {dimension_semantics = [#tpu.dimension_semantics<parallel>], iteration_bounds = array<i64: 2>, scalar_prefetch = 0 : i64, scratch_operands = 1 : i64, tpu.core_type = #tpu.core_type<tc>, window_params = [{transform_indices = @transform_0, window_bounds = array<i64: 1, 64, 16>}, {pipeline_mode = #tpu.pipeline_mode<synchronous>, transform_indices = @transform_1, window_bounds = array<i64: 3, 64, 64>}, {pipeline_mode = #tpu.pipeline_mode<synchronous>, transform_indices = @transform_2, window_bounds = array<i64: 3, 16, 16>}, {pipeline_mode = #tpu.pipeline_mode<synchronous>, transform_indices = @transform_3, window_bounds = array<i64: 3, 16, 16>}, {pipeline_mode = #tpu.pipeline_mode<synchronous>, transform_indices = @transform_4, window_bounds = array<i64: 16, 16>}, {pipeline_mode = #tpu.pipeline_mode<synchronous>, transform_indices = @transform_5, window_bounds = array<i64: 4, 16>}, {transform_indices = @transform_6, window_bounds = array<i64: 1, 64, 16>}]} {
    %c0 = arith.constant 0 : index
    %c0_0 = arith.constant 0 : index
    %c0_1 = arith.constant 0 : index
    %0 = vector.load %arg1[%c0, %c0_0, %c0_1] : memref<1x64x16xf32, #tpu.memory_space<vmem>>, vector<1x64x16xf32>
    %1 = vector.shape_cast %0 : vector<1x64x16xf32> to vector<64x16xf32>
    %cst = arith.constant 0.000000e+00 : f32
    %2 = vector.broadcast %cst : f32 to vector<64x16xf32>
    %c0_2 = arith.constant 0 : index
    %c0_3 = arith.constant 0 : index
    %c0_4 = arith.constant 0 : index
    %3 = vector.load %arg3[%c0_2, %c0_3, %c0_4] : memref<3x16x16xf32, #tpu.memory_space<vmem>>, vector<1x16x16xf32>
    %4 = vector.shape_cast %3 : vector<1x16x16xf32> to vector<16x16xf32>
    %cst_5 = arith.constant dense<0.000000e+00> : vector<64x16xf32>
    %5 = tpu.matmul %1, %4, %cst_5 {dimension_numbers = #tpu.dot_dimension_numbers<[1], [0], [0], [1], [0, 0, 1, 1], [], []>} : vector<64x16xf32>, vector<16x16xf32>, vector<64x16xf32> -> vector<64x16xf32>
    %c0_6 = arith.constant 0 : index
    %c0_7 = arith.constant 0 : index
    %c0_8 = arith.constant 0 : index
    %6 = vector.load %arg2[%c0_6, %c0_7, %c0_8] : memref<3x64x64xf32, #tpu.memory_space<vmem>>, vector<1x64x64xf32>
    %7 = vector.shape_cast %6 : vector<1x64x64xf32> to vector<64x64xf32>
    %cst_9 = arith.constant dense<0.000000e+00> : vector<64x16xf32>
    %8 = tpu.matmul %7, %5, %cst_9 {dimension_numbers = #tpu.dot_dimension_numbers<[1], [0], [0], [1], [0, 0, 1, 1], [], []>} : vector<64x64xf32>, vector<64x16xf32>, vector<64x16xf32> -> vector<64x16xf32>
    %9 = arith.addf %2, %8 : vector<64x16xf32>
    %c1 = arith.constant 1 : index
    %c0_10 = arith.constant 0 : index
    %c0_11 = arith.constant 0 : index
    %10 = vector.load %arg3[%c1, %c0_10, %c0_11] : memref<3x16x16xf32, #tpu.memory_space<vmem>>, vector<1x16x16xf32>
    %11 = vector.shape_cast %10 : vector<1x16x16xf32> to vector<16x16xf32>
    %cst_12 = arith.constant dense<0.000000e+00> : vector<64x16xf32>
    %12 = tpu.matmul %1, %11, %cst_12 {dimension_numbers = #tpu.dot_dimension_numbers<[1], [0], [0], [1], [0, 0, 1, 1], [], []>} : vector<64x16xf32>, vector<16x16xf32>, vector<64x16xf32> -> vector<64x16xf32>
    %c1_13 = arith.constant 1 : index
    %c0_14 = arith.constant 0 : index
    %c0_15 = arith.constant 0 : index
    %13 = vector.load %arg2[%c1_13, %c0_14, %c0_15] : memref<3x64x64xf32, #tpu.memory_space<vmem>>, vector<1x64x64xf32>
    %14 = vector.shape_cast %13 : vector<1x64x64xf32> to vector<64x64xf32>
    %cst_16 = arith.constant dense<0.000000e+00> : vector<64x16xf32>
    %15 = tpu.matmul %14, %12, %cst_16 {dimension_numbers = #tpu.dot_dimension_numbers<[1], [0], [0], [1], [0, 0, 1, 1], [], []>} : vector<64x64xf32>, vector<64x16xf32>, vector<64x16xf32> -> vector<64x16xf32>
    %16 = arith.addf %9, %15 : vector<64x16xf32>
    %c2 = arith.constant 2 : index
    %c0_17 = arith.constant 0 : index
    %c0_18 = arith.constant 0 : index
    %17 = vector.load %arg3[%c2, %c0_17, %c0_18] : memref<3x16x16xf32, #tpu.memory_space<vmem>>, vector<1x16x16xf32>
    %18 = vector.shape_cast %17 : vector<1x16x16xf32> to vector<16x16xf32>
    %cst_19 = arith.constant dense<0.000000e+00> : vector<64x16xf32>
    %19 = tpu.matmul %1, %18, %cst_19 {dimension_numbers = #tpu.dot_dimension_numbers<[1], [0], [0], [1], [0, 0, 1, 1], [], []>} : vector<64x16xf32>, vector<16x16xf32>, vector<64x16xf32> -> vector<64x16xf32>
    %c2_20 = arith.constant 2 : index
    %c0_21 = arith.constant 0 : index
    %c0_22 = arith.constant 0 : index
    %20 = vector.load %arg2[%c2_20, %c0_21, %c0_22] : memref<3x64x64xf32, #tpu.memory_space<vmem>>, vector<1x64x64xf32>
    %21 = vector.shape_cast %20 : vector<1x64x64xf32> to vector<64x64xf32>
    %cst_23 = arith.constant dense<0.000000e+00> : vector<64x16xf32>
    %22 = tpu.matmul %21, %19, %cst_23 {dimension_numbers = #tpu.dot_dimension_numbers<[1], [0], [0], [1], [0, 0, 1, 1], [], []>} : vector<64x64xf32>, vector<64x16xf32>, vector<64x16xf32> -> vector<64x16xf32>
    %23 = arith.addf %16, %22 : vector<64x16xf32>
    %cst_24 = arith.constant 0.000000e+00 : f32
    %24 = vector.broadcast %cst_24 : f32 to vector<64x16xf32>
    %25 = arith.maximumf %23, %24 : vector<64x16xf32>
    %cst_25 = arith.constant 0.000000e+00 : f32
    %26 = vector.broadcast %cst_25 : f32 to vector<8x16xf32>
    %c0_26 = arith.constant 0 : index
    %c0_27 = arith.constant 0 : index
    %27 = vector.load %arg8[%c0_26, %c0_27] : memref<80x16xf32, #tpu.memory_space<vmem>>, vector<8x16xf32>
    tpu.vector_store %arg8[%c0_26, %c0_27], %26 {strides = array<i32>} : memref<80x16xf32, #tpu.memory_space<vmem>>, vector<8x16xf32>,
    %c72 = arith.constant 72 : index
    %c0_28 = arith.constant 0 : index
    %28 = vector.load %arg8[%c72, %c0_28] : memref<80x16xf32, #tpu.memory_space<vmem>>, vector<8x16xf32>
    tpu.vector_store %arg8[%c72, %c0_28], %26 {strides = array<i32>} : memref<80x16xf32, #tpu.memory_space<vmem>>, vector<8x16xf32>,
    %c8 = arith.constant 8 : index
    %c0_29 = arith.constant 0 : index
    %29 = vector.load %arg8[%c8, %c0_29] : memref<80x16xf32, #tpu.memory_space<vmem>>, vector<64x16xf32>
    tpu.vector_store %arg8[%c8, %c0_29], %25 {strides = array<i32>} : memref<80x16xf32, #tpu.memory_space<vmem>>, vector<64x16xf32>,
    %c0_30 = arith.constant 0 : index
    %c0_31 = arith.constant 0 : index
    %30 = vector.load %arg6[%c0_30, %c0_31] : memref<4x16xf32, #tpu.memory_space<vmem>>, vector<4x16xf32>
    %cst_32 = arith.constant 0.000000e+00 : f32
    %31 = vector.broadcast %cst_32 : f32 to vector<64x16xf32>
    %c0_33 = arith.constant 0 : index
    %c0_34 = arith.constant 0 : index
    %32 = vector.load %arg8[%c0_33, %c0_34] : memref<80x16xf32, #tpu.memory_space<vmem>>, vector<64x16xf32>
    %c0_35 = arith.constant 0 : index
    %c0_36 = arith.constant 0 : index
    %c0_37 = arith.constant 0 : index
    %33 = vector.load %arg4[%c0_35, %c0_36, %c0_37] : memref<3x16x16xf32, #tpu.memory_space<vmem>>, vector<1x16x16xf32>
    %34 = vector.shape_cast %33 : vector<1x16x16xf32> to vector<16x16xf32>
    %cst_38 = arith.constant dense<0.000000e+00> : vector<64x16xf32>
    %35 = tpu.matmul %32, %34, %cst_38 {dimension_numbers = #tpu.dot_dimension_numbers<[1], [0], [0], [1], [0, 0, 1, 1], [], []>} : vector<64x16xf32>, vector<16x16xf32>, vector<64x16xf32> -> vector<64x16xf32>
    %36 = arith.addf %31, %35 : vector<64x16xf32>
    %c8_39 = arith.constant 8 : index
    %c0_40 = arith.constant 0 : index
    %37 = vector.load %arg8[%c8_39, %c0_40] : memref<80x16xf32, #tpu.memory_space<vmem>>, vector<64x16xf32>
    %c1_41 = arith.constant 1 : index
    %c0_42 = arith.constant 0 : index
    %c0_43 = arith.constant 0 : index
    %38 = vector.load %arg4[%c1_41, %c0_42, %c0_43] : memref<3x16x16xf32, #tpu.memory_space<vmem>>, vector<1x16x16xf32>
    %39 = vector.shape_cast %38 : vector<1x16x16xf32> to vector<16x16xf32>
    %cst_44 = arith.constant dense<0.000000e+00> : vector<64x16xf32>
    %40 = tpu.matmul %37, %39, %cst_44 {dimension_numbers = #tpu.dot_dimension_numbers<[1], [0], [0], [1], [0, 0, 1, 1], [], []>} : vector<64x16xf32>, vector<16x16xf32>, vector<64x16xf32> -> vector<64x16xf32>
    %41 = arith.addf %36, %40 : vector<64x16xf32>
    %c16 = arith.constant 16 : index
    %c0_45 = arith.constant 0 : index
    %42 = vector.load %arg8[%c16, %c0_45] : memref<80x16xf32, #tpu.memory_space<vmem>>, vector<64x16xf32>
    %c2_46 = arith.constant 2 : index
    %c0_47 = arith.constant 0 : index
    %c0_48 = arith.constant 0 : index
    %43 = vector.load %arg4[%c2_46, %c0_47, %c0_48] : memref<3x16x16xf32, #tpu.memory_space<vmem>>, vector<1x16x16xf32>
    %44 = vector.shape_cast %43 : vector<1x16x16xf32> to vector<16x16xf32>
    %cst_49 = arith.constant dense<0.000000e+00> : vector<64x16xf32>
    %45 = tpu.matmul %42, %44, %cst_49 {dimension_numbers = #tpu.dot_dimension_numbers<[1], [0], [0], [1], [0, 0, 1, 1], [], []>} : vector<64x16xf32>, vector<16x16xf32>, vector<64x16xf32> -> vector<64x16xf32>
    %46 = arith.addf %41, %45 : vector<64x16xf32>
    %c0_50 = arith.constant 0 : index
    %c0_51 = arith.constant 0 : index
    %47 = vector.load %arg5[%c0_50, %c0_51] : memref<16x16xf32, #tpu.memory_space<vmem>>, vector<16x16xf32>
    %cst_52 = arith.constant dense<0.000000e+00> : vector<64x16xf32>
    %48 = tpu.matmul %1, %47, %cst_52 {dimension_numbers = #tpu.dot_dimension_numbers<[1], [0], [0], [1], [0, 0, 1, 1], [], []>} : vector<64x16xf32>, vector<16x16xf32>, vector<64x16xf32> -> vector<64x16xf32>
    %49 = arith.addf %46, %48 : vector<64x16xf32>
    %50 = vector.extract_strided_slice %30 {offsets = [0, 0], sizes = [1, 16], strides = [1, 1]} : vector<4x16xf32> to vector<1x16xf32>
    %51 = vector.broadcast %50 : vector<1x16xf32> to vector<64x16xf32>
    %52 = arith.addf %49, %51 : vector<64x16xf32>
    %53 = vector.extract_strided_slice %30 {offsets = [1, 0], sizes = [1, 16], strides = [1, 1]} : vector<4x16xf32> to vector<1x16xf32>
    %54 = vector.broadcast %53 : vector<1x16xf32> to vector<64x16xf32>
    %55 = arith.addf %52, %54 : vector<64x16xf32>
    %cst_53 = arith.constant 0.000000e+00 : f32
    %56 = vector.broadcast %cst_53 : f32 to vector<64x16xf32>
    %57 = arith.maximumf %55, %56 : vector<64x16xf32>
    %cst_54 = arith.constant dense<0.000000e+00> : vector<64xf32>
    %58 = vector.multi_reduction <add>, %57, %cst_54 [1] : vector<64x16xf32> to vector<64xf32>
    %59 = vector.shape_cast %58 : vector<64xf32> to vector<64x1xf32>
    %cst_55 = arith.constant 1.600000e+01 : f32
    %60 = vector.broadcast %cst_55 : f32 to vector<64x1xf32>
    %61 = arith.divf %59, %60 : vector<64x1xf32>
    %62 = vector.broadcast %61 : vector<64x1xf32> to vector<64x16xf32>
    %63 = arith.subf %57, %62 : vector<64x16xf32>
    %64 = arith.mulf %63, %63 : vector<64x16xf32>
    %cst_56 = arith.constant dense<0.000000e+00> : vector<64xf32>
    %65 = vector.multi_reduction <add>, %64, %cst_56 [1] : vector<64x16xf32> to vector<64xf32>
    %66 = vector.shape_cast %65 : vector<64xf32> to vector<64x1xf32>
    %cst_57 = arith.constant 1.600000e+01 : f32
    %67 = vector.broadcast %cst_57 : f32 to vector<64x1xf32>
    %68 = arith.divf %66, %67 : vector<64x1xf32>
    %69 = vector.broadcast %61 : vector<64x1xf32> to vector<64x16xf32>
    %70 = arith.subf %57, %69 : vector<64x16xf32>
    %cst_58 = arith.constant 9.99999974E-6 : f32
    %71 = vector.broadcast %cst_58 : f32 to vector<64x1xf32>
    %72 = arith.addf %68, %71 : vector<64x1xf32>
    %73 = math.rsqrt %72 : vector<64x1xf32>
    %74 = vector.broadcast %73 : vector<64x1xf32> to vector<64x16xf32>
    %75 = arith.mulf %70, %74 : vector<64x16xf32>
    %76 = vector.extract_strided_slice %30 {offsets = [2, 0], sizes = [1, 16], strides = [1, 1]} : vector<4x16xf32> to vector<1x16xf32>
    %77 = vector.broadcast %76 : vector<1x16xf32> to vector<64x16xf32>
    %78 = arith.mulf %75, %77 : vector<64x16xf32>
    %79 = vector.extract_strided_slice %30 {offsets = [3, 0], sizes = [1, 16], strides = [1, 1]} : vector<4x16xf32> to vector<1x16xf32>
    %80 = vector.broadcast %79 : vector<1x16xf32> to vector<64x16xf32>
    %81 = arith.addf %78, %80 : vector<64x16xf32>
    %c0_59 = arith.constant 0 : index
    %c0_60 = arith.constant 0 : index
    %c0_61 = arith.constant 0 : index
    %82 = vector.load %arg7[%c0_59, %c0_60, %c0_61] : memref<1x64x16xf32, #tpu.memory_space<vmem>>, vector<1x64x16xf32>
    %83 = vector.shape_cast %82 : vector<1x64x16xf32> to vector<64x16xf32>
    %84 = vector.shape_cast %81 : vector<64x16xf32> to vector<1x64x16xf32>
    tpu.vector_store %arg7[%c0_59, %c0_60, %c0_61], %84 {strides = array<i32>} : memref<1x64x16xf32, #tpu.memory_space<vmem>>, vector<1x64x16xf32>,
    return
  }
  func.func @transform_0(%arg0: i32) -> (i32, i32, i32) {
    %c0_i32 = arith.constant 0 : i32
    %c0_i32_0 = arith.constant 0 : i32
    %c0_i32_1 = arith.constant 0 : i32
    return %arg0, %c0_i32, %c0_i32_0 : i32, i32, i32
  }
  func.func @transform_1(%arg0: i32) -> (i32, i32, i32) {
    %c0_i32 = arith.constant 0 : i32
    %c0_i32_0 = arith.constant 0 : i32
    %c0_i32_1 = arith.constant 0 : i32
    %c0_i32_2 = arith.constant 0 : i32
    return %c0_i32, %c0_i32_0, %c0_i32_1 : i32, i32, i32
  }
  func.func @transform_2(%arg0: i32) -> (i32, i32, i32) {
    %c0_i32 = arith.constant 0 : i32
    %c0_i32_0 = arith.constant 0 : i32
    %c0_i32_1 = arith.constant 0 : i32
    %c0_i32_2 = arith.constant 0 : i32
    return %c0_i32, %c0_i32_0, %c0_i32_1 : i32, i32, i32
  }
  func.func @transform_3(%arg0: i32) -> (i32, i32, i32) {
    %c0_i32 = arith.constant 0 : i32
    %c0_i32_0 = arith.constant 0 : i32
    %c0_i32_1 = arith.constant 0 : i32
    %c0_i32_2 = arith.constant 0 : i32
    return %c0_i32, %c0_i32_0, %c0_i32_1 : i32, i32, i32
  }
  func.func @transform_4(%arg0: i32) -> (i32, i32) {
    %c0_i32 = arith.constant 0 : i32
    %c0_i32_0 = arith.constant 0 : i32
    %c0_i32_1 = arith.constant 0 : i32
    return %c0_i32, %c0_i32_0 : i32, i32
  }
  func.func @transform_5(%arg0: i32) -> (i32, i32) {
    %c0_i32 = arith.constant 0 : i32
    %c0_i32_0 = arith.constant 0 : i32
    %c0_i32_1 = arith.constant 0 : i32
    return %c0_i32, %c0_i32_0 : i32, i32
  }
  func.func @transform_6(%arg0: i32) -> (i32, i32, i32) {
    %c0_i32 = arith.constant 0 : i32
    %c0_i32_0 = arith.constant 0 : i32
    %c0_i32_1 = arith.constant 0 : i32
    return %arg0, %c0_i32, %c0_i32_0 : i32, i32, i32
  }
}

</mosaic_0001>

<llo_original>
// kernel: fwd.2
$region0: #{fwd.2}
  #allocation0 [shape = 'u32[]', space=smem, size = 0x4, offset = 0x4, fixed_abs, tag = 'smem constant byte address 0x4 - core index']
  #allocation1 [shape = 'u32[144,128]{1,0:T(1,128)}', space=vmem, size = 0x12000, scoped, tag = 'internal scratch']
  #allocation2 [shape = 'f32[80,16]{1,0:T(8,128)}', space=vmem, size = 0xa000, scoped, tag = 'scratch operand']
  %s0 = inlined_call_operand.vmem [shape: f32[2,64,4], index: 0, kind: input, shape index: {}]
  %s1 = inlined_call_operand.vmem [shape: f32[3,64,64], index: 1, kind: input, shape index: {}]
  %s2 = inlined_call_operand.vmem [shape: f32[3,4,16], index: 2, kind: input, shape index: {}]
  %s3 = inlined_call_operand.hbm [shape: f32[3,16,16], index: 3, kind: input, shape index: {}]
  %s4 = inlined_call_operand.vmem [shape: f32[4,16], index: 4, kind: input, shape index: {}]
  %s5 = inlined_call_operand.hbm [shape: f32[4,16], index: 5, kind: input, shape index: {}]
  %s6 = inlined_call_operand.vmem [shape: f32[2,64,16], index: 6, kind: output, shape index: {}]
  %s7 = sld [smem:[#allocation0]]
  $region65: #{fwd.2} parent=0
    _
  %s9 = ssub.s32 1, %s7
  %s10 = scalar_select 0, %s9, %s7
  $region1: #{fwd.2} parent=0
    #allocation3 [shape = 'u8[24576]{0}', space=vmem, size = 0x6000, scoped, tag = 'input window, operand 3, single buffered']
    #allocation4 [shape = 's32[2]{0}', space=sflag, size = 0x8, scoped, tag = 'scoped memory for fwd.2']
    #allocation5 [shape = 'u8[2048]{0}', space=vmem, size = 0x800, scoped, tag = 'input window, operand 5, single buffered']
    #allocation6 [shape = 's32[1]{0}', space=sflag, size = 0x4, scoped, tag = 'scoped memory for fwd.2']
    %11 = vsyncpa [#allocation4], 0
    %12 = vsyncpa [#allocation6], 0
    loop: start=0, step=1, limit=4
    $region2: #{fwd.2} parent=1 // loop_pre_header
      _
    $region3: #{fwd.2} parent=1 // loop_header
      %s14 = sphi 0, %s18
      %p15 = scmp.ge.s32.totalorder %s14, 4
      %s24 = sphi 0, %s26
      %s27 = sphi 0, %s24
      %s28 = sphi 0, %s27
      %s44 = sphi 0, %s28
      %s48 = sphi 0, %s48
      %s50 = sphi 0, %s48
      %s51 = sphi 0, %s50
      %s65 = sphi 0, %s51
      %s69 = sphi 0, %s69
      %s71 = sphi 0, %s69
      %s72 = sphi 0, %s71
      %s86 = sphi 0, %s72
      %s90 = sphi 0, %s90
      %s92 = sphi 0, %s90
      %s93 = sphi 0, %s92
      %s107 = sphi 0, %s93
      %s111 = sphi 0, %s111
      %s113 = sphi 0, %s111
      %s114 = sphi 0, %s113
      %s128 = sphi 0, %s114
      %s132 = sphi 0, %s132
      %s134 = sphi 0, %s132
      %s135 = sphi 0, %s134
      %s149 = sphi 0, %s135
      %s155 = sphi 0, %s157
      %s158 = sphi 0, %s155
      %s159 = sphi 0, %s158
      %s175 = sphi 0, %s159
    $region4: #{fwd.2} parent=1 // loop_header_branch
      %17 = sbr.rel (%p15) target = $region8
    $region5: #{fwd.2} parent=1 // loop_body
      %s19 = ssub.s32 %s14, 1
      %s20 = ssub.s32 %s14, 2
      %s21 = sadd.s32 %s14, 1
      %s22 = ssub.s32 %s14, %s21
      %p23 = scmp.eq.s32.totalorder %s22, 0
      %s25 = sadd.s32 %s24, 1
      %s26 = scalar_select %p23, %s24, %s25
      %p29 = pneg %p23
      %p30 = scmp.eq.s32.totalorder %s14, 1
      %p31 = por %p29, %p30
      %p32 = scmp.ne.s32.totalorder %s24, %s27
      %p33 = scmp.eq.s32.totalorder %s14, 0
      %p34 = por %p32, %p33
      %p35 = scmp.ne.s32.totalorder %s24, %s27
      %p36 = scmp.eq.s32.totalorder %s19, 1
      %p37 = por %p35, %p36
      %p38 = scmp.ne.s32.totalorder %s27, %s28
      %p39 = scmp.eq.s32.totalorder %s19, 0
      %p40 = por %p38, %p39
      %p41 = scmp.ne.s32.totalorder %s27, %s28
      %p42 = scmp.eq.s32.totalorder %s20, 1
      %p43 = por %p41, %p42
      %p45 = scmp.ne.s32.totalorder %s28, %s44
      %p46 = scmp.eq.s32.totalorder %s20, 0
      %p47 = por %p45, %p46
      %s49 = sadd.s32 %s48, 1
      %p52 = scmp.eq.s32.totalorder %s14, 1
      %p53 = scmp.ne.s32.totalorder %s48, %s50
      %p54 = scmp.eq.s32.totalorder %s14, 0
      %p55 = por %p53, %p54
      %p56 = scmp.ne.s32.totalorder %s48, %s50
      %p57 = scmp.eq.s32.totalorder %s19, 1
      %p58 = por %p56, %p57
      %p59 = scmp.ne.s32.totalorder %s50, %s51
      %p60 = scmp.eq.s32.totalorder %s19, 0
      %p61 = por %p59, %p60
      %p62 = scmp.ne.s32.totalorder %s50, %s51
      %p63 = scmp.eq.s32.totalorder %s20, 1
      %p64 = por %p62, %p63
      %p66 = scmp.ne.s32.totalorder %s51, %s65
      %p67 = scmp.eq.s32.totalorder %s20, 0
      %p68 = por %p66, %p67
      %s70 = sadd.s32 %s69, 1
      %p73 = scmp.eq.s32.totalorder %s14, 1
      %p74 = scmp.ne.s32.totalorder %s69, %s71
      %p75 = scmp.eq.s32.totalorder %s14, 0
      %p76 = por %p74, %p75
      %p77 = scmp.ne.s32.totalorder %s69, %s71
      %p78 = scmp.eq.s32.totalorder %s19, 1
      %p79 = por %p77, %p78
      %p80 = scmp.ne.s32.totalorder %s71, %s72
      %p81 = scmp.eq.s32.totalorder %s19, 0
      %p82 = por %p80, %p81
      %p83 = scmp.ne.s32.totalorder %s71, %s72
      %p84 = scmp.eq.s32.totalorder %s20, 1
      %p85 = por %p83, %p84
      %p87 = scmp.ne.s32.totalorder %s72, %s86
      %p88 = scmp.eq.s32.totalorder %s20, 0
      %p89 = por %p87, %p88
      %s91 = sadd.s32 %s90, 1
      %p94 = scmp.eq.s32.totalorder %s14, 1
      %p95 = scmp.ne.s32.totalorder %s90, %s92
      %p96 = scmp.eq.s32.totalorder %s14, 0
      %p97 = por %p95, %p96
      %p98 = scmp.ne.s32.totalorder %s90, %s92
      %p99 = scmp.eq.s32.totalorder %s19, 1
      %p100 = por %p98, %p99
      %p101 = scmp.ne.s32.totalorder %s92, %s93
      %p102 = scmp.eq.s32.totalorder %s19, 0
      %p103 = por %p101, %p102
      %p104 = scmp.ne.s32.totalorder %s92, %s93
      %p105 = scmp.eq.s32.totalorder %s20, 1
      %p106 = por %p104, %p105
      %p108 = scmp.ne.s32.totalorder %s93, %s107
      %p109 = scmp.eq.s32.totalorder %s20, 0
      %p110 = por %p108, %p109
      %s112 = sadd.s32 %s111, 1
      %p115 = scmp.eq.s32.totalorder %s14, 1
      %p116 = scmp.ne.s32.totalorder %s111, %s113
      %p117 = scmp.eq.s32.totalorder %s14, 0
      %p118 = por %p116, %p117
      %p119 = scmp.ne.s32.totalorder %s111, %s113
      %p120 = scmp.eq.s32.totalorder %s19, 1
      %p121 = por %p119, %p120
      %p122 = scmp.ne.s32.totalorder %s113, %s114
      %p123 = scmp.eq.s32.totalorder %s19, 0
      %p124 = por %p122, %p123
      %p125 = scmp.ne.s32.totalorder %s113, %s114
      %p126 = scmp.eq.s32.totalorder %s20, 1
      %p127 = por %p125, %p126
      %p129 = scmp.ne.s32.totalorder %s114, %s128
      %p130 = scmp.eq.s32.totalorder %s20, 0
      %p131 = por %p129, %p130
      %s133 = sadd.s32 %s132, 1
      %p136 = scmp.eq.s32.totalorder %s14, 1
      %p137 = scmp.ne.s32.totalorder %s132, %s134
      %p138 = scmp.eq.s32.totalorder %s14, 0
      %p139 = por %p137, %p138
      %p140 = scmp.ne.s32.totalorder %s132, %s134
      %p141 = scmp.eq.s32.totalorder %s19, 1
      %p142 = por %p140, %p141
      %p143 = scmp.ne.s32.totalorder %s134, %s135
      %p144 = scmp.eq.s32.totalorder %s19, 0
      %p145 = por %p143, %p144
      %p146 = scmp.ne.s32.totalorder %s134, %s135
      %p147 = scmp.eq.s32.totalorder %s20, 1
      %p148 = por %p146, %p147
      %p150 = scmp.ne.s32.totalorder %s135, %s149
      %p151 = scmp.eq.s32.totalorder %s20, 0
      %p152 = por %p150, %p151
      %s153 = ssub.s32 %s14, %s21
      %p154 = scmp.eq.s32.totalorder %s153, 0
      %s156 = sadd.s32 %s155, 1
      %s157 = scalar_select %p154, %s155, %s156
      %p160 = pneg %p154
      %p161 = scmp.eq.s32.totalorder %s14, 1
      %p162 = por %p160, %p161
      %p163 = scmp.ne.s32.totalorder %s155, %s158
      %p164 = scmp.eq.s32.totalorder %s14, 0
      %p165 = por %p163, %p164
      %p166 = scmp.ne.s32.totalorder %s155, %s158
      %p167 = scmp.eq.s32.totalorder %s19, 1
      %p168 = por %p166, %p167
      %p169 = scmp.ne.s32.totalorder %s158, %s159
      %p170 = scmp.eq.s32.totalorder %s19, 0
      %p171 = por %p169, %p170
      %p172 = scmp.ne.s32.totalorder %s158, %s159
      %p173 = scmp.eq.s32.totalorder %s20, 1
      %p174 = por %p172, %p173
      %p176 = scmp.ne.s32.totalorder %s159, %s175
      %p177 = scmp.eq.s32.totalorder %s20, 0
      %p178 = por %p176, %p177
      %p179 = scmp.le.s32.totalorder 1, %s14
      %p180 = scmp.lt.s32.totalorder %s14, 3
      %p181 = pnand %p179, %p180
      %p182 = pneg %p181
      // Predicated region
      $region9: #{fwd.2} parent=5 // pred_check
        _
      $region10: #{fwd.2} parent=5 // pred_check_branch
        %184 = sbr.rel (%p181) target = $region12
      $region11: #{fwd.2} parent=5 // pred_region
        %s185 = ssub.s32 %s14, 1
        // Predicated region
        $region13: #{fwd.2} parent=11 // pred_check
          %p186 = pneg %p61
        $region14: #{fwd.2} parent=11 // pred_check_branch
          %188 = sbr.rel (%p186) target = $region16
        $region15: #{fwd.2} parent=11 // pred_region
          _
        $region16: #{fwd.2} parent=11 // pred_fallthru
          _
        // Predicated region
        $region17: #{fwd.2} parent=11 // pred_check
          %p189 = pneg %p82
        $region18: #{fwd.2} parent=11 // pred_check_branch
          %191 = sbr.rel (%p189) target = $region20
        $region19: #{fwd.2} parent=11 // pred_region
          _
        $region20: #{fwd.2} parent=11 // pred_fallthru
          _
        // Predicated region
        $region21: #{fwd.2} parent=11 // pred_check
          %p192 = pneg %p103
        $region22: #{fwd.2} parent=11 // pred_check_branch
          %194 = sbr.rel (%p192) target = $region24
        $region23: #{fwd.2} parent=11 // pred_region
          %s196 = ssub.s32 768, 768
          %197 = vsyncadd [#allocation4], %s196
          %s198 = sshll.u32 [#allocation3], 4
          %s199 = int_to_ptr.vmem [resolvable:$true] %s198
          %204 = dma.hbm_to_vmem [thread:$0]  %s3, 768, %s199, [#allocation4], 128, 128, 8
        $region24: #{fwd.2} parent=11 // pred_fallthru
          _
        // Predicated region
        $region25: #{fwd.2} parent=11 // pred_check
          %p205 = pneg %p124
        $region26: #{fwd.2} parent=11 // pred_check_branch
          %207 = sbr.rel (%p205) target = $region28
        $region27: #{fwd.2} parent=11 // pred_region
          _
        $region28: #{fwd.2} parent=11 // pred_fallthru
          _
        // Predicated region
        $region29: #{fwd.2} parent=11 // pred_check
          %p208 = pneg %p145
        $region30: #{fwd.2} parent=11 // pred_check_branch
          %210 = sbr.rel (%p208) target = $region32
        $region31: #{fwd.2} parent=11 // pred_region
          %s212 = ssub.s32 64, 64
          %213 = vsyncadd [#allocation6], %s212
          %s215 = sshll.u32 [#allocation5], 4
          %s216 = int_to_ptr.vmem [resolvable:$true] %s215
          %218 = dma.hbm_to_vmem [thread:$0]  %s5, 64, %s216, [#allocation6]
        $region32: #{fwd.2} parent=11 // pred_fallthru
          _
      $region12: #{fwd.2} parent=5 // pred_fallthru
        _
      %p219 = scmp.lt.s32.totalorder %s14, 2
      // Predicated region
      $region33: #{fwd.2} parent=5 // pred_check
        %p220 = pneg %p219
      $region34: #{fwd.2} parent=5 // pred_check_branch
        %222 = sbr.rel (%p220) target = $region36
      $region35: #{fwd.2} parent=5 // pred_region
        // Predicated region
        $region37: #{fwd.2} parent=35 // pred_check
          %p223 = pneg %p34
        $region38: #{fwd.2} parent=35 // pred_check_branch
          %225 = sbr.rel (%p223) target = $region40
        $region39: #{fwd.2} parent=35 // pred_region
          %p226 = scmp.lt.s32.totalorder %s14, 1
          %s227 = scalar_select %p226, %s14, 1
          %s228 = smul.addr %s227, 8
          %s229 = smul.addr %s228, 8
          %s230 = scalar_lea.vmem %s0, %s229
        $region40: #{fwd.2} parent=35 // pred_fallthru
          _
      $region36: #{fwd.2} parent=5 // pred_fallthru
        _
      %p231 = scmp.le.s32.totalorder 1, %s14
      %p232 = scmp.lt.s32.totalorder %s14, 3
      %p233 = pnand %p231, %p232
      %p234 = pneg %p233
      // Predicated region
      $region41: #{fwd.2} parent=5 // pred_check
        _
      $region42: #{fwd.2} parent=5 // pred_check_branch
        %236 = sbr.rel (%p233) target = $region44
      $region43: #{fwd.2} parent=5 // pred_region
        %s237 = ssub.s32 %s14, 1
        // Predicated region
        $region45: #{fwd.2} parent=43 // pred_check
          %p238 = pneg %p103
        $region46: #{fwd.2} parent=43 // pred_check_branch
          %240 = sbr.rel (%p238) target = $region48
        $region47: #{fwd.2} parent=43 // pred_region
          %241 = dma.done [#allocation4], 768
        $region48: #{fwd.2} parent=43 // pred_fallthru
          _
        // Predicated region
        $region49: #{fwd.2} parent=43 // pred_check
          %p242 = pneg %p145
        $region50: #{fwd.2} parent=43 // pred_check_branch
          %244 = sbr.rel (%p242) target = $region52
        $region51: #{fwd.2} parent=43 // pred_region
          %245 = dma.done [#allocation6], 64
        $region52: #{fwd.2} parent=43 // pred_fallthru
          _
        %p246 = scmp.lt.s32.totalorder %s19, 1
        %s247 = scalar_select %p246, %s19, 1
        %s248 = smul.addr %s247, 8
        %s249 = smul.addr %s248, 8
        %s250 = scalar_lea.vmem %s0, %s249
        %p251 = pneg %p40
        %p252 = pneg %p37
        %p253 = pneg %p61
        %p254 = pneg %p58
        %p255 = pneg %p82
        %p256 = pneg %p79
        %p257 = pneg %p103
        %p258 = pneg %p100
        %p259 = pneg %p124
        %p260 = pneg %p121
        %p261 = pneg %p145
        %p262 = pneg %p142
        %p263 = pneg %p171
        %p264 = pneg %p168
        %p265 = scmp.lt.s32.totalorder %s19, 1
        %s266 = scalar_select %p265, %s19, 1
        %s267 = smul.addr %s266, 8
        %s268 = smul.addr %s267, 8
        %s269 = scalar_lea.vmem %s6, %s268
        %p270 = scmp.lt.s32.totalorder %s19, 1
        %s271 = scalar_select %p270, %s19, 1
        %s272 = smul.addr %s271, 8
        %s273 = smul.addr %s272, 8
        %s274 = scalar_lea.vmem %s0, %s273
        %p275 = scmp.lt.s32.totalorder %s19, 1
        %s276 = scalar_select %p275, %s19, 1
        %s277 = smul.addr %s276, 8
        %s278 = smul.addr %s277, 8
        %s279 = scalar_lea.vmem %s6, %s278
        %v280 = vld [vmem:[%s274] sm:$0xff]
        %v281 = vld [vmem:[%s274 + $0x8] sm:$0xff]
        %v282 = vld [vmem:[%s274 + $0x10] sm:$0xff]
        %v283 = vld [vmem:[%s274 + $0x18] sm:$0xff]
        %v284 = vld [vmem:[%s274 + $0x20] sm:$0xff]
        %v285 = vld [vmem:[%s274 + $0x28] sm:$0xff]
        %v286 = vld [vmem:[%s274 + $0x30] sm:$0xff]
        %v287 = vld [vmem:[%s274 + $0x38] sm:$0xff]
        %v288 = vld [vmem:[%s2] sm:$0xf]
        %vm289 = vcmask 31744
        %v291 = vsel %vm289, %v280, 0
        %v294 = vsel %vm289, %v281, 0
        %v297 = vsel %vm289, %v282, 0
        %v300 = vsel %vm289, %v283, 0
        %v303 = vsel %vm289, %v284, 0
        %v306 = vsel %vm289, %v285, 0
        %v309 = vsel %vm289, %v286, 0
        %v312 = vsel %vm289, %v287, 0
        %vm314 = vcmask 1043456
        %v316 = vsel %vm314, %v288, 0
        %318 = vmatprep.subr.mxu0 0.0
        %319 = vmatpush1.msra.mxu0 %v316
        %320 = vmatprep.subr.mxu0 0.0
        %321 = vmatpush1.msra.mxu0 0.0
        %322 = vmatprep.subr.mxu0 0.0
        %323 = vmatpush1.msra.mxu0 0.0
        %324 = vmatprep.subr.mxu0 0.0
        %325 = vmatpush1.msra.mxu0 0.0
        %326 = vmatprep.subr.mxu0 0.0
        %327 = vmatpush1.msra.mxu0 0.0
        %328 = vmatprep.subr.mxu0 0.0
        %329 = vmatpush1.msra.mxu0 0.0
        %330 = vmatprep.subr.mxu0 0.0
        %331 = vmatpush1.msra.mxu0 0.0
        %332 = vmatprep.subr.mxu0 0.0
        %333 = vmatpush1.msra.mxu0 0.0
        %334 = vmatprep.subr.mxu0 0.0
        %335 = vmatpush1.msra.mxu0 0.0
        %336 = vmatprep.subr.mxu0 0.0
        %337 = vmatpush1.msra.mxu0 0.0
        %338 = vmatprep.subr.mxu0 0.0
        %339 = vmatpush1.msra.mxu0 0.0
        %340 = vmatprep.subr.mxu0 0.0
        %341 = vmatpush1.msra.mxu0 0.0
        %342 = vmatprep.subr.mxu0 0.0
        %343 = vmatpush1.msra.mxu0 0.0
        %344 = vmatprep.subr.mxu0 0.0
        %345 = vmatpush1.msra.mxu0 0.0
        %346 = vmatprep.subr.mxu0 0.0
        %347 = vmatpush1.msra.mxu0 0.0
        %348 = vmatprep.subr.mxu0 0.0
        %349 = vmatpush1.msra.mxu0 0.0
        %350 = vmatprep.subr.mxu0 0.0
        %351 = vmatpush1.msra.mxu0 0.0
        %352 = vmatprep.subr.mxu0 0.0
        %353 = vmatpush1.msra.mxu0 0.0
        %354 = vmatprep.subr.mxu0 0.0
        %355 = vmatpush1.msra.mxu0 0.0
        %356 = vmatprep.subr.mxu0 0.0
        %357 = vmatpush1.msra.mxu0 0.0
        %358 = vmatprep.subr.mxu0 0.0
        %359 = vmatpush1.msra.mxu0 0.0
        %360 = vmatprep.subr.mxu0 0.0
        %361 = vmatpush1.msra.mxu0 0.0
        %362 = vmatprep.subr.mxu0 0.0
        %363 = vmatpush1.msra.mxu0 0.0
        %364 = vmatprep.subr.mxu0 0.0
        %365 = vmatpush1.msra.mxu0 0.0
        %366 = vmatprep.subr.mxu0 0.0
        %367 = vmatpush1.msra.mxu0 0.0
        %368 = vmatprep.subr.mxu0 0.0
        %369 = vmatpush1.msra.mxu0 0.0
        %370 = vmatprep.subr.mxu0 0.0
        %371 = vmatpush1.msra.mxu0 0.0
        %372 = vmatprep.subr.mxu0 0.0
        %373 = vmatpush1.msra.mxu0 0.0
        %374 = vmatprep.subr.mxu0 0.0
        %375 = vmatpush1.msra.mxu0 0.0
        %376 = vmatprep.subr.mxu0 0.0
        %377 = vmatpush1.msra.mxu0 0.0
        %378 = vmatprep.subr.mxu0 0.0
        %379 = vmatpush1.msra.mxu0 0.0
        %380 = vmatprep.subr.mxu0 0.0
        %381 = vmatpush1.msra.mxu0 0.0
        %382 = vmatprep.mubr.f32.mxu0 0.0
        %383 = vmatmul.mubr.f32.gmra.mrb[0].mxu0 %v291
        %v384 = vpop.f32.mrb[0].mxu0
        %v385 = vadd.f32 0.0, %v384
        %v386 = vpop.f32.mrb[0].mxu0
        %387 = vmatprep.mubr.f32.mxu0 0.0
        %388 = vmatmul.mubr.f32.gmra.mrb[0].mxu0 %v294
        %v389 = vpop.f32.mrb[0].mxu0
        %v390 = vadd.f32 0.0, %v389
        %v391 = vpop.f32.mrb[0].mxu0
        %392 = vmatprep.mubr.f32.mxu0 0.0
        %393 = vmatmul.mubr.f32.gmra.mrb[0].mxu0 %v297
        %v394 = vpop.f32.mrb[0].mxu0
        %v395 = vadd.f32 0.0, %v394
        %v396 = vpop.f32.mrb[0].mxu0
        %397 = vmatprep.mubr.f32.mxu0 0.0
        %398 = vmatmul.mubr.f32.gmra.mrb[0].mxu0 %v300
        %v399 = vpop.f32.mrb[0].mxu0
        %v400 = vadd.f32 0.0, %v399
        %v401 = vpop.f32.mrb[0].mxu0
        %402 = vmatprep.mubr.f32.mxu0 0.0
        %403 = vmatmul.mubr.f32.gmra.mrb[0].mxu0 %v303
        %v404 = vpop.f32.mrb[0].mxu0
        %v405 = vadd.f32 0.0, %v404
        %v406 = vpop.f32.mrb[0].mxu0
        %407 = vmatprep.mubr.f32.mxu0 0.0
        %408 = vmatmul.mubr.f32.gmra.mrb[0].mxu0 %v306
        %v409 = vpop.f32.mrb[0].mxu0
        %v410 = vadd.f32 0.0, %v409
        %v411 = vpop.f32.mrb[0].mxu0
        %412 = vmatprep.mubr.f32.mxu0 0.0
        %413 = vmatmul.mubr.f32.gmra.mrb[0].mxu0 %v309
        %v414 = vpop.f32.mrb[0].mxu0
        %v415 = vadd.f32 0.0, %v414
        %v416 = vpop.f32.mrb[0].mxu0
        %417 = vmatprep.mubr.f32.mxu0 0.0
        %418 = vmatmul.mubr.f32.gmra.mrb[0].mxu0 %v312
        %v419 = vpop.f32.mrb[0].mxu0
        %v420 = vadd.f32 0.0, %v419
        %v421 = vpop.f32.mrb[0].mxu0
        %422 = vdwg.mxu0
        %v423 = vld [vmem:[%s1] sm:$0xff]
        %v424 = vld [vmem:[%s1 + $0x8] sm:$0xff]
        %v425 = vld [vmem:[%s1 + $0x10] sm:$0xff]
        %v426 = vld [vmem:[%s1 + $0x18] sm:$0xff]
        %v427 = vld [vmem:[%s1 + $0x20] sm:$0xff]
        %v428 = vld [vmem:[%s1 + $0x28] sm:$0xff]
        %v429 = vld [vmem:[%s1 + $0x30] sm:$0xff]
        %v430 = vld [vmem:[%s1 + $0x38] sm:$0xff]
        %s431 = scalar_lea.vmem %s2, 4
        %v432 = vld [vmem:[%s431] sm:$0xf]
        %v434 = vsel %vm314, %v432, 0
        %436 = vmatprep.subr.mxu0 0.0
        %437 = vmatpush1.msra.mxu0 %v434
        %438 = vmatprep.subr.mxu0 0.0
        %439 = vmatpush1.msra.mxu0 0.0
        %440 = vmatprep.subr.mxu0 0.0
        %441 = vmatpush1.msra.mxu0 0.0
        %442 = vmatprep.subr.mxu0 0.0
        %443 = vmatpush1.msra.mxu0 0.0
        %444 = vmatprep.subr.mxu0 0.0
        %445 = vmatpush1.msra.mxu0 0.0
        %446 = vmatprep.subr.mxu0 0.0
        %447 = vmatpush1.msra.mxu0 0.0
        %448 = vmatprep.subr.mxu0 0.0
        %449 = vmatpush1.msra.mxu0 0.0
        %450 = vmatprep.subr.mxu0 0.0
        %451 = vmatpush1.msra.mxu0 0.0
        %452 = vmatprep.subr.mxu0 0.0
        %453 = vmatpush1.msra.mxu0 0.0
        %454 = vmatprep.subr.mxu0 0.0
        %455 = vmatpush1.msra.mxu0 0.0
        %456 = vmatprep.subr.mxu0 0.0
        %457 = vmatpush1.msra.mxu0 0.0
        %458 = vmatprep.subr.mxu0 0.0
        %459 = vmatpush1.msra.mxu0 0.0
        %460 = vmatprep.subr.mxu0 0.0
        %461 = vmatpush1.msra.mxu0 0.0
        %462 = vmatprep.subr.mxu0 0.0
        %463 = vmatpush1.msra.mxu0 0.0
        %464 = vmatprep.subr.mxu0 0.0
        %465 = vmatpush1.msra.mxu0 0.0
        %466 = vmatprep.subr.mxu0 0.0
        %467 = vmatpush1.msra.mxu0 0.0
        %468 = vmatprep.subr.mxu0 0.0
        %469 = vmatpush1.msra.mxu0 0.0
        %470 = vmatprep.subr.mxu0 0.0
        %471 = vmatpush1.msra.mxu0 0.0
        %472 = vmatprep.subr.mxu0 0.0
        %473 = vmatpush1.msra.mxu0 0.0
        %474 = vmatprep.subr.mxu0 0.0
        %475 = vmatpush1.msra.mxu0 0.0
        %476 = vmatprep.subr.mxu0 0.0
        %477 = vmatpush1.msra.mxu0 0.0
        %478 = vmatprep.subr.mxu0 0.0
        %479 = vmatpush1.msra.mxu0 0.0
        %480 = vmatprep.subr.mxu0 0.0
        %481 = vmatpush1.msra.mxu0 0.0
        %482 = vmatprep.subr.mxu0 0.0
        %483 = vmatpush1.msra.mxu0 0.0
        %484 = vmatprep.subr.mxu0 0.0
        %485 = vmatpush1.msra.mxu0 0.0
        %486 = vmatprep.subr.mxu0 0.0
        %487 = vmatpush1.msra.mxu0 0.0
        %488 = vmatprep.subr.mxu0 0.0
        %489 = vmatpush1.msra.mxu0 0.0
        %490 = vmatprep.subr.mxu0 0.0
        %491 = vmatpush1.msra.mxu0 0.0
        %492 = vmatprep.subr.mxu0 0.0
        %493 = vmatpush1.msra.mxu0 0.0
        %494 = vmatprep.subr.mxu0 0.0
        %495 = vmatpush1.msra.mxu0 0.0
        %496 = vmatprep.subr.mxu0 0.0
        %497 = vmatpush1.msra.mxu0 0.0
        %498 = vmatprep.subr.mxu0 0.0
        %499 = vmatpush1.msra.mxu0 0.0
        %500 = vmatprep.mubr.f32.mxu0 0.0
        %501 = vmatmul.mubr.f32.gmra.mrb[0].mxu0 %v291
        %v502 = vpop.f32.mrb[0].mxu0
        %v503 = vadd.f32 0.0, %v502
        %v504 = vpop.f32.mrb[0].mxu0
        %505 = vmatprep.mubr.f32.mxu0 0.0
        %506 = vmatmul.mubr.f32.gmra.mrb[0].mxu0 %v294
        %v507 = vpop.f32.mrb[0].mxu0
        %v508 = vadd.f32 0.0, %v507
        %v509 = vpop.f32.mrb[0].mxu0
        %510 = vmatprep.mubr.f32.mxu0 0.0
        %511 = vmatmul.mubr.f32.gmra.mrb[0].mxu0 %v297
        %v512 = vpop.f32.mrb[0].mxu0
        %v513 = vadd.f32 0.0, %v512
        %v514 = vpop.f32.mrb[0].mxu0
        %515 = vmatprep.mubr.f32.mxu0 0.0
        %516 = vmatmul.mubr.f32.gmra.mrb[0].mxu0 %v300
        %v517 = vpop.f32.mrb[0].mxu0
        %v518 = vadd.f32 0.0, %v517
        %v519 = vpop.f32.mrb[0].mxu0
        %520 = vmatprep.mubr.f32.mxu0 0.0
        %521 = vmatmul.mubr.f32.gmra.mrb[0].mxu0 %v303
        %v522 = vpop.f32.mrb[0].mxu0
        %v523 = vadd.f32 0.0, %v522
        %v524 = vpop.f32.mrb[0].mxu0
        %525 = vmatprep.mubr.f32.mxu0 0.0
        %526 = vmatmul.mubr.f32.gmra.mrb[0].mxu0 %v306
        %v527 = vpop.f32.mrb[0].mxu0
        %v528 = vadd.f32 0.0, %v527
        %v529 = vpop.f32.mrb[0].mxu0
        %530 = vmatprep.mubr.f32.mxu0 0.0
        %531 = vmatmul.mubr.f32.gmra.mrb[0].mxu0 %v309
        %v532 = vpop.f32.mrb[0].mxu0
        %v533 = vadd.f32 0.0, %v532
        %v534 = vpop.f32.mrb[0].mxu0
        %535 = vmatprep.mubr.f32.mxu0 0.0
        %536 = vmatmul.mubr.f32.gmra.mrb[0].mxu0 %v312
        %v537 = vpop.f32.mrb[0].mxu0
        %v538 = vadd.f32 0.0, %v537
        %v539 = vpop.f32.mrb[0].mxu0
        %540 = vdwg.mxu0
        %s541 = scalar_lea.vmem %s1, 64
        %v542 = vld [vmem:[%s541] sm:$0xff]
        %v543 = vld [vmem:[%s541 + $0x8] sm:$0xff]
        %v544 = vld [vmem:[%s541 + $0x10] sm:$0xff]
        %v545 = vld [vmem:[%s541 + $0x18] sm:$0xff]
        %v546 = vld [vmem:[%s541 + $0x20] sm:$0xff]
        %v547 = vld [vmem:[%s541 + $0x28] sm:$0xff]
        %v548 = vld [vmem:[%s541 + $0x30] sm:$0xff]
        %v549 = vld [vmem:[%s541 + $0x38] sm:$0xff]
        %vm550 = vcmask 523264
        %v552 = vsel %vm550, %v542, 0
        %v555 = vsel %vm550, %v543, 0
        %v558 = vsel %vm550, %v544, 0
        %v561 = vsel %vm550, %v545, 0
        %v564 = vsel %vm550, %v546, 0
        %v567 = vsel %vm550, %v547, 0
        %v570 = vsel %vm550, %v548, 0
        %v573 = vsel %vm550, %v549, 0
        %575 = vmatprep.subr.mxu0 0.0
        %576 = vmatpush1.msra.mxu0 %v503
        %577 = vmatprep.subr.mxu0 0.0
        %578 = vmatpush1.msra.mxu0 %v508
        %579 = vmatprep.subr.mxu0 0.0
        %580 = vmatpush1.msra.mxu0 %v513
        %581 = vmatprep.subr.mxu0 0.0
        %582 = vmatpush1.msra.mxu0 %v518
        %583 = vmatprep.subr.mxu0 0.0
        %584 = vmatpush1.msra.mxu0 %v523
        %585 = vmatprep.subr.mxu0 0.0
        %586 = vmatpush1.msra.mxu0 %v528
        %587 = vmatprep.subr.mxu0 0.0
        %588 = vmatpush1.msra.mxu0 %v533
        %589 = vmatprep.subr.mxu0 0.0
        %590 = vmatpush1.msra.mxu0 %v538
        %591 = vmatprep.subr.mxu0 0.0
        %592 = vmatpush1.msra.mxu0 0.0
        %593 = vmatprep.subr.mxu0 0.0
        %594 = vmatpush1.msra.mxu0 0.0
        %595 = vmatprep.subr.mxu0 0.0
        %596 = vmatpush1.msra.mxu0 0.0
        %597 = vmatprep.subr.mxu0 0.0
        %598 = vmatpush1.msra.mxu0 0.0
        %599 = vmatprep.subr.mxu0 0.0
        %600 = vmatpush1.msra.mxu0 0.0
        %601 = vmatprep.subr.mxu0 0.0
        %602 = vmatpush1.msra.mxu0 0.0
        %603 = vmatprep.subr.mxu0 0.0
        %604 = vmatpush1.msra.mxu0 0.0
        %605 = vmatprep.subr.mxu0 0.0
        %606 = vmatpush1.msra.mxu0 0.0
        %607 = vmatprep.subr.mxu0 0.0
        %608 = vmatpush1.msra.mxu0 0.0
        %609 = vmatprep.subr.mxu0 0.0
        %610 = vmatpush1.msra.mxu0 0.0
        %611 = vmatprep.subr.mxu0 0.0
        %612 = vmatpush1.msra.mxu0 0.0
        %613 = vmatprep.subr.mxu0 0.0
        %614 = vmatpush1.msra.mxu0 0.0
        %615 = vmatprep.subr.mxu0 0.0
        %616 = vmatpush1.msra.mxu0 0.0
        %617 = vmatprep.subr.mxu0 0.0
        %618 = vmatpush1.msra.mxu0 0.0
        %619 = vmatprep.subr.mxu0 0.0
        %620 = vmatpush1.msra.mxu0 0.0
        %621 = vmatprep.subr.mxu0 0.0
        %622 = vmatpush1.msra.mxu0 0.0
        %623 = vmatprep.subr.mxu0 0.0
        %624 = vmatpush1.msra.mxu0 0.0
        %625 = vmatprep.subr.mxu0 0.0
        %626 = vmatpush1.msra.mxu0 0.0
        %627 = vmatprep.subr.mxu0 0.0
        %628 = vmatpush1.msra.mxu0 0.0
        %629 = vmatprep.subr.mxu0 0.0
        %630 = vmatpush1.msra.mxu0 0.0
        %631 = vmatprep.subr.mxu0 0.0
        %632 = vmatpush1.msra.mxu0 0.0
        %633 = vmatprep.subr.mxu0 0.0
        %634 = vmatpush1.msra.mxu0 0.0
        %635 = vmatprep.subr.mxu0 0.0
        %636 = vmatpush1.msra.mxu0 0.0
        %637 = vmatprep.subr.mxu0 0.0
        %638 = vmatpush1.msra.mxu0 0.0
        %639 = vmatprep.mubr.f32.mxu0 0.0
        %640 = vmatmul.mubr.f32.gmra.mrb[0].mxu0 %v552
        %v641 = vpop.f32.mrb[0].mxu0
        %v642 = vadd.f32 0.0, %v641
        %v643 = vpop.f32.mrb[0].mxu0
        %644 = vmatprep.mubr.f32.mxu0 0.0
        %645 = vmatmul.mubr.f32.gmra.mrb[0].mxu0 %v555
        %v646 = vpop.f32.mrb[0].mxu0
        %v647 = vadd.f32 0.0, %v646
        %v648 = vpop.f32.mrb[0].mxu0
        %649 = vmatprep.mubr.f32.mxu0 0.0
        %650 = vmatmul.mubr.f32.gmra.mrb[0].mxu0 %v558
        %v651 = vpop.f32.mrb[0].mxu0
        %v652 = vadd.f32 0.0, %v651
        %v653 = vpop.f32.mrb[0].mxu0
        %654 = vmatprep.mubr.f32.mxu0 0.0
        %655 = vmatmul.mubr.f32.gmra.mrb[0].mxu0 %v561
        %v656 = vpop.f32.mrb[0].mxu0
        %v657 = vadd.f32 0.0, %v656
        %v658 = vpop.f32.mrb[0].mxu0
        %659 = vmatprep.mubr.f32.mxu0 0.0
        %660 = vmatmul.mubr.f32.gmra.mrb[0].mxu0 %v564
        %v661 = vpop.f32.mrb[0].mxu0
        %v662 = vadd.f32 0.0, %v661
        %v663 = vpop.f32.mrb[0].mxu0
        %664 = vmatprep.mubr.f32.mxu0 0.0
        %665 = vmatmul.mubr.f32.gmra.mrb[0].mxu0 %v567
        %v666 = vpop.f32.mrb[0].mxu0
        %v667 = vadd.f32 0.0, %v666
        %v668 = vpop.f32.mrb[0].mxu0
        %669 = vmatprep.mubr.f32.mxu0 0.0
        %670 = vmatmul.mubr.f32.gmra.mrb[0].mxu0 %v570
        %v671 = vpop.f32.mrb[0].mxu0
        %v672 = vadd.f32 0.0, %v671
        %v673 = vpop.f32.mrb[0].mxu0
        %674 = vmatprep.mubr.f32.mxu0 0.0
        %675 = vmatmul.mubr.f32.gmra.mrb[0].mxu0 %v573
        %v676 = vpop.f32.mrb[0].mxu0
        %v677 = vadd.f32 0.0, %v676
        %v678 = vpop.f32.mrb[0].mxu0
        %679 = vdwg.mxu0
        %v681 = vsel %vm550, %v423, 0
        %v684 = vsel %vm550, %v424, 0
        %v687 = vsel %vm550, %v425, 0
        %v690 = vsel %vm550, %v426, 0
        %v693 = vsel %vm550, %v427, 0
        %v696 = vsel %vm550, %v428, 0
        %v699 = vsel %vm550, %v429, 0
        %v702 = vsel %vm550, %v430, 0
        %704 = vmatprep.subr.mxu0 0.0
        %705 = vmatpush1.msra.mxu0 %v385
        %706 = vmatprep.subr.mxu0 0.0
        %707 = vmatpush1.msra.mxu0 %v390
        %708 = vmatprep.subr.mxu0 0.0
        %709 = vmatpush1.msra.mxu0 %v395
        %710 = vmatprep.subr.mxu0 0.0
        %711 = vmatpush1.msra.mxu0 %v400
        %712 = vmatprep.subr.mxu0 0.0
        %713 = vmatpush1.msra.mxu0 %v405
        %714 = vmatprep.subr.mxu0 0.0
        %715 = vmatpush1.msra.mxu0 %v410
        %716 = vmatprep.subr.mxu0 0.0
        %717 = vmatpush1.msra.mxu0 %v415
        %718 = vmatprep.subr.mxu0 0.0
        %719 = vmatpush1.msra.mxu0 %v420
        %720 = vmatprep.subr.mxu0 0.0
        %721 = vmatpush1.msra.mxu0 0.0
        %722 = vmatprep.subr.mxu0 0.0
        %723 = vmatpush1.msra.mxu0 0.0
        %724 = vmatprep.subr.mxu0 0.0
        %725 = vmatpush1.msra.mxu0 0.0
        %726 = vmatprep.subr.mxu0 0.0
        %727 = vmatpush1.msra.mxu0 0.0
        %728 = vmatprep.subr.mxu0 0.0
        %729 = vmatpush1.msra.mxu0 0.0
        %730 = vmatprep.subr.mxu0 0.0
        %731 = vmatpush1.msra.mxu0 0.0
        %732 = vmatprep.subr.mxu0 0.0
        %733 = vmatpush1.msra.mxu0 0.0
        %734 = vmatprep.subr.mxu0 0.0
        %735 = vmatpush1.msra.mxu0 0.0
        %736 = vmatprep.subr.mxu0 0.0
        %737 = vmatpush1.msra.mxu0 0.0
        %738 = vmatprep.subr.mxu0 0.0
        %739 = vmatpush1.msra.mxu0 0.0
        %740 = vmatprep.subr.mxu0 0.0
        %741 = vmatpush1.msra.mxu0 0.0
        %742 = vmatprep.subr.mxu0 0.0
        %743 = vmatpush1.msra.mxu0 0.0
        %744 = vmatprep.subr.mxu0 0.0
        %745 = vmatpush1.msra.mxu0 0.0
        %746 = vmatprep.subr.mxu0 0.0
        %747 = vmatpush1.msra.mxu0 0.0
        %748 = vmatprep.subr.mxu0 0.0
        %749 = vmatpush1.msra.mxu0 0.0
        %750 = vmatprep.subr.mxu0 0.0
        %751 = vmatpush1.msra.mxu0 0.0
        %752 = vmatprep.subr.mxu0 0.0
        %753 = vmatpush1.msra.mxu0 0.0
        %754 = vmatprep.subr.mxu0 0.0
        %755 = vmatpush1.msra.mxu0 0.0
        %756 = vmatprep.subr.mxu0 0.0
        %757 = vmatpush1.msra.mxu0 0.0
        %758 = vmatprep.subr.mxu0 0.0
        %759 = vmatpush1.msra.mxu0 0.0
        %760 = vmatprep.subr.mxu0 0.0
        %761 = vmatpush1.msra.mxu0 0.0
        %762 = vmatprep.subr.mxu0 0.0
        %763 = vmatpush1.msra.mxu0 0.0
        %764 = vmatprep.subr.mxu0 0.0
        %765 = vmatpush1.msra.mxu0 0.0
        %766 = vmatprep.subr.mxu0 0.0
        %767 = vmatpush1.msra.mxu0 0.0
        %768 = vmatprep.mubr.f32.mxu0 0.0
        %769 = vmatmul.mubr.f32.gmra.mrb[0].mxu0 %v681
        %v770 = vpop.f32.mrb[0].mxu0
        %v771 = vadd.f32 %v642, %v770
        %v772 = vpop.f32.mrb[0].mxu0
        %773 = vmatprep.mubr.f32.mxu0 0.0
        %774 = vmatmul.mubr.f32.gmra.mrb[0].mxu0 %v684
        %v775 = vpop.f32.mrb[0].mxu0
        %v776 = vadd.f32 %v647, %v775
        %v777 = vpop.f32.mrb[0].mxu0
        %778 = vmatprep.mubr.f32.mxu0 0.0
        %779 = vmatmul.mubr.f32.gmra.mrb[0].mxu0 %v687
        %v780 = vpop.f32.mrb[0].mxu0
        %v781 = vadd.f32 %v652, %v780
        %v782 = vpop.f32.mrb[0].mxu0
        %783 = vmatprep.mubr.f32.mxu0 0.0
        %784 = vmatmul.mubr.f32.gmra.mrb[0].mxu0 %v690
        %v785 = vpop.f32.mrb[0].mxu0
        %v786 = vadd.f32 %v657, %v785
        %v787 = vpop.f32.mrb[0].mxu0
        %788 = vmatprep.mubr.f32.mxu0 0.0
        %789 = vmatmul.mubr.f32.gmra.mrb[0].mxu0 %v693
        %v790 = vpop.f32.mrb[0].mxu0
        %v791 = vadd.f32 %v662, %v790
        %v792 = vpop.f32.mrb[0].mxu0
        %793 = vmatprep.mubr.f32.mxu0 0.0
        %794 = vmatmul.mubr.f32.gmra.mrb[0].mxu0 %v696
        %v795 = vpop.f32.mrb[0].mxu0
        %v796 = vadd.f32 %v667, %v795
        %v797 = vpop.f32.mrb[0].mxu0
        %798 = vmatprep.mubr.f32.mxu0 0.0
        %799 = vmatmul.mubr.f32.gmra.mrb[0].mxu0 %v699
        %v800 = vpop.f32.mrb[0].mxu0
        %v801 = vadd.f32 %v672, %v800
        %v802 = vpop.f32.mrb[0].mxu0
        %803 = vmatprep.mubr.f32.mxu0 0.0
        %804 = vmatmul.mubr.f32.gmra.mrb[0].mxu0 %v702
        %v805 = vpop.f32.mrb[0].mxu0
        %v806 = vadd.f32 %v677, %v805
        %v807 = vpop.f32.mrb[0].mxu0
        %808 = vdwg.mxu0
        %s809 = scalar_lea.vmem %s2, 8
        %v810 = vld [vmem:[%s809] sm:$0xf]
        %v812 = vsel %vm314, %v810, 0
        %814 = vmatprep.subr.mxu0 0.0
        %815 = vmatpush1.msra.mxu0 %v812
        %816 = vmatprep.subr.mxu0 0.0
        %817 = vmatpush1.msra.mxu0 0.0
        %818 = vmatprep.subr.mxu0 0.0
        %819 = vmatpush1.msra.mxu0 0.0
        %820 = vmatprep.subr.mxu0 0.0
        %821 = vmatpush1.msra.mxu0 0.0
        %822 = vmatprep.subr.mxu0 0.0
        %823 = vmatpush1.msra.mxu0 0.0
        %824 = vmatprep.subr.mxu0 0.0
        %825 = vmatpush1.msra.mxu0 0.0
        %826 = vmatprep.subr.mxu0 0.0
        %827 = vmatpush1.msra.mxu0 0.0
        %828 = vmatprep.subr.mxu0 0.0
        %829 = vmatpush1.msra.mxu0 0.0
        %830 = vmatprep.subr.mxu0 0.0
        %831 = vmatpush1.msra.mxu0 0.0
        %832 = vmatprep.subr.mxu0 0.0
        %833 = vmatpush1.msra.mxu0 0.0
        %834 = vmatprep.subr.mxu0 0.0
        %835 = vmatpush1.msra.mxu0 0.0
        %836 = vmatprep.subr.mxu0 0.0
        %837 = vmatpush1.msra.mxu0 0.0
        %838 = vmatprep.subr.mxu0 0.0
        %839 = vmatpush1.msra.mxu0 0.0
        %840 = vmatprep.subr.mxu0 0.0
        %841 = vmatpush1.msra.mxu0 0.0
        %842 = vmatprep.subr.mxu0 0.0
        %843 = vmatpush1.msra.mxu0 0.0
        %844 = vmatprep.subr.mxu0 0.0
        %845 = vmatpush1.msra.mxu0 0.0
        %846 = vmatprep.subr.mxu0 0.0
        %847 = vmatpush1.msra.mxu0 0.0
        %848 = vmatprep.subr.mxu0 0.0
        %849 = vmatpush1.msra.mxu0 0.0
        %850 = vmatprep.subr.mxu0 0.0
        %851 = vmatpush1.msra.mxu0 0.0
        %852 = vmatprep.subr.mxu0 0.0
        %853 = vmatpush1.msra.mxu0 0.0
        %854 = vmatprep.subr.mxu0 0.0
        %855 = vmatpush1.msra.mxu0 0.0
        %856 = vmatprep.subr.mxu0 0.0
        %857 = vmatpush1.msra.mxu0 0.0
        %858 = vmatprep.subr.mxu0 0.0
        %859 = vmatpush1.msra.mxu0 0.0
        %860 = vmatprep.subr.mxu0 0.0
        %861 = vmatpush1.msra.mxu0 0.0
        %862 = vmatprep.subr.mxu0 0.0
        %863 = vmatpush1.msra.mxu0 0.0
        %864 = vmatprep.subr.mxu0 0.0
        %865 = vmatpush1.msra.mxu0 0.0
        %866 = vmatprep.subr.mxu0 0.0
        %867 = vmatpush1.msra.mxu0 0.0
        %868 = vmatprep.subr.mxu0 0.0
        %869 = vmatpush1.msra.mxu0 0.0
        %870 = vmatprep.subr.mxu0 0.0
        %871 = vmatpush1.msra.mxu0 0.0
        %872 = vmatprep.subr.mxu0 0.0
        %873 = vmatpush1.msra.mxu0 0.0
        %874 = vmatprep.subr.mxu0 0.0
        %875 = vmatpush1.msra.mxu0 0.0
        %876 = vmatprep.subr.mxu0 0.0
        %877 = vmatpush1.msra.mxu0 0.0
        %878 = vmatprep.mubr.f32.mxu0 0.0
        %879 = vmatmul.mubr.f32.gmra.mrb[0].mxu0 %v291
        %v880 = vpop.f32.mrb[0].mxu0
        %v881 = vadd.f32 0.0, %v880
        %v882 = vpop.f32.mrb[0].mxu0
        %883 = vmatprep.mubr.f32.mxu0 0.0
        %884 = vmatmul.mubr.f32.gmra.mrb[0].mxu0 %v294
        %v885 = vpop.f32.mrb[0].mxu0
        %v886 = vadd.f32 0.0, %v885
        %v887 = vpop.f32.mrb[0].mxu0
        %888 = vmatprep.mubr.f32.mxu0 0.0
        %889 = vmatmul.mubr.f32.gmra.mrb[0].mxu0 %v297
        %v890 = vpop.f32.mrb[0].mxu0
        %v891 = vadd.f32 0.0, %v890
        %v892 = vpop.f32.mrb[0].mxu0
        %893 = vmatprep.mubr.f32.mxu0 0.0
        %894 = vmatmul.mubr.f32.gmra.mrb[0].mxu0 %v300
        %v895 = vpop.f32.mrb[0].mxu0
        %v896 = vadd.f32 0.0, %v895
        %v897 = vpop.f32.mrb[0].mxu0
        %898 = vmatprep.mubr.f32.mxu0 0.0
        %899 = vmatmul.mubr.f32.gmra.mrb[0].mxu0 %v303
        %v900 = vpop.f32.mrb[0].mxu0
        %v901 = vadd.f32 0.0, %v900
        %v902 = vpop.f32.mrb[0].mxu0
        %903 = vmatprep.mubr.f32.mxu0 0.0
        %904 = vmatmul.mubr.f32.gmra.mrb[0].mxu0 %v306
        %v905 = vpop.f32.mrb[0].mxu0
        %v906 = vadd.f32 0.0, %v905
        %v907 = vpop.f32.mrb[0].mxu0
        %908 = vmatprep.mubr.f32.mxu0 0.0
        %909 = vmatmul.mubr.f32.gmra.mrb[0].mxu0 %v309
        %v910 = vpop.f32.mrb[0].mxu0
        %v911 = vadd.f32 0.0, %v910
        %v912 = vpop.f32.mrb[0].mxu0
        %913 = vmatprep.mubr.f32.mxu0 0.0
        %914 = vmatmul.mubr.f32.gmra.mrb[0].mxu0 %v312
        %v915 = vpop.f32.mrb[0].mxu0
        %v916 = vadd.f32 0.0, %v915
        %v917 = vpop.f32.mrb[0].mxu0
        %918 = vdwg.mxu0
        %s919 = scalar_lea.vmem %s1, 128
        %v920 = vld [vmem:[%s919] sm:$0xff]
        %v921 = vld [vmem:[%s919 + $0x8] sm:$0xff]
        %v922 = vld [vmem:[%s919 + $0x10] sm:$0xff]
        %v923 = vld [vmem:[%s919 + $0x18] sm:$0xff]
        %v924 = vld [vmem:[%s919 + $0x20] sm:$0xff]
        %v925 = vld [vmem:[%s919 + $0x28] sm:$0xff]
        %v926 = vld [vmem:[%s919 + $0x30] sm:$0xff]
        %v927 = vld [vmem:[%s919 + $0x38] sm:$0xff]
        %v929 = vsel %vm550, %v920, 0
        %v932 = vsel %vm550, %v921, 0
        %v935 = vsel %vm550, %v922, 0
        %v938 = vsel %vm550, %v923, 0
        %v941 = vsel %vm550, %v924, 0
        %v944 = vsel %vm550, %v925, 0
        %v947 = vsel %vm550, %v926, 0
        %v950 = vsel %vm550, %v927, 0
        %952 = vmatprep.subr.mxu0 0.0
        %953 = vmatpush1.msra.mxu0 %v881
        %954 = vmatprep.subr.mxu0 0.0
        %955 = vmatpush1.msra.mxu0 %v886
        %956 = vmatprep.subr.mxu0 0.0
        %957 = vmatpush1.msra.mxu0 %v891
        %958 = vmatprep.subr.mxu0 0.0
        %959 = vmatpush1.msra.mxu0 %v896
        %960 = vmatprep.subr.mxu0 0.0
        %961 = vmatpush1.msra.mxu0 %v901
        %962 = vmatprep.subr.mxu0 0.0
        %963 = vmatpush1.msra.mxu0 %v906
        %964 = vmatprep.subr.mxu0 0.0
        %965 = vmatpush1.msra.mxu0 %v911
        %966 = vmatprep.subr.mxu0 0.0
        %967 = vmatpush1.msra.mxu0 %v916
        %968 = vmatprep.subr.mxu0 0.0
        %969 = vmatpush1.msra.mxu0 0.0
        %970 = vmatprep.subr.mxu0 0.0
        %971 = vmatpush1.msra.mxu0 0.0
        %972 = vmatprep.subr.mxu0 0.0
        %973 = vmatpush1.msra.mxu0 0.0
        %974 = vmatprep.subr.mxu0 0.0
        %975 = vmatpush1.msra.mxu0 0.0
        %976 = vmatprep.subr.mxu0 0.0
        %977 = vmatpush1.msra.mxu0 0.0
        %978 = vmatprep.subr.mxu0 0.0
        %979 = vmatpush1.msra.mxu0 0.0
        %980 = vmatprep.subr.mxu0 0.0
        %981 = vmatpush1.msra.mxu0 0.0
        %982 = vmatprep.subr.mxu0 0.0
        %983 = vmatpush1.msra.mxu0 0.0
        %984 = vmatprep.subr.mxu0 0.0
        %985 = vmatpush1.msra.mxu0 0.0
        %986 = vmatprep.subr.mxu0 0.0
        %987 = vmatpush1.msra.mxu0 0.0
        %988 = vmatprep.subr.mxu0 0.0
        %989 = vmatpush1.msra.mxu0 0.0
        %990 = vmatprep.subr.mxu0 0.0
        %991 = vmatpush1.msra.mxu0 0.0
        %992 = vmatprep.subr.mxu0 0.0
        %993 = vmatpush1.msra.mxu0 0.0
        %994 = vmatprep.subr.mxu0 0.0
        %995 = vmatpush1.msra.mxu0 0.0
        %996 = vmatprep.subr.mxu0 0.0
        %997 = vmatpush1.msra.mxu0 0.0
        %998 = vmatprep.subr.mxu0 0.0
        %999 = vmatpush1.msra.mxu0 0.0
        %1000 = vmatprep.subr.mxu0 0.0
        %1001 = vmatpush1.msra.mxu0 0.0
        %1002 = vmatprep.subr.mxu0 0.0
        %1003 = vmatpush1.msra.mxu0 0.0
        %1004 = vmatprep.subr.mxu0 0.0
        %1005 = vmatpush1.msra.mxu0 0.0
        %1006 = vmatprep.subr.mxu0 0.0
        %1007 = vmatpush1.msra.mxu0 0.0
        %1008 = vmatprep.subr.mxu0 0.0
        %1009 = vmatpush1.msra.mxu0 0.0
        %1010 = vmatprep.subr.mxu0 0.0
        %1011 = vmatpush1.msra.mxu0 0.0
        %1012 = vmatprep.subr.mxu0 0.0
        %1013 = vmatpush1.msra.mxu0 0.0
        %1014 = vmatprep.subr.mxu0 0.0
        %1015 = vmatpush1.msra.mxu0 0.0
        %1016 = vmatprep.mubr.f32.mxu0 0.0
        %1017 = vmatmul.mubr.f32.gmra.mrb[0].mxu0 %v929
        %v1018 = vpop.f32.mrb[0].mxu0
        %v1019 = vadd.f32 0.0, %v1018
        %v1020 = vpop.f32.mrb[0].mxu0
        %1021 = vmatprep.mubr.f32.mxu0 0.0
        %1022 = vmatmul.mubr.f32.gmra.mrb[0].mxu0 %v932
        %v1023 = vpop.f32.mrb[0].mxu0
        %v1024 = vadd.f32 0.0, %v1023
        %v1025 = vpop.f32.mrb[0].mxu0
        %1026 = vmatprep.mubr.f32.mxu0 0.0
        %1027 = vmatmul.mubr.f32.gmra.mrb[0].mxu0 %v935
        %v1028 = vpop.f32.mrb[0].mxu0
        %v1029 = vadd.f32 0.0, %v1028
        %v1030 = vpop.f32.mrb[0].mxu0
        %1031 = vmatprep.mubr.f32.mxu0 0.0
        %1032 = vmatmul.mubr.f32.gmra.mrb[0].mxu0 %v938
        %v1033 = vpop.f32.mrb[0].mxu0
        %v1034 = vadd.f32 0.0, %v1033
        %v1035 = vpop.f32.mrb[0].mxu0
        %1036 = vmatprep.mubr.f32.mxu0 0.0
        %1037 = vmatmul.mubr.f32.gmra.mrb[0].mxu0 %v941
        %v1038 = vpop.f32.mrb[0].mxu0
        %v1039 = vadd.f32 0.0, %v1038
        %v1040 = vpop.f32.mrb[0].mxu0
        %1041 = vmatprep.mubr.f32.mxu0 0.0
        %1042 = vmatmul.mubr.f32.gmra.mrb[0].mxu0 %v944
        %v1043 = vpop.f32.mrb[0].mxu0
        %v1044 = vadd.f32 0.0, %v1043
        %v1045 = vpop.f32.mrb[0].mxu0
        %1046 = vmatprep.mubr.f32.mxu0 0.0
        %1047 = vmatmul.mubr.f32.gmra.mrb[0].mxu0 %v947
        %v1048 = vpop.f32.mrb[0].mxu0
        %v1049 = vadd.f32 0.0, %v1048
        %v1050 = vpop.f32.mrb[0].mxu0
        %1051 = vmatprep.mubr.f32.mxu0 0.0
        %1052 = vmatmul.mubr.f32.gmra.mrb[0].mxu0 %v950
        %v1053 = vpop.f32.mrb[0].mxu0
        %v1054 = vadd.f32 0.0, %v1053
        %v1055 = vpop.f32.mrb[0].mxu0
        %1056 = vdwg.mxu0
        %v1057 = vadd.f32 %v771, %v1019
        %v1058 = vadd.f32 %v776, %v1024
        %v1059 = vadd.f32 %v781, %v1029
        %v1060 = vadd.f32 %v786, %v1034
        %v1061 = vadd.f32 %v791, %v1039
        %v1062 = vadd.f32 %v796, %v1044
        %v1063 = vadd.f32 %v801, %v1049
        %v1064 = vadd.f32 %v806, %v1054
        %v1065 = vmax.f32 %v1057, 0.0
        %v1066 = vmax.f32 %v1058, 0.0
        %v1067 = vmax.f32 %v1059, 0.0
        %v1068 = vmax.f32 %v1060, 0.0
        %v1069 = vmax.f32 %v1061, 0.0
        %v1070 = vmax.f32 %v1062, 0.0
        %v1071 = vmax.f32 %v1063, 0.0
        %v1072 = vmax.f32 %v1064, 0.0
        %vm1073 = vcmask 130048
        %1074 = vst.msk [vmem:[#allocation2] sm:$0xff] %vm1073, 0.0
        %1075 = vst.msk [vmem:[#allocation2 + $0x48] sm:$0xff] %vm1073, 0.0
        %1076 = vst.msk [vmem:[#allocation2 + $0x8] sm:$0xff] %vm1073, %v1065
        %1077 = vst.msk [vmem:[#allocation2 + $0x10] sm:$0xff] %vm1073, %v1066
        %1078 = vst.msk [vmem:[#allocation2 + $0x18] sm:$0xff] %vm1073, %v1067
        %1079 = vst.msk [vmem:[#allocation2 + $0x20] sm:$0xff] %vm1073, %v1068
        %1080 = vst.msk [vmem:[#allocation2 + $0x28] sm:$0xff] %vm1073, %v1069
        %1081 = vst.msk [vmem:[#allocation2 + $0x30] sm:$0xff] %vm1073, %v1070
        %1082 = vst.msk [vmem:[#allocation2 + $0x38] sm:$0xff] %vm1073, %v1071
        %1083 = vst.msk [vmem:[#allocation2 + $0x40] sm:$0xff] %vm1073, %v1072
        %v1084 = vld [vmem:[#allocation5] sm:$0xf]
        %v1085 = vld [vmem:[#allocation2] sm:$0xff]
        %v1086 = vld [vmem:[#allocation2 + $0x8] sm:$0xff]
        %v1087 = vld [vmem:[#allocation2 + $0x10] sm:$0xff]
        %v1088 = vld [vmem:[#allocation2 + $0x18] sm:$0xff]
        %v1089 = vld [vmem:[#allocation2 + $0x20] sm:$0xff]
        %v1090 = vld [vmem:[#allocation2 + $0x28] sm:$0xff]
        %v1091 = vld [vmem:[#allocation2 + $0x30] sm:$0xff]
        %v1092 = vld [vmem:[#allocation2 + $0x38] sm:$0xff]
        %v1093 = vld [vmem:[#allocation3] sm:$0xff]
        %v1094 = vld [vmem:[#allocation3 + $0x8] sm:$0xff]
        %v1095 = vld [vmem:[#allocation2 + $0x40] sm:$0xff]
        %s1096 = scalar_lea.vmem [#allocation3], 16
        %v1097 = vld [vmem:[%s1096] sm:$0xff]
        %v1098 = vld [vmem:[%s1096 + $0x8] sm:$0xff]
        %v1100 = vsel %vm1073, %v1086, 0
        %v1103 = vsel %vm1073, %v1087, 0
        %v1106 = vsel %vm1073, %v1088, 0
        %v1109 = vsel %vm1073, %v1089, 0
        %v1112 = vsel %vm1073, %v1090, 0
        %v1115 = vsel %vm1073, %v1091, 0
        %v1118 = vsel %vm1073, %v1092, 0
        %v1121 = vsel %vm1073, %v1095, 0
        %1123 = vmatprep.subr.mxu0 0.0
        %1124 = vmatpush1.msra.mxu0 %v1097
        %1125 = vmatprep.subr.mxu0 0.0
        %1126 = vmatpush1.msra.mxu0 %v1098
        %1127 = vmatprep.subr.mxu0 0.0
        %1128 = vmatpush1.msra.mxu0 0.0
        %1129 = vmatprep.subr.mxu0 0.0
        %1130 = vmatpush1.msra.mxu0 0.0
        %1131 = vmatprep.subr.mxu0 0.0
        %1132 = vmatpush1.msra.mxu0 0.0
        %1133 = vmatprep.subr.mxu0 0.0
        %1134 = vmatpush1.msra.mxu0 0.0
        %1135 = vmatprep.subr.mxu0 0.0
        %1136 = vmatpush1.msra.mxu0 0.0
        %1137 = vmatprep.subr.mxu0 0.0
        %1138 = vmatpush1.msra.mxu0 0.0
        %1139 = vmatprep.subr.mxu0 0.0
        %1140 = vmatpush1.msra.mxu0 0.0
        %1141 = vmatprep.subr.mxu0 0.0
        %1142 = vmatpush1.msra.mxu0 0.0
        %1143 = vmatprep.subr.mxu0 0.0
        %1144 = vmatpush1.msra.mxu0 0.0
        %1145 = vmatprep.subr.mxu0 0.0
        %1146 = vmatpush1.msra.mxu0 0.0
        %1147 = vmatprep.subr.mxu0 0.0
        %1148 = vmatpush1.msra.mxu0 0.0
        %1149 = vmatprep.subr.mxu0 0.0
        %1150 = vmatpush1.msra.mxu0 0.0
        %1151 = vmatprep.subr.mxu0 0.0
        %1152 = vmatpush1.msra.mxu0 0.0
        %1153 = vmatprep.subr.mxu0 0.0
        %1154 = vmatpush1.msra.mxu0 0.0
        %1155 = vmatprep.subr.mxu0 0.0
        %1156 = vmatpush1.msra.mxu0 0.0
        %1157 = vmatprep.subr.mxu0 0.0
        %1158 = vmatpush1.msra.mxu0 0.0
        %1159 = vmatprep.subr.mxu0 0.0
        %1160 = vmatpush1.msra.mxu0 0.0
        %1161 = vmatprep.subr.mxu0 0.0
        %1162 = vmatpush1.msra.mxu0 0.0
        %1163 = vmatprep.subr.mxu0 0.0
        %1164 = vmatpush1.msra.mxu0 0.0
        %1165 = vmatprep.subr.mxu0 0.0
        %1166 = vmatpush1.msra.mxu0 0.0
        %1167 = vmatprep.subr.mxu0 0.0
        %1168 = vmatpush1.msra.mxu0 0.0
        %1169 = vmatprep.subr.mxu0 0.0
        %1170 = vmatpush1.msra.mxu0 0.0
        %1171 = vmatprep.subr.mxu0 0.0
        %1172 = vmatpush1.msra.mxu0 0.0
        %1173 = vmatprep.subr.mxu0 0.0
        %1174 = vmatpush1.msra.mxu0 0.0
        %1175 = vmatprep.subr.mxu0 0.0
        %1176 = vmatpush1.msra.mxu0 0.0
        %1177 = vmatprep.subr.mxu0 0.0
        %1178 = vmatpush1.msra.mxu0 0.0
        %1179 = vmatprep.subr.mxu0 0.0
        %1180 = vmatpush1.msra.mxu0 0.0
        %1181 = vmatprep.subr.mxu0 0.0
        %1182 = vmatpush1.msra.mxu0 0.0
        %1183 = vmatprep.subr.mxu0 0.0
        %1184 = vmatpush1.msra.mxu0 0.0
        %1185 = vmatprep.subr.mxu0 0.0
        %1186 = vmatpush1.msra.mxu0 0.0
        %1187 = vmatprep.mubr.f32.mxu0 0.0
        %1188 = vmatmul.mubr.f32.gmra.mrb[0].mxu0 %v1100
        %v1189 = vpop.f32.mrb[0].mxu0
        %v1190 = vadd.f32 0.0, %v1189
        %v1191 = vpop.f32.mrb[0].mxu0
        %1192 = vmatprep.mubr.f32.mxu0 0.0
        %1193 = vmatmul.mubr.f32.gmra.mrb[0].mxu0 %v1103
        %v1194 = vpop.f32.mrb[0].mxu0
        %v1195 = vadd.f32 0.0, %v1194
        %v1196 = vpop.f32.mrb[0].mxu0
        %1197 = vmatprep.mubr.f32.mxu0 0.0
        %1198 = vmatmul.mubr.f32.gmra.mrb[0].mxu0 %v1106
        %v1199 = vpop.f32.mrb[0].mxu0
        %v1200 = vadd.f32 0.0, %v1199
        %v1201 = vpop.f32.mrb[0].mxu0
        %1202 = vmatprep.mubr.f32.mxu0 0.0
        %1203 = vmatmul.mubr.f32.gmra.mrb[0].mxu0 %v1109
        %v1204 = vpop.f32.mrb[0].mxu0
        %v1205 = vadd.f32 0.0, %v1204
        %v1206 = vpop.f32.mrb[0].mxu0
        %1207 = vmatprep.mubr.f32.mxu0 0.0
        %1208 = vmatmul.mubr.f32.gmra.mrb[0].mxu0 %v1112
        %v1209 = vpop.f32.mrb[0].mxu0
        %v1210 = vadd.f32 0.0, %v1209
        %v1211 = vpop.f32.mrb[0].mxu0
        %1212 = vmatprep.mubr.f32.mxu0 0.0
        %1213 = vmatmul.mubr.f32.gmra.mrb[0].mxu0 %v1115
        %v1214 = vpop.f32.mrb[0].mxu0
        %v1215 = vadd.f32 0.0, %v1214
        %v1216 = vpop.f32.mrb[0].mxu0
        %1217 = vmatprep.mubr.f32.mxu0 0.0
        %1218 = vmatmul.mubr.f32.gmra.mrb[0].mxu0 %v1118
        %v1219 = vpop.f32.mrb[0].mxu0
        %v1220 = vadd.f32 0.0, %v1219
        %v1221 = vpop.f32.mrb[0].mxu0
        %1222 = vmatprep.mubr.f32.mxu0 0.0
        %1223 = vmatmul.mubr.f32.gmra.mrb[0].mxu0 %v1121
        %v1224 = vpop.f32.mrb[0].mxu0
        %v1225 = vadd.f32 0.0, %v1224
        %v1226 = vpop.f32.mrb[0].mxu0
        %1227 = vdwg.mxu0
        %v1229 = vsel %vm1073, %v1085, 0
        %1231 = vmatprep.subr.mxu0 0.0
        %1232 = vmatpush1.msra.mxu0 %v1093
        %1233 = vmatprep.subr.mxu0 0.0
        %1234 = vmatpush1.msra.mxu0 %v1094
        %1235 = vmatprep.subr.mxu0 0.0
        %1236 = vmatpush1.msra.mxu0 0.0
        %1237 = vmatprep.subr.mxu0 0.0
        %1238 = vmatpush1.msra.mxu0 0.0
        %1239 = vmatprep.subr.mxu0 0.0
        %1240 = vmatpush1.msra.mxu0 0.0
        %1241 = vmatprep.subr.mxu0 0.0
        %1242 = vmatpush1.msra.mxu0 0.0
        %1243 = vmatprep.subr.mxu0 0.0
        %1244 = vmatpush1.msra.mxu0 0.0
        %1245 = vmatprep.subr.mxu0 0.0
        %1246 = vmatpush1.msra.mxu0 0.0
        %1247 = vmatprep.subr.mxu0 0.0
        %1248 = vmatpush1.msra.mxu0 0.0
        %1249 = vmatprep.subr.mxu0 0.0
        %1250 = vmatpush1.msra.mxu0 0.0
        %1251 = vmatprep.subr.mxu0 0.0
        %1252 = vmatpush1.msra.mxu0 0.0
        %1253 = vmatprep.subr.mxu0 0.0
        %1254 = vmatpush1.msra.mxu0 0.0
        %1255 = vmatprep.subr.mxu0 0.0
        %1256 = vmatpush1.msra.mxu0 0.0
        %1257 = vmatprep.subr.mxu0 0.0
        %1258 = vmatpush1.msra.mxu0 0.0
        %1259 = vmatprep.subr.mxu0 0.0
        %1260 = vmatpush1.msra.mxu0 0.0
        %1261 = vmatprep.subr.mxu0 0.0
        %1262 = vmatpush1.msra.mxu0 0.0
        %1263 = vmatprep.subr.mxu0 0.0
        %1264 = vmatpush1.msra.mxu0 0.0
        %1265 = vmatprep.subr.mxu0 0.0
        %1266 = vmatpush1.msra.mxu0 0.0
        %1267 = vmatprep.subr.mxu0 0.0
        %1268 = vmatpush1.msra.mxu0 0.0
        %1269 = vmatprep.subr.mxu0 0.0
        %1270 = vmatpush1.msra.mxu0 0.0
        %1271 = vmatprep.subr.mxu0 0.0
        %1272 = vmatpush1.msra.mxu0 0.0
        %1273 = vmatprep.subr.mxu0 0.0
        %1274 = vmatpush1.msra.mxu0 0.0
        %1275 = vmatprep.subr.mxu0 0.0
        %1276 = vmatpush1.msra.mxu0 0.0
        %1277 = vmatprep.subr.mxu0 0.0
        %1278 = vmatpush1.msra.mxu0 0.0
        %1279 = vmatprep.subr.mxu0 0.0
        %1280 = vmatpush1.msra.mxu0 0.0
        %1281 = vmatprep.subr.mxu0 0.0
        %1282 = vmatpush1.msra.mxu0 0.0
        %1283 = vmatprep.subr.mxu0 0.0
        %1284 = vmatpush1.msra.mxu0 0.0
        %1285 = vmatprep.subr.mxu0 0.0
        %1286 = vmatpush1.msra.mxu0 0.0
        %1287 = vmatprep.subr.mxu0 0.0
        %1288 = vmatpush1.msra.mxu0 0.0
        %1289 = vmatprep.subr.mxu0 0.0
        %1290 = vmatpush1.msra.mxu0 0.0
        %1291 = vmatprep.subr.mxu0 0.0
        %1292 = vmatpush1.msra.mxu0 0.0
        %1293 = vmatprep.subr.mxu0 0.0
        %1294 = vmatpush1.msra.mxu0 0.0
        %1295 = vmatprep.mubr.f32.mxu0 0.0
        %1296 = vmatmul.mubr.f32.gmra.mrb[0].mxu0 %v1229
        %v1297 = vpop.f32.mrb[0].mxu0
        %v1298 = vadd.f32 %v1190, %v1297
        %v1299 = vpop.f32.mrb[0].mxu0
        %1300 = vmatprep.mubr.f32.mxu0 0.0
        %1301 = vmatmul.mubr.f32.gmra.mrb[0].mxu0 %v1100
        %v1302 = vpop.f32.mrb[0].mxu0
        %v1303 = vadd.f32 %v1195, %v1302
        %v1304 = vpop.f32.mrb[0].mxu0
        %1305 = vmatprep.mubr.f32.mxu0 0.0
        %1306 = vmatmul.mubr.f32.gmra.mrb[0].mxu0 %v1103
        %v1307 = vpop.f32.mrb[0].mxu0
        %v1308 = vadd.f32 %v1200, %v1307
        %v1309 = vpop.f32.mrb[0].mxu0
        %1310 = vmatprep.mubr.f32.mxu0 0.0
        %1311 = vmatmul.mubr.f32.gmra.mrb[0].mxu0 %v1106
        %v1312 = vpop.f32.mrb[0].mxu0
        %v1313 = vadd.f32 %v1205, %v1312
        %v1314 = vpop.f32.mrb[0].mxu0
        %1315 = vmatprep.mubr.f32.mxu0 0.0
        %1316 = vmatmul.mubr.f32.gmra.mrb[0].mxu0 %v1109
        %v1317 = vpop.f32.mrb[0].mxu0
        %v1318 = vadd.f32 %v1210, %v1317
        %v1319 = vpop.f32.mrb[0].mxu0
        %1320 = vmatprep.mubr.f32.mxu0 0.0
        %1321 = vmatmul.mubr.f32.gmra.mrb[0].mxu0 %v1112
        %v1322 = vpop.f32.mrb[0].mxu0
        %v1323 = vadd.f32 %v1215, %v1322
        %v1324 = vpop.f32.mrb[0].mxu0
        %1325 = vmatprep.mubr.f32.mxu0 0.0
        %1326 = vmatmul.mubr.f32.gmra.mrb[0].mxu0 %v1115
        %v1327 = vpop.f32.mrb[0].mxu0
        %v1328 = vadd.f32 %v1220, %v1327
        %v1329 = vpop.f32.mrb[0].mxu0
        %1330 = vmatprep.mubr.f32.mxu0 0.0
        %1331 = vmatmul.mubr.f32.gmra.mrb[0].mxu0 %v1118
        %v1332 = vpop.f32.mrb[0].mxu0
        %v1333 = vadd.f32 %v1225, %v1332
        %v1334 = vpop.f32.mrb[0].mxu0
        %1335 = vdwg.mxu0
        %v1336 = vld [vmem:[#allocation2 + $0x10] sm:$0xff]
        %v1337 = vld [vmem:[#allocation2 + $0x18] sm:$0xff]
        %v1338 = vld [vmem:[#allocation2 + $0x20] sm:$0xff]
        %v1339 = vld [vmem:[#allocation2 + $0x28] sm:$0xff]
        %v1340 = vld [vmem:[#allocation2 + $0x30] sm:$0xff]
        %v1341 = vld [vmem:[#allocation2 + $0x38] sm:$0xff]
        %v1342 = vld [vmem:[#allocation2 + $0x40] sm:$0xff]
        %v1343 = vld [vmem:[#allocation2 + $0x48] sm:$0xff]
        %s1344 = scalar_lea.vmem [#allocation3], 32
        %v1345 = vld [vmem:[%s1344] sm:$0xff]
        %v1346 = vld [vmem:[%s1344 + $0x8] sm:$0xff]
        %v1348 = vsel %vm1073, %v1336, 0
        %v1351 = vsel %vm1073, %v1337, 0
        %v1354 = vsel %vm1073, %v1338, 0
        %v1357 = vsel %vm1073, %v1339, 0
        %v1360 = vsel %vm1073, %v1340, 0
        %v1363 = vsel %vm1073, %v1341, 0
        %v1366 = vsel %vm1073, %v1342, 0
        %v1369 = vsel %vm1073, %v1343, 0
        %1371 = vmatprep.subr.mxu0 0.0
        %1372 = vmatpush1.msra.mxu0 %v1345
        %1373 = vmatprep.subr.mxu0 0.0
        %1374 = vmatpush1.msra.mxu0 %v1346
        %1375 = vmatprep.subr.mxu0 0.0
        %1376 = vmatpush1.msra.mxu0 0.0
        %1377 = vmatprep.subr.mxu0 0.0
        %1378 = vmatpush1.msra.mxu0 0.0
        %1379 = vmatprep.subr.mxu0 0.0
        %1380 = vmatpush1.msra.mxu0 0.0
        %1381 = vmatprep.subr.mxu0 0.0
        %1382 = vmatpush1.msra.mxu0 0.0
        %1383 = vmatprep.subr.mxu0 0.0
        %1384 = vmatpush1.msra.mxu0 0.0
        %1385 = vmatprep.subr.mxu0 0.0
        %1386 = vmatpush1.msra.mxu0 0.0
        %1387 = vmatprep.subr.mxu0 0.0
        %1388 = vmatpush1.msra.mxu0 0.0
        %1389 = vmatprep.subr.mxu0 0.0
        %1390 = vmatpush1.msra.mxu0 0.0
        %1391 = vmatprep.subr.mxu0 0.0
        %1392 = vmatpush1.msra.mxu0 0.0
        %1393 = vmatprep.subr.mxu0 0.0
        %1394 = vmatpush1.msra.mxu0 0.0
        %1395 = vmatprep.subr.mxu0 0.0
        %1396 = vmatpush1.msra.mxu0 0.0
        %1397 = vmatprep.subr.mxu0 0.0
        %1398 = vmatpush1.msra.mxu0 0.0
        %1399 = vmatprep.subr.mxu0 0.0
        %1400 = vmatpush1.msra.mxu0 0.0
        %1401 = vmatprep.subr.mxu0 0.0
        %1402 = vmatpush1.msra.mxu0 0.0
        %1403 = vmatprep.subr.mxu0 0.0
        %1404 = vmatpush1.msra.mxu0 0.0
        %1405 = vmatprep.subr.mxu0 0.0
        %1406 = vmatpush1.msra.mxu0 0.0
        %1407 = vmatprep.subr.mxu0 0.0
        %1408 = vmatpush1.msra.mxu0 0.0
        %1409 = vmatprep.subr.mxu0 0.0
        %1410 = vmatpush1.msra.mxu0 0.0
        %1411 = vmatprep.subr.mxu0 0.0
        %1412 = vmatpush1.msra.mxu0 0.0
        %1413 = vmatprep.subr.mxu0 0.0
        %1414 = vmatpush1.msra.mxu0 0.0
        %1415 = vmatprep.subr.mxu0 0.0
        %1416 = vmatpush1.msra.mxu0 0.0
        %1417 = vmatprep.subr.mxu0 0.0
        %1418 = vmatpush1.msra.mxu0 0.0
        %1419 = vmatprep.subr.mxu0 0.0
        %1420 = vmatpush1.msra.mxu0 0.0
        %1421 = vmatprep.subr.mxu0 0.0
        %1422 = vmatpush1.msra.mxu0 0.0
        %1423 = vmatprep.subr.mxu0 0.0
        %1424 = vmatpush1.msra.mxu0 0.0
        %1425 = vmatprep.subr.mxu0 0.0
        %1426 = vmatpush1.msra.mxu0 0.0
        %1427 = vmatprep.subr.mxu0 0.0
        %1428 = vmatpush1.msra.mxu0 0.0
        %1429 = vmatprep.subr.mxu0 0.0
        %1430 = vmatpush1.msra.mxu0 0.0
        %1431 = vmatprep.subr.mxu0 0.0
        %1432 = vmatpush1.msra.mxu0 0.0
        %1433 = vmatprep.subr.mxu0 0.0
        %1434 = vmatpush1.msra.mxu0 0.0
        %1435 = vmatprep.mubr.f32.mxu0 0.0
        %1436 = vmatmul.mubr.f32.gmra.mrb[0].mxu0 %v1348
        %v1437 = vpop.f32.mrb[0].mxu0
        %v1438 = vadd.f32 0.0, %v1437
        %v1439 = vpop.f32.mrb[0].mxu0
        %1440 = vmatprep.mubr.f32.mxu0 0.0
        %1441 = vmatmul.mubr.f32.gmra.mrb[0].mxu0 %v1351
        %v1442 = vpop.f32.mrb[0].mxu0
        %v1443 = vadd.f32 0.0, %v1442
        %v1444 = vpop.f32.mrb[0].mxu0
        %1445 = vmatprep.mubr.f32.mxu0 0.0
        %1446 = vmatmul.mubr.f32.gmra.mrb[0].mxu0 %v1354
        %v1447 = vpop.f32.mrb[0].mxu0
        %v1448 = vadd.f32 0.0, %v1447
        %v1449 = vpop.f32.mrb[0].mxu0
        %1450 = vmatprep.mubr.f32.mxu0 0.0
        %1451 = vmatmul.mubr.f32.gmra.mrb[0].mxu0 %v1357
        %v1452 = vpop.f32.mrb[0].mxu0
        %v1453 = vadd.f32 0.0, %v1452
        %v1454 = vpop.f32.mrb[0].mxu0
        %1455 = vmatprep.mubr.f32.mxu0 0.0
        %1456 = vmatmul.mubr.f32.gmra.mrb[0].mxu0 %v1360
        %v1457 = vpop.f32.mrb[0].mxu0
        %v1458 = vadd.f32 0.0, %v1457
        %v1459 = vpop.f32.mrb[0].mxu0
        %1460 = vmatprep.mubr.f32.mxu0 0.0
        %1461 = vmatmul.mubr.f32.gmra.mrb[0].mxu0 %v1363
        %v1462 = vpop.f32.mrb[0].mxu0
        %v1463 = vadd.f32 0.0, %v1462
        %v1464 = vpop.f32.mrb[0].mxu0
        %1465 = vmatprep.mubr.f32.mxu0 0.0
        %1466 = vmatmul.mubr.f32.gmra.mrb[0].mxu0 %v1366
        %v1467 = vpop.f32.mrb[0].mxu0
        %v1468 = vadd.f32 0.0, %v1467
        %v1469 = vpop.f32.mrb[0].mxu0
        %1470 = vmatprep.mubr.f32.mxu0 0.0
        %1471 = vmatmul.mubr.f32.gmra.mrb[0].mxu0 %v1369
        %v1472 = vpop.f32.mrb[0].mxu0
        %v1473 = vadd.f32 0.0, %v1472
        %v1474 = vpop.f32.mrb[0].mxu0
        %1475 = vdwg.mxu0
        %v1476 = vadd.f32 %v1298, %v1438
        %v1477 = vadd.f32 %v1303, %v1443
        %v1478 = vadd.f32 %v1308, %v1448
        %v1479 = vadd.f32 %v1313, %v1453
        %v1480 = vadd.f32 %v1318, %v1458
        %v1481 = vadd.f32 %v1323, %v1463
        %v1482 = vadd.f32 %v1328, %v1468
        %v1483 = vadd.f32 %v1333, %v1473
        %v1484 = vld [vmem:[%s4] sm:$0xf]
        %v1486 = vsel %vm314, %v1484, 0
        %1488 = vmatprep.subr.mxu0 0.0
        %1489 = vmatpush1.msra.mxu0 %v1486
        %1490 = vmatprep.subr.mxu0 0.0
        %1491 = vmatpush1.msra.mxu0 0.0
        %1492 = vmatprep.subr.mxu0 0.0
        %1493 = vmatpush1.msra.mxu0 0.0
        %1494 = vmatprep.subr.mxu0 0.0
        %1495 = vmatpush1.msra.mxu0 0.0
        %1496 = vmatprep.subr.mxu0 0.0
        %1497 = vmatpush1.msra.mxu0 0.0
        %1498 = vmatprep.subr.mxu0 0.0
        %1499 = vmatpush1.msra.mxu0 0.0
        %1500 = vmatprep.subr.mxu0 0.0
        %1501 = vmatpush1.msra.mxu0 0.0
        %1502 = vmatprep.subr.mxu0 0.0
        %1503 = vmatpush1.msra.mxu0 0.0
        %1504 = vmatprep.subr.mxu0 0.0
        %1505 = vmatpush1.msra.mxu0 0.0
        %1506 = vmatprep.subr.mxu0 0.0
        %1507 = vmatpush1.msra.mxu0 0.0
        %1508 = vmatprep.subr.mxu0 0.0
        %1509 = vmatpush1.msra.mxu0 0.0
        %1510 = vmatprep.subr.mxu0 0.0
        %1511 = vmatpush1.msra.mxu0 0.0
        %1512 = vmatprep.subr.mxu0 0.0
        %1513 = vmatpush1.msra.mxu0 0.0
        %1514 = vmatprep.subr.mxu0 0.0
        %1515 = vmatpush1.msra.mxu0 0.0
        %1516 = vmatprep.subr.mxu0 0.0
        %1517 = vmatpush1.msra.mxu0 0.0
        %1518 = vmatprep.subr.mxu0 0.0
        %1519 = vmatpush1.msra.mxu0 0.0
        %1520 = vmatprep.subr.mxu0 0.0
        %1521 = vmatpush1.msra.mxu0 0.0
        %1522 = vmatprep.subr.mxu0 0.0
        %1523 = vmatpush1.msra.mxu0 0.0
        %1524 = vmatprep.subr.mxu0 0.0
        %1525 = vmatpush1.msra.mxu0 0.0
        %1526 = vmatprep.subr.mxu0 0.0
        %1527 = vmatpush1.msra.mxu0 0.0
        %1528 = vmatprep.subr.mxu0 0.0
        %1529 = vmatpush1.msra.mxu0 0.0
        %1530 = vmatprep.subr.mxu0 0.0
        %1531 = vmatpush1.msra.mxu0 0.0
        %1532 = vmatprep.subr.mxu0 0.0
        %1533 = vmatpush1.msra.mxu0 0.0
        %1534 = vmatprep.subr.mxu0 0.0
        %1535 = vmatpush1.msra.mxu0 0.0
        %1536 = vmatprep.subr.mxu0 0.0
        %1537 = vmatpush1.msra.mxu0 0.0
        %1538 = vmatprep.subr.mxu0 0.0
        %1539 = vmatpush1.msra.mxu0 0.0
        %1540 = vmatprep.subr.mxu0 0.0
        %1541 = vmatpush1.msra.mxu0 0.0
        %1542 = vmatprep.subr.mxu0 0.0
        %1543 = vmatpush1.msra.mxu0 0.0
        %1544 = vmatprep.subr.mxu0 0.0
        %1545 = vmatpush1.msra.mxu0 0.0
        %1546 = vmatprep.subr.mxu0 0.0
        %1547 = vmatpush1.msra.mxu0 0.0
        %1548 = vmatprep.subr.mxu0 0.0
        %1549 = vmatpush1.msra.mxu0 0.0
        %1550 = vmatprep.subr.mxu0 0.0
        %1551 = vmatpush1.msra.mxu0 0.0
        %1552 = vmatprep.mubr.f32.mxu0 0.0
        %1553 = vmatmul.mubr.f32.gmra.mrb[0].mxu0 %v291
        %v1554 = vpop.f32.mrb[0].mxu0
        %v1555 = vadd.f32 0.0, %v1554
        %v1556 = vpop.f32.mrb[0].mxu0
        %1557 = vmatprep.mubr.f32.mxu0 0.0
        %1558 = vmatmul.mubr.f32.gmra.mrb[0].mxu0 %v294
        %v1559 = vpop.f32.mrb[0].mxu0
        %v1560 = vadd.f32 0.0, %v1559
        %v1561 = vpop.f32.mrb[0].mxu0
        %1562 = vmatprep.mubr.f32.mxu0 0.0
        %1563 = vmatmul.mubr.f32.gmra.mrb[0].mxu0 %v297
        %v1564 = vpop.f32.mrb[0].mxu0
        %v1565 = vadd.f32 0.0, %v1564
        %v1566 = vpop.f32.mrb[0].mxu0
        %1567 = vmatprep.mubr.f32.mxu0 0.0
        %1568 = vmatmul.mubr.f32.gmra.mrb[0].mxu0 %v300
        %v1569 = vpop.f32.mrb[0].mxu0
        %v1570 = vadd.f32 0.0, %v1569
        %v1571 = vpop.f32.mrb[0].mxu0
        %1572 = vmatprep.mubr.f32.mxu0 0.0
        %1573 = vmatmul.mubr.f32.gmra.mrb[0].mxu0 %v303
        %v1574 = vpop.f32.mrb[0].mxu0
        %v1575 = vadd.f32 0.0, %v1574
        %v1576 = vpop.f32.mrb[0].mxu0
        %1577 = vmatprep.mubr.f32.mxu0 0.0
        %1578 = vmatmul.mubr.f32.gmra.mrb[0].mxu0 %v306
        %v1579 = vpop.f32.mrb[0].mxu0
        %v1580 = vadd.f32 0.0, %v1579
        %v1581 = vpop.f32.mrb[0].mxu0
        %1582 = vmatprep.mubr.f32.mxu0 0.0
        %1583 = vmatmul.mubr.f32.gmra.mrb[0].mxu0 %v309
        %v1584 = vpop.f32.mrb[0].mxu0
        %v1585 = vadd.f32 0.0, %v1584
        %v1586 = vpop.f32.mrb[0].mxu0
        %1587 = vmatprep.mubr.f32.mxu0 0.0
        %1588 = vmatmul.mubr.f32.gmra.mrb[0].mxu0 %v312
        %v1589 = vpop.f32.mrb[0].mxu0
        %v1590 = vadd.f32 0.0, %v1589
        %v1591 = vpop.f32.mrb[0].mxu0
        %1592 = vdwg.mxu0
        %v1593 = vadd.f32 %v1476, %v1555
        %v1594 = vadd.f32 %v1477, %v1560
        %v1595 = vadd.f32 %v1478, %v1565
        %v1596 = vadd.f32 %v1479, %v1570
        %v1597 = vadd.f32 %v1480, %v1575
        %v1598 = vadd.f32 %v1481, %v1580
        %v1599 = vadd.f32 %v1482, %v1585
        %v1600 = vadd.f32 %v1483, %v1590
        %v1601 = vlaneseq
        %v1602 = vshrl.u32 %v1601, 7
        %v1603 = vsub.s32 0, %v1602
        %v1604 = vrot.slane %v1084, %v1603
        %v1605 = vadd.f32 %v1593, %v1604
        %v1606 = vadd.f32 %v1594, %v1604
        %v1607 = vadd.f32 %v1595, %v1604
        %v1608 = vadd.f32 %v1596, %v1604
        %v1609 = vadd.f32 %v1597, %v1604
        %v1610 = vadd.f32 %v1598, %v1604
        %v1611 = vadd.f32 %v1599, %v1604
        %v1612 = vadd.f32 %v1600, %v1604
        %v1613 = vlaneseq
        %v1614 = vshrl.u32 %v1613, 7
        %v1615 = vsub.s32 1, %v1614
        %v1616 = vrot.slane %v1084, %v1615
        %v1617 = vadd.f32 %v1605, %v1616
        %v1618 = vadd.f32 %v1606, %v1616
        %v1619 = vadd.f32 %v1607, %v1616
        %v1620 = vadd.f32 %v1608, %v1616
        %v1621 = vadd.f32 %v1609, %v1616
        %v1622 = vadd.f32 %v1610, %v1616
        %v1623 = vadd.f32 %v1611, %v1616
        %v1624 = vadd.f32 %v1612, %v1616
        %v1625 = vmax.f32 %v1617, 0.0
        %v1626 = vmax.f32 %v1618, 0.0
        %v1627 = vmax.f32 %v1619, 0.0
        %v1628 = vmax.f32 %v1620, 0.0
        %v1629 = vmax.f32 %v1621, 0.0
        %v1630 = vmax.f32 %v1622, 0.0
        %v1631 = vmax.f32 %v1623, 0.0
        %v1632 = vmax.f32 %v1624, 0.0
        %v1633 = vsel %vm1073, %v1625, 0.0
        %1634 = vadd.xlane.f32.xlu0 %v1633
        %v1635 = vpop.xlane.xlu0 %1634
        %v1636 = vsel %vm1073, %v1626, 0.0
        %1637 = vadd.xlane.f32.xlu0 %v1636
        %v1638 = vpop.xlane.xlu0 %1637
        %v1639 = vsel %vm1073, %v1627, 0.0
        %1640 = vadd.xlane.f32.xlu0 %v1639
        %v1641 = vpop.xlane.xlu0 %1640
        %v1642 = vsel %vm1073, %v1628, 0.0
        %1643 = vadd.xlane.f32.xlu0 %v1642
        %v1644 = vpop.xlane.xlu0 %1643
        %v1645 = vsel %vm1073, %v1629, 0.0
        %1646 = vadd.xlane.f32.xlu0 %v1645
        %v1647 = vpop.xlane.xlu0 %1646
        %v1648 = vsel %vm1073, %v1630, 0.0
        %1649 = vadd.xlane.f32.xlu0 %v1648
        %v1650 = vpop.xlane.xlu0 %1649
        %v1651 = vsel %vm1073, %v1631, 0.0
        %1652 = vadd.xlane.f32.xlu0 %v1651
        %v1653 = vpop.xlane.xlu0 %1652
        %v1654 = vsel %vm1073, %v1632, 0.0
        %1655 = vadd.xlane.f32.xlu0 %v1654
        %v1656 = vpop.xlane.xlu0 %1655
        %v1657 = vrcp.pop 16.0
        %v1658 = vmul.f32 %v1635, %v1657
        %v1659 = vmul.f32 %v1638, %v1657
        %v1660 = vmul.f32 %v1641, %v1657
        %v1661 = vmul.f32 %v1644, %v1657
        %v1662 = vmul.f32 %v1647, %v1657
        %v1663 = vmul.f32 %v1650, %v1657
        %v1664 = vmul.f32 %v1653, %v1657
        %v1665 = vmul.f32 %v1656, %v1657
        %v1666 = vsub.f32 %v1625, %v1658
        %v1667 = vsub.f32 %v1626, %v1659
        %v1668 = vsub.f32 %v1627, %v1660
        %v1669 = vsub.f32 %v1628, %v1661
        %v1670 = vsub.f32 %v1629, %v1662
        %v1671 = vsub.f32 %v1630, %v1663
        %v1672 = vsub.f32 %v1631, %v1664
        %v1673 = vsub.f32 %v1632, %v1665
        %v1674 = vmul.f32 %v1666, %v1666
        %v1675 = vmul.f32 %v1667, %v1667
        %v1676 = vmul.f32 %v1668, %v1668
        %v1677 = vmul.f32 %v1669, %v1669
        %v1678 = vmul.f32 %v1670, %v1670
        %v1679 = vmul.f32 %v1671, %v1671
        %v1680 = vmul.f32 %v1672, %v1672
        %v1681 = vmul.f32 %v1673, %v1673
        %v1682 = vsel %vm1073, %v1674, 0.0
        %1683 = vadd.xlane.f32.xlu0 %v1682
        %v1684 = vpop.xlane.xlu0 %1683
        %v1685 = vsel %vm1073, %v1675, 0.0
        %1686 = vadd.xlane.f32.xlu0 %v1685
        %v1687 = vpop.xlane.xlu0 %1686
        %v1688 = vsel %vm1073, %v1676, 0.0
        %1689 = vadd.xlane.f32.xlu0 %v1688
        %v1690 = vpop.xlane.xlu0 %1689
        %v1691 = vsel %vm1073, %v1677, 0.0
        %1692 = vadd.xlane.f32.xlu0 %v1691
        %v1693 = vpop.xlane.xlu0 %1692
        %v1694 = vsel %vm1073, %v1678, 0.0
        %1695 = vadd.xlane.f32.xlu0 %v1694
        %v1696 = vpop.xlane.xlu0 %1695
        %v1697 = vsel %vm1073, %v1679, 0.0
        %1698 = vadd.xlane.f32.xlu0 %v1697
        %v1699 = vpop.xlane.xlu0 %1698
        %v1700 = vsel %vm1073, %v1680, 0.0
        %1701 = vadd.xlane.f32.xlu0 %v1700
        %v1702 = vpop.xlane.xlu0 %1701
        %v1703 = vsel %vm1073, %v1681, 0.0
        %1704 = vadd.xlane.f32.xlu0 %v1703
        %v1705 = vpop.xlane.xlu0 %1704
        %v1706 = vmul.f32 %v1684, %v1657
        %v1707 = vmul.f32 %v1687, %v1657
        %v1708 = vmul.f32 %v1690, %v1657
        %v1709 = vmul.f32 %v1693, %v1657
        %v1710 = vmul.f32 %v1696, %v1657
        %v1711 = vmul.f32 %v1699, %v1657
        %v1712 = vmul.f32 %v1702, %v1657
        %v1713 = vmul.f32 %v1705, %v1657
        %v1714 = vadd.f32 %v1706, 1e-05
        %v1715 = vadd.f32 %v1707, 1e-05
        %v1716 = vadd.f32 %v1708, 1e-05
        %v1717 = vadd.f32 %v1709, 1e-05
        %v1718 = vadd.f32 %v1710, 1e-05
        %v1719 = vadd.f32 %v1711, 1e-05
        %v1720 = vadd.f32 %v1712, 1e-05
        %v1721 = vadd.f32 %v1713, 1e-05
        %v1722 = vrsqrt.pop %v1714
        %v1723 = vrsqrt.pop %v1715
        %v1724 = vrsqrt.pop %v1716
        %v1725 = vrsqrt.pop %v1717
        %v1726 = vrsqrt.pop %v1718
        %v1727 = vrsqrt.pop %v1719
        %v1728 = vrsqrt.pop %v1720
        %v1729 = vrsqrt.pop %v1721
        %v1730 = vmul.f32 %v1666, %v1722
        %v1731 = vmul.f32 %v1667, %v1723
        %v1732 = vmul.f32 %v1668, %v1724
        %v1733 = vmul.f32 %v1669, %v1725
        %v1734 = vmul.f32 %v1670, %v1726
        %v1735 = vmul.f32 %v1671, %v1727
        %v1736 = vmul.f32 %v1672, %v1728
        %v1737 = vmul.f32 %v1673, %v1729
        %v1738 = vlaneseq
        %v1739 = vshrl.u32 %v1738, 7
        %v1740 = vsub.s32 2, %v1739
        %v1741 = vrot.slane %v1084, %v1740
        %v1742 = vmul.f32 %v1730, %v1741
        %v1743 = vmul.f32 %v1731, %v1741
        %v1744 = vmul.f32 %v1732, %v1741
        %v1745 = vmul.f32 %v1733, %v1741
        %v1746 = vmul.f32 %v1734, %v1741
        %v1747 = vmul.f32 %v1735, %v1741
        %v1748 = vmul.f32 %v1736, %v1741
        %v1749 = vmul.f32 %v1737, %v1741
        %v1750 = vlaneseq
        %v1751 = vshrl.u32 %v1750, 7
        %v1752 = vsub.s32 3, %v1751
        %v1753 = vrot.slane %v1084, %v1752
        %v1754 = vadd.f32 %v1742, %v1753
        %v1755 = vadd.f32 %v1743, %v1753
        %v1756 = vadd.f32 %v1744, %v1753
        %v1757 = vadd.f32 %v1745, %v1753
        %v1758 = vadd.f32 %v1746, %v1753
        %v1759 = vadd.f32 %v1747, %v1753
        %v1760 = vadd.f32 %v1748, %v1753
        %v1761 = vadd.f32 %v1749, %v1753
        %1762 = vst.msk [vmem:[%s279] sm:$0xff] %vm1073, %v1754
        %1763 = vst.msk [vmem:[%s279 + $0x8] sm:$0xff] %vm1073, %v1755
        %1764 = vst.msk [vmem:[%s279 + $0x10] sm:$0xff] %vm1073, %v1756
        %1765 = vst.msk [vmem:[%s279 + $0x18] sm:$0xff] %vm1073, %v1757
        %1766 = vst.msk [vmem:[%s279 + $0x20] sm:$0xff] %vm1073, %v1758
        %1767 = vst.msk [vmem:[%s279 + $0x28] sm:$0xff] %vm1073, %v1759
        %1768 = vst.msk [vmem:[%s279 + $0x30] sm:$0xff] %vm1073, %v1760
        %1769 = vst.msk [vmem:[%s279 + $0x38] sm:$0xff] %vm1073, %v1761
        %p1770 = scmp.lt.s32.totalorder %s19, 1
        %s1771 = scalar_select %p1770, %s19, 1
        %s1772 = smul.addr %s1771, 8
        %s1773 = smul.addr %s1772, 8
        %s1774 = scalar_lea.vmem %s6, %s1773
        // Predicated region
        $region53: #{fwd.2} parent=43 // pred_check
          %p1775 = pneg %p168
        $region54: #{fwd.2} parent=43 // pred_check_branch
          %1777 = sbr.rel (%p1775) target = $region56
        $region55: #{fwd.2} parent=43 // pred_region
          _
        $region56: #{fwd.2} parent=43 // pred_fallthru
          _
      $region44: #{fwd.2} parent=5 // pred_fallthru
        _
      %p1778 = scmp.le.s32.totalorder 2, %s14
      // Predicated region
      $region57: #{fwd.2} parent=5 // pred_check
        %p1779 = pneg %p1778
      $region58: #{fwd.2} parent=5 // pred_check_branch
        %1781 = sbr.rel (%p1779) target = $region60
      $region59: #{fwd.2} parent=5 // pred_region
        %s1782 = ssub.s32 %s14, 2
        // Predicated region
        $region61: #{fwd.2} parent=59 // pred_check
          %p1783 = pneg %p174
        $region62: #{fwd.2} parent=59 // pred_check_branch
          %1785 = sbr.rel (%p1783) target = $region64
        $region63: #{fwd.2} parent=59 // pred_region
          %p1786 = scmp.lt.s32.totalorder %s20, 1
          %s1787 = scalar_select %p1786, %s20, 1
          %s1788 = smul.addr %s1787, 8
          %s1789 = smul.addr %s1788, 8
          %s1790 = scalar_lea.vmem %s6, %s1789
        $region64: #{fwd.2} parent=59 // pred_fallthru
          _
      $region60: #{fwd.2} parent=5 // pred_fallthru
        _
    $region6: #{fwd.2} parent=1 // loop_footer
      %s18 = sadd.s32 1, %s14
    $region7: #{fwd.2} parent=1 // loop_footer_branch
      %13 = sbr.rel target = $region3
    $region8: #{fwd.2} parent=1 // loop_exit
      _
    %1791 = vsyncpa [#allocation4], 1
    %s1792 = scalar_lea.sflag [#allocation4], 1
    %1793 = vsyncpa %s1792, 1
    %1794 = vsyncpa [#allocation6], 1

// kernel: fwd.3
$region0: #{fwd.3}
  #allocation0 [shape = 'u32[]', space=smem, size = 0x4, offset = 0x4, fixed_abs, tag = 'smem constant byte address 0x4 - core index']
  #allocation1 [shape = 'u32[144,128]{1,0:T(1,128)}', space=vmem, size = 0x12000, scoped, tag = 'internal scratch']
  #allocation2 [shape = 'f32[80,16]{1,0:T(8,128)}', space=vmem, size = 0xa000, scoped, tag = 'scratch operand']
  %s0 = inlined_call_operand.vmem [shape: f32[2,64,16], index: 0, kind: input, shape index: {}]
  %s1 = inlined_call_operand.vmem [shape: f32[3,64,64], index: 1, kind: input, shape index: {}]
  %s2 = inlined_call_operand.vmem [shape: f32[3,16,16], index: 2, kind: input, shape index: {}]
  %s3 = inlined_call_operand.vmem [shape: f32[3,16,16], index: 3, kind: input, shape index: {}]
  %s4 = inlined_call_operand.vmem [shape: f32[16,16], index: 4, kind: input, shape index: {}]
  %s5 = inlined_call_operand.vmem [shape: f32[4,16], index: 5, kind: input, shape index: {}]
  %s6 = inlined_call_operand.vmem [shape: f32[2,64,16], index: 6, kind: output, shape index: {}]
  %s7 = sld [smem:[#allocation0]]
  $region57: #{fwd.3} parent=0
    _
  %s9 = ssub.s32 1, %s7
  %s10 = scalar_select 0, %s9, %s7
  loop: start=0, step=1, limit=4
  $region2: #{fwd.3} parent=0 // loop_pre_header
    _
  $region3: #{fwd.3} parent=0 // loop_header
    %s12 = sphi 0, %s16
    %p13 = scmp.ge.s32.totalorder %s12, 4
    %s22 = sphi 0, %s24
    %s25 = sphi 0, %s22
    %s26 = sphi 0, %s25
    %s42 = sphi 0, %s26
    %s46 = sphi 0, %s46
    %s48 = sphi 0, %s46
    %s49 = sphi 0, %s48
    %s63 = sphi 0, %s49
    %s67 = sphi 0, %s67
    %s69 = sphi 0, %s67
    %s70 = sphi 0, %s69
    %s84 = sphi 0, %s70
    %s88 = sphi 0, %s88
    %s90 = sphi 0, %s88
    %s91 = sphi 0, %s90
    %s105 = sphi 0, %s91
    %s109 = sphi 0, %s109
    %s111 = sphi 0, %s109
    %s112 = sphi 0, %s111
    %s126 = sphi 0, %s112
    %s130 = sphi 0, %s130
    %s132 = sphi 0, %s130
    %s133 = sphi 0, %s132
    %s147 = sphi 0, %s133
    %s153 = sphi 0, %s155
    %s156 = sphi 0, %s153
    %s157 = sphi 0, %s156
    %s173 = sphi 0, %s157
  $region4: #{fwd.3} parent=0 // loop_header_branch
    %15 = sbr.rel (%p13) target = $region8
  $region5: #{fwd.3} parent=0 // loop_body
    %s17 = ssub.s32 %s12, 1
    %s18 = ssub.s32 %s12, 2
    %s19 = sadd.s32 %s12, 1
    %s20 = ssub.s32 %s12, %s19
    %p21 = scmp.eq.s32.totalorder %s20, 0
    %s23 = sadd.s32 %s22, 1
    %s24 = scalar_select %p21, %s22, %s23
    %p27 = pneg %p21
    %p28 = scmp.eq.s32.totalorder %s12, 1
    %p29 = por %p27, %p28
    %p30 = scmp.ne.s32.totalorder %s22, %s25
    %p31 = scmp.eq.s32.totalorder %s12, 0
    %p32 = por %p30, %p31
    %p33 = scmp.ne.s32.totalorder %s22, %s25
    %p34 = scmp.eq.s32.totalorder %s17, 1
    %p35 = por %p33, %p34
    %p36 = scmp.ne.s32.totalorder %s25, %s26
    %p37 = scmp.eq.s32.totalorder %s17, 0
    %p38 = por %p36, %p37
    %p39 = scmp.ne.s32.totalorder %s25, %s26
    %p40 = scmp.eq.s32.totalorder %s18, 1
    %p41 = por %p39, %p40
    %p43 = scmp.ne.s32.totalorder %s26, %s42
    %p44 = scmp.eq.s32.totalorder %s18, 0
    %p45 = por %p43, %p44
    %s47 = sadd.s32 %s46, 1
    %p50 = scmp.eq.s32.totalorder %s12, 1
    %p51 = scmp.ne.s32.totalorder %s46, %s48
    %p52 = scmp.eq.s32.totalorder %s12, 0
    %p53 = por %p51, %p52
    %p54 = scmp.ne.s32.totalorder %s46, %s48
    %p55 = scmp.eq.s32.totalorder %s17, 1
    %p56 = por %p54, %p55
    %p57 = scmp.ne.s32.totalorder %s48, %s49
    %p58 = scmp.eq.s32.totalorder %s17, 0
    %p59 = por %p57, %p58
    %p60 = scmp.ne.s32.totalorder %s48, %s49
    %p61 = scmp.eq.s32.totalorder %s18, 1
    %p62 = por %p60, %p61
    %p64 = scmp.ne.s32.totalorder %s49, %s63
    %p65 = scmp.eq.s32.totalorder %s18, 0
    %p66 = por %p64, %p65
    %s68 = sadd.s32 %s67, 1
    %p71 = scmp.eq.s32.totalorder %s12, 1
    %p72 = scmp.ne.s32.totalorder %s67, %s69
    %p73 = scmp.eq.s32.totalorder %s12, 0
    %p74 = por %p72, %p73
    %p75 = scmp.ne.s32.totalorder %s67, %s69
    %p76 = scmp.eq.s32.totalorder %s17, 1
    %p77 = por %p75, %p76
    %p78 = scmp.ne.s32.totalorder %s69, %s70
    %p79 = scmp.eq.s32.totalorder %s17, 0
    %p80 = por %p78, %p79
    %p81 = scmp.ne.s32.totalorder %s69, %s70
    %p82 = scmp.eq.s32.totalorder %s18, 1
    %p83 = por %p81, %p82
    %p85 = scmp.ne.s32.totalorder %s70, %s84
    %p86 = scmp.eq.s32.totalorder %s18, 0
    %p87 = por %p85, %p86
    %s89 = sadd.s32 %s88, 1
    %p92 = scmp.eq.s32.totalorder %s12, 1
    %p93 = scmp.ne.s32.totalorder %s88, %s90
    %p94 = scmp.eq.s32.totalorder %s12, 0
    %p95 = por %p93, %p94
    %p96 = scmp.ne.s32.totalorder %s88, %s90
    %p97 = scmp.eq.s32.totalorder %s17, 1
    %p98 = por %p96, %p97
    %p99 = scmp.ne.s32.totalorder %s90, %s91
    %p100 = scmp.eq.s32.totalorder %s17, 0
    %p101 = por %p99, %p100
    %p102 = scmp.ne.s32.totalorder %s90, %s91
    %p103 = scmp.eq.s32.totalorder %s18, 1
    %p104 = por %p102, %p103
    %p106 = scmp.ne.s32.totalorder %s91, %s105
    %p107 = scmp.eq.s32.totalorder %s18, 0
    %p108 = por %p106, %p107
    %s110 = sadd.s32 %s109, 1
    %p113 = scmp.eq.s32.totalorder %s12, 1
    %p114 = scmp.ne.s32.totalorder %s109, %s111
    %p115 = scmp.eq.s32.totalorder %s12, 0
    %p116 = por %p114, %p115
    %p117 = scmp.ne.s32.totalorder %s109, %s111
    %p118 = scmp.eq.s32.totalorder %s17, 1
    %p119 = por %p117, %p118
    %p120 = scmp.ne.s32.totalorder %s111, %s112
    %p121 = scmp.eq.s32.totalorder %s17, 0
    %p122 = por %p120, %p121
    %p123 = scmp.ne.s32.totalorder %s111, %s112
    %p124 = scmp.eq.s32.totalorder %s18, 1
    %p125 = por %p123, %p124
    %p127 = scmp.ne.s32.totalorder %s112, %s126
    %p128 = scmp.eq.s32.totalorder %s18, 0
    %p129 = por %p127, %p128
    %s131 = sadd.s32 %s130, 1
    %p134 = scmp.eq.s32.totalorder %s12, 1
    %p135 = scmp.ne.s32.totalorder %s130, %s132
    %p136 = scmp.eq.s32.totalorder %s12, 0
    %p137 = por %p135, %p136
    %p138 = scmp.ne.s32.totalorder %s130, %s132
    %p139 = scmp.eq.s32.totalorder %s17, 1
    %p140 = por %p138, %p139
    %p141 = scmp.ne.s32.totalorder %s132, %s133
    %p142 = scmp.eq.s32.totalorder %s17, 0
    %p143 = por %p141, %p142
    %p144 = scmp.ne.s32.totalorder %s132, %s133
    %p145 = scmp.eq.s32.totalorder %s18, 1
    %p146 = por %p144, %p145
    %p148 = scmp.ne.s32.totalorder %s133, %s147
    %p149 = scmp.eq.s32.totalorder %s18, 0
    %p150 = por %p148, %p149
    %s151 = ssub.s32 %s12, %s19
    %p152 = scmp.eq.s32.totalorder %s151, 0
    %s154 = sadd.s32 %s153, 1
    %s155 = scalar_select %p152, %s153, %s154
    %p158 = pneg %p152
    %p159 = scmp.eq.s32.totalorder %s12, 1
    %p160 = por %p158, %p159
    %p161 = scmp.ne.s32.totalorder %s153, %s156
    %p162 = scmp.eq.s32.totalorder %s12, 0
    %p163 = por %p161, %p162
    %p164 = scmp.ne.s32.totalorder %s153, %s156
    %p165 = scmp.eq.s32.totalorder %s17, 1
    %p166 = por %p164, %p165
    %p167 = scmp.ne.s32.totalorder %s156, %s157
    %p168 = scmp.eq.s32.totalorder %s17, 0
    %p169 = por %p167, %p168
    %p170 = scmp.ne.s32.totalorder %s156, %s157
    %p171 = scmp.eq.s32.totalorder %s18, 1
    %p172 = por %p170, %p171
    %p174 = scmp.ne.s32.totalorder %s157, %s173
    %p175 = scmp.eq.s32.totalorder %s18, 0
    %p176 = por %p174, %p175
    %p177 = scmp.le.s32.totalorder 1, %s12
    %p178 = scmp.lt.s32.totalorder %s12, 3
    %p179 = pnand %p177, %p178
    %p180 = pneg %p179
    // Predicated region
    $region9: #{fwd.3} parent=5 // pred_check
      _
    $region10: #{fwd.3} parent=5 // pred_check_branch
      %182 = sbr.rel (%p179) target = $region12
    $region11: #{fwd.3} parent=5 // pred_region
      %s183 = ssub.s32 %s12, 1
      // Predicated region
      $region13: #{fwd.3} parent=11 // pred_check
        %p184 = pneg %p59
      $region14: #{fwd.3} parent=11 // pred_check_branch
        %186 = sbr.rel (%p184) target = $region16
      $region15: #{fwd.3} parent=11 // pred_region
        _
      $region16: #{fwd.3} parent=11 // pred_fallthru
        _
      // Predicated region
      $region17: #{fwd.3} parent=11 // pred_check
        %p187 = pneg %p80
      $region18: #{fwd.3} parent=11 // pred_check_branch
        %189 = sbr.rel (%p187) target = $region20
      $region19: #{fwd.3} parent=11 // pred_region
        _
      $region20: #{fwd.3} parent=11 // pred_fallthru
        _
      // Predicated region
      $region21: #{fwd.3} parent=11 // pred_check
        %p190 = pneg %p101
      $region22: #{fwd.3} parent=11 // pred_check_branch
        %192 = sbr.rel (%p190) target = $region24
      $region23: #{fwd.3} parent=11 // pred_region
        _
      $region24: #{fwd.3} parent=11 // pred_fallthru
        _
      // Predicated region
      $region25: #{fwd.3} parent=11 // pred_check
        %p193 = pneg %p122
      $region26: #{fwd.3} parent=11 // pred_check_branch
        %195 = sbr.rel (%p193) target = $region28
      $region27: #{fwd.3} parent=11 // pred_region
        _
      $region28: #{fwd.3} parent=11 // pred_fallthru
        _
      // Predicated region
      $region29: #{fwd.3} parent=11 // pred_check
        %p196 = pneg %p143
      $region30: #{fwd.3} parent=11 // pred_check_branch
        %198 = sbr.rel (%p196) target = $region32
      $region31: #{fwd.3} parent=11 // pred_region
        _
      $region32: #{fwd.3} parent=11 // pred_fallthru
        _
    $region12: #{fwd.3} parent=5 // pred_fallthru
      _
    %p199 = scmp.lt.s32.totalorder %s12, 2
    // Predicated region
    $region33: #{fwd.3} parent=5 // pred_check
      %p200 = pneg %p199
    $region34: #{fwd.3} parent=5 // pred_check_branch
      %202 = sbr.rel (%p200) target = $region36
    $region35: #{fwd.3} parent=5 // pred_region
      // Predicated region
      $region37: #{fwd.3} parent=35 // pred_check
        %p203 = pneg %p32
      $region38: #{fwd.3} parent=35 // pred_check_branch
        %205 = sbr.rel (%p203) target = $region40
      $region39: #{fwd.3} parent=35 // pred_region
        %p206 = scmp.lt.s32.totalorder %s12, 1
        %s207 = scalar_select %p206, %s12, 1
        %s208 = smul.addr %s207, 8
        %s209 = smul.addr %s208, 8
        %s210 = scalar_lea.vmem %s0, %s209
      $region40: #{fwd.3} parent=35 // pred_fallthru
        _
    $region36: #{fwd.3} parent=5 // pred_fallthru
      _
    %p211 = scmp.le.s32.totalorder 1, %s12
    %p212 = scmp.lt.s32.totalorder %s12, 3
    %p213 = pnand %p211, %p212
    %p214 = pneg %p213
    // Predicated region
    $region41: #{fwd.3} parent=5 // pred_check
      _
    $region42: #{fwd.3} parent=5 // pred_check_branch
      %216 = sbr.rel (%p213) target = $region44
    $region43: #{fwd.3} parent=5 // pred_region
      %s217 = ssub.s32 %s12, 1
      %p218 = scmp.lt.s32.totalorder %s17, 1
      %s219 = scalar_select %p218, %s17, 1
      %s220 = smul.addr %s219, 8
      %s221 = smul.addr %s220, 8
      %s222 = scalar_lea.vmem %s0, %s221
      %p223 = pneg %p38
      %p224 = pneg %p35
      %p225 = pneg %p59
      %p226 = pneg %p56
      %p227 = pneg %p80
      %p228 = pneg %p77
      %p229 = pneg %p101
      %p230 = pneg %p98
      %p231 = pneg %p122
      %p232 = pneg %p119
      %p233 = pneg %p143
      %p234 = pneg %p140
      %p235 = pneg %p169
      %p236 = pneg %p166
      %p237 = scmp.lt.s32.totalorder %s17, 1
      %s238 = scalar_select %p237, %s17, 1
      %s239 = smul.addr %s238, 8
      %s240 = smul.addr %s239, 8
      %s241 = scalar_lea.vmem %s6, %s240
      %p242 = scmp.lt.s32.totalorder %s17, 1
      %s243 = scalar_select %p242, %s17, 1
      %s244 = smul.addr %s243, 8
      %s245 = smul.addr %s244, 8
      %s246 = scalar_lea.vmem %s0, %s245
      %p247 = scmp.lt.s32.totalorder %s17, 1
      %s248 = scalar_select %p247, %s17, 1
      %s249 = smul.addr %s248, 8
      %s250 = smul.addr %s249, 8
      %s251 = scalar_lea.vmem %s6, %s250
      %v252 = vld [vmem:[%s246] sm:$0xff]
      %v253 = vld [vmem:[%s246 + $0x8] sm:$0xff]
      %v254 = vld [vmem:[%s246 + $0x10] sm:$0xff]
      %v255 = vld [vmem:[%s246 + $0x18] sm:$0xff]
      %v256 = vld [vmem:[%s246 + $0x20] sm:$0xff]
      %v257 = vld [vmem:[%s246 + $0x28] sm:$0xff]
      %v258 = vld [vmem:[%s246 + $0x30] sm:$0xff]
      %v259 = vld [vmem:[%s246 + $0x38] sm:$0xff]
      %v260 = vld [vmem:[%s2] sm:$0xff]
      %v261 = vld [vmem:[%s2 + $0x8] sm:$0xff]
      %vm262 = vcmask 130048
      %v264 = vsel %vm262, %v252, 0
      %v267 = vsel %vm262, %v253, 0
      %v270 = vsel %vm262, %v254, 0
      %v273 = vsel %vm262, %v255, 0
      %v276 = vsel %vm262, %v256, 0
      %v279 = vsel %vm262, %v257, 0
      %v282 = vsel %vm262, %v258, 0
      %v285 = vsel %vm262, %v259, 0
      %287 = vmatprep.subr.mxu0 0.0
      %288 = vmatpush1.msra.mxu0 %v260
      %289 = vmatprep.subr.mxu0 0.0
      %290 = vmatpush1.msra.mxu0 %v261
      %291 = vmatprep.subr.mxu0 0.0
      %292 = vmatpush1.msra.mxu0 0.0
      %293 = vmatprep.subr.mxu0 0.0
      %294 = vmatpush1.msra.mxu0 0.0
      %295 = vmatprep.subr.mxu0 0.0
      %296 = vmatpush1.msra.mxu0 0.0
      %297 = vmatprep.subr.mxu0 0.0
      %298 = vmatpush1.msra.mxu0 0.0
      %299 = vmatprep.subr.mxu0 0.0
      %300 = vmatpush1.msra.mxu0 0.0
      %301 = vmatprep.subr.mxu0 0.0
      %302 = vmatpush1.msra.mxu0 0.0
      %303 = vmatprep.subr.mxu0 0.0
      %304 = vmatpush1.msra.mxu0 0.0
      %305 = vmatprep.subr.mxu0 0.0
      %306 = vmatpush1.msra.mxu0 0.0
      %307 = vmatprep.subr.mxu0 0.0
      %308 = vmatpush1.msra.mxu0 0.0
      %309 = vmatprep.subr.mxu0 0.0
      %310 = vmatpush1.msra.mxu0 0.0
      %311 = vmatprep.subr.mxu0 0.0
      %312 = vmatpush1.msra.mxu0 0.0
      %313 = vmatprep.subr.mxu0 0.0
      %314 = vmatpush1.msra.mxu0 0.0
      %315 = vmatprep.subr.mxu0 0.0
      %316 = vmatpush1.msra.mxu0 0.0
      %317 = vmatprep.subr.mxu0 0.0
      %318 = vmatpush1.msra.mxu0 0.0
      %319 = vmatprep.subr.mxu0 0.0
      %320 = vmatpush1.msra.mxu0 0.0
      %321 = vmatprep.subr.mxu0 0.0
      %322 = vmatpush1.msra.mxu0 0.0
      %323 = vmatprep.subr.mxu0 0.0
      %324 = vmatpush1.msra.mxu0 0.0
      %325 = vmatprep.subr.mxu0 0.0
      %326 = vmatpush1.msra.mxu0 0.0
      %327 = vmatprep.subr.mxu0 0.0
      %328 = vmatpush1.msra.mxu0 0.0
      %329 = vmatprep.subr.mxu0 0.0
      %330 = vmatpush1.msra.mxu0 0.0
      %331 = vmatprep.subr.mxu0 0.0
      %332 = vmatpush1.msra.mxu0 0.0
      %333 = vmatprep.subr.mxu0 0.0
      %334 = vmatpush1.msra.mxu0 0.0
      %335 = vmatprep.subr.mxu0 0.0
      %336 = vmatpush1.msra.mxu0 0.0
      %337 = vmatprep.subr.mxu0 0.0
      %338 = vmatpush1.msra.mxu0 0.0
      %339 = vmatprep.subr.mxu0 0.0
      %340 = vmatpush1.msra.mxu0 0.0
      %341 = vmatprep.subr.mxu0 0.0
      %342 = vmatpush1.msra.mxu0 0.0
      %343 = vmatprep.subr.mxu0 0.0
      %344 = vmatpush1.msra.mxu0 0.0
      %345 = vmatprep.subr.mxu0 0.0
      %346 = vmatpush1.msra.mxu0 0.0
      %347 = vmatprep.subr.mxu0 0.0
      %348 = vmatpush1.msra.mxu0 0.0
      %349 = vmatprep.subr.mxu0 0.0
      %350 = vmatpush1.msra.mxu0 0.0
      %351 = vmatprep.mubr.f32.mxu0 0.0
      %352 = vmatmul.mubr.f32.gmra.mrb[0].mxu0 %v264
      %v353 = vpop.f32.mrb[0].mxu0
      %v354 = vadd.f32 0.0, %v353
      %v355 = vpop.f32.mrb[0].mxu0
      %356 = vmatprep.mubr.f32.mxu0 0.0
      %357 = vmatmul.mubr.f32.gmra.mrb[0].mxu0 %v267
      %v358 = vpop.f32.mrb[0].mxu0
      %v359 = vadd.f32 0.0, %v358
      %v360 = vpop.f32.mrb[0].mxu0
      %361 = vmatprep.mubr.f32.mxu0 0.0
      %362 = vmatmul.mubr.f32.gmra.mrb[0].mxu0 %v270
      %v363 = vpop.f32.mrb[0].mxu0
      %v364 = vadd.f32 0.0, %v363
      %v365 = vpop.f32.mrb[0].mxu0
      %366 = vmatprep.mubr.f32.mxu0 0.0
      %367 = vmatmul.mubr.f32.gmra.mrb[0].mxu0 %v273
      %v368 = vpop.f32.mrb[0].mxu0
      %v369 = vadd.f32 0.0, %v368
      %v370 = vpop.f32.mrb[0].mxu0
      %371 = vmatprep.mubr.f32.mxu0 0.0
      %372 = vmatmul.mubr.f32.gmra.mrb[0].mxu0 %v276
      %v373 = vpop.f32.mrb[0].mxu0
      %v374 = vadd.f32 0.0, %v373
      %v375 = vpop.f32.mrb[0].mxu0
      %376 = vmatprep.mubr.f32.mxu0 0.0
      %377 = vmatmul.mubr.f32.gmra.mrb[0].mxu0 %v279
      %v378 = vpop.f32.mrb[0].mxu0
      %v379 = vadd.f32 0.0, %v378
      %v380 = vpop.f32.mrb[0].mxu0
      %381 = vmatprep.mubr.f32.mxu0 0.0
      %382 = vmatmul.mubr.f32.gmra.mrb[0].mxu0 %v282
      %v383 = vpop.f32.mrb[0].mxu0
      %v384 = vadd.f32 0.0, %v383
      %v385 = vpop.f32.mrb[0].mxu0
      %386 = vmatprep.mubr.f32.mxu0 0.0
      %387 = vmatmul.mubr.f32.gmra.mrb[0].mxu0 %v285
      %v388 = vpop.f32.mrb[0].mxu0
      %v389 = vadd.f32 0.0, %v388
      %v390 = vpop.f32.mrb[0].mxu0
      %391 = vdwg.mxu0
      %v392 = vld [vmem:[%s1] sm:$0xff]
      %v393 = vld [vmem:[%s1 + $0x8] sm:$0xff]
      %v394 = vld [vmem:[%s1 + $0x10] sm:$0xff]
      %v395 = vld [vmem:[%s1 + $0x18] sm:$0xff]
      %v396 = vld [vmem:[%s1 + $0x20] sm:$0xff]
      %v397 = vld [vmem:[%s1 + $0x28] sm:$0xff]
      %v398 = vld [vmem:[%s1 + $0x30] sm:$0xff]
      %v399 = vld [vmem:[%s1 + $0x38] sm:$0xff]
      %s400 = scalar_lea.vmem %s2, 16
      %v401 = vld [vmem:[%s400] sm:$0xff]
      %v402 = vld [vmem:[%s400 + $0x8] sm:$0xff]
      %403 = vmatprep.subr.mxu0 0.0
      %404 = vmatpush1.msra.mxu0 %v401
      %405 = vmatprep.subr.mxu0 0.0
      %406 = vmatpush1.msra.mxu0 %v402
      %407 = vmatprep.subr.mxu0 0.0
      %408 = vmatpush1.msra.mxu0 0.0
      %409 = vmatprep.subr.mxu0 0.0
      %410 = vmatpush1.msra.mxu0 0.0
      %411 = vmatprep.subr.mxu0 0.0
      %412 = vmatpush1.msra.mxu0 0.0
      %413 = vmatprep.subr.mxu0 0.0
      %414 = vmatpush1.msra.mxu0 0.0
      %415 = vmatprep.subr.mxu0 0.0
      %416 = vmatpush1.msra.mxu0 0.0
      %417 = vmatprep.subr.mxu0 0.0
      %418 = vmatpush1.msra.mxu0 0.0
      %419 = vmatprep.subr.mxu0 0.0
      %420 = vmatpush1.msra.mxu0 0.0
      %421 = vmatprep.subr.mxu0 0.0
      %422 = vmatpush1.msra.mxu0 0.0
      %423 = vmatprep.subr.mxu0 0.0
      %424 = vmatpush1.msra.mxu0 0.0
      %425 = vmatprep.subr.mxu0 0.0
      %426 = vmatpush1.msra.mxu0 0.0
      %427 = vmatprep.subr.mxu0 0.0
      %428 = vmatpush1.msra.mxu0 0.0
      %429 = vmatprep.subr.mxu0 0.0
      %430 = vmatpush1.msra.mxu0 0.0
      %431 = vmatprep.subr.mxu0 0.0
      %432 = vmatpush1.msra.mxu0 0.0
      %433 = vmatprep.subr.mxu0 0.0
      %434 = vmatpush1.msra.mxu0 0.0
      %435 = vmatprep.subr.mxu0 0.0
      %436 = vmatpush1.msra.mxu0 0.0
      %437 = vmatprep.subr.mxu0 0.0
      %438 = vmatpush1.msra.mxu0 0.0
      %439 = vmatprep.subr.mxu0 0.0
      %440 = vmatpush1.msra.mxu0 0.0
      %441 = vmatprep.subr.mxu0 0.0
      %442 = vmatpush1.msra.mxu0 0.0
      %443 = vmatprep.subr.mxu0 0.0
      %444 = vmatpush1.msra.mxu0 0.0
      %445 = vmatprep.subr.mxu0 0.0
      %446 = vmatpush1.msra.mxu0 0.0
      %447 = vmatprep.subr.mxu0 0.0
      %448 = vmatpush1.msra.mxu0 0.0
      %449 = vmatprep.subr.mxu0 0.0
      %450 = vmatpush1.msra.mxu0 0.0
      %451 = vmatprep.subr.mxu0 0.0
      %452 = vmatpush1.msra.mxu0 0.0
      %453 = vmatprep.subr.mxu0 0.0
      %454 = vmatpush1.msra.mxu0 0.0
      %455 = vmatprep.subr.mxu0 0.0
      %456 = vmatpush1.msra.mxu0 0.0
      %457 = vmatprep.subr.mxu0 0.0
      %458 = vmatpush1.msra.mxu0 0.0
      %459 = vmatprep.subr.mxu0 0.0
      %460 = vmatpush1.msra.mxu0 0.0
      %461 = vmatprep.subr.mxu0 0.0
      %462 = vmatpush1.msra.mxu0 0.0
      %463 = vmatprep.subr.mxu0 0.0
      %464 = vmatpush1.msra.mxu0 0.0
      %465 = vmatprep.subr.mxu0 0.0
      %466 = vmatpush1.msra.mxu0 0.0
      %467 = vmatprep.mubr.f32.mxu0 0.0
      %468 = vmatmul.mubr.f32.gmra.mrb[0].mxu0 %v264
      %v469 = vpop.f32.mrb[0].mxu0
      %v470 = vadd.f32 0.0, %v469
      %v471 = vpop.f32.mrb[0].mxu0
      %472 = vmatprep.mubr.f32.mxu0 0.0
      %473 = vmatmul.mubr.f32.gmra.mrb[0].mxu0 %v267
      %v474 = vpop.f32.mrb[0].mxu0
      %v475 = vadd.f32 0.0, %v474
      %v476 = vpop.f32.mrb[0].mxu0
      %477 = vmatprep.mubr.f32.mxu0 0.0
      %478 = vmatmul.mubr.f32.gmra.mrb[0].mxu0 %v270
      %v479 = vpop.f32.mrb[0].mxu0
      %v480 = vadd.f32 0.0, %v479
      %v481 = vpop.f32.mrb[0].mxu0
      %482 = vmatprep.mubr.f32.mxu0 0.0
      %483 = vmatmul.mubr.f32.gmra.mrb[0].mxu0 %v273
      %v484 = vpop.f32.mrb[0].mxu0
      %v485 = vadd.f32 0.0, %v484
      %v486 = vpop.f32.mrb[0].mxu0
      %487 = vmatprep.mubr.f32.mxu0 0.0
      %488 = vmatmul.mubr.f32.gmra.mrb[0].mxu0 %v276
      %v489 = vpop.f32.mrb[0].mxu0
      %v490 = vadd.f32 0.0, %v489
      %v491 = vpop.f32.mrb[0].mxu0
      %492 = vmatprep.mubr.f32.mxu0 0.0
      %493 = vmatmul.mubr.f32.gmra.mrb[0].mxu0 %v279
      %v494 = vpop.f32.mrb[0].mxu0
      %v495 = vadd.f32 0.0, %v494
      %v496 = vpop.f32.mrb[0].mxu0
      %497 = vmatprep.mubr.f32.mxu0 0.0
      %498 = vmatmul.mubr.f32.gmra.mrb[0].mxu0 %v282
      %v499 = vpop.f32.mrb[0].mxu0
      %v500 = vadd.f32 0.0, %v499
      %v501 = vpop.f32.mrb[0].mxu0
      %502 = vmatprep.mubr.f32.mxu0 0.0
      %503 = vmatmul.mubr.f32.gmra.mrb[0].mxu0 %v285
      %v504 = vpop.f32.mrb[0].mxu0
      %v505 = vadd.f32 0.0, %v504
      %v506 = vpop.f32.mrb[0].mxu0
      %507 = vdwg.mxu0
      %s508 = scalar_lea.vmem %s1, 64
      %v509 = vld [vmem:[%s508] sm:$0xff]
      %v510 = vld [vmem:[%s508 + $0x8] sm:$0xff]
      %v511 = vld [vmem:[%s508 + $0x10] sm:$0xff]
      %v512 = vld [vmem:[%s508 + $0x18] sm:$0xff]
      %v513 = vld [vmem:[%s508 + $0x20] sm:$0xff]
      %v514 = vld [vmem:[%s508 + $0x28] sm:$0xff]
      %v515 = vld [vmem:[%s508 + $0x30] sm:$0xff]
      %v516 = vld [vmem:[%s508 + $0x38] sm:$0xff]
      %vm517 = vcmask 523264
      %v519 = vsel %vm517, %v509, 0
      %v522 = vsel %vm517, %v510, 0
      %v525 = vsel %vm517, %v511, 0
      %v528 = vsel %vm517, %v512, 0
      %v531 = vsel %vm517, %v513, 0
      %v534 = vsel %vm517, %v514, 0
      %v537 = vsel %vm517, %v515, 0
      %v540 = vsel %vm517, %v516, 0
      %542 = vmatprep.subr.mxu0 0.0
      %543 = vmatpush1.msra.mxu0 %v470
      %544 = vmatprep.subr.mxu0 0.0
      %545 = vmatpush1.msra.mxu0 %v475
      %546 = vmatprep.subr.mxu0 0.0
      %547 = vmatpush1.msra.mxu0 %v480
      %548 = vmatprep.subr.mxu0 0.0
      %549 = vmatpush1.msra.mxu0 %v485
      %550 = vmatprep.subr.mxu0 0.0
      %551 = vmatpush1.msra.mxu0 %v490
      %552 = vmatprep.subr.mxu0 0.0
      %553 = vmatpush1.msra.mxu0 %v495
      %554 = vmatprep.subr.mxu0 0.0
      %555 = vmatpush1.msra.mxu0 %v500
      %556 = vmatprep.subr.mxu0 0.0
      %557 = vmatpush1.msra.mxu0 %v505
      %558 = vmatprep.subr.mxu0 0.0
      %559 = vmatpush1.msra.mxu0 0.0
      %560 = vmatprep.subr.mxu0 0.0
      %561 = vmatpush1.msra.mxu0 0.0
      %562 = vmatprep.subr.mxu0 0.0
      %563 = vmatpush1.msra.mxu0 0.0
      %564 = vmatprep.subr.mxu0 0.0
      %565 = vmatpush1.msra.mxu0 0.0
      %566 = vmatprep.subr.mxu0 0.0
      %567 = vmatpush1.msra.mxu0 0.0
      %568 = vmatprep.subr.mxu0 0.0
      %569 = vmatpush1.msra.mxu0 0.0
      %570 = vmatprep.subr.mxu0 0.0
      %571 = vmatpush1.msra.mxu0 0.0
      %572 = vmatprep.subr.mxu0 0.0
      %573 = vmatpush1.msra.mxu0 0.0
      %574 = vmatprep.subr.mxu0 0.0
      %575 = vmatpush1.msra.mxu0 0.0
      %576 = vmatprep.subr.mxu0 0.0
      %577 = vmatpush1.msra.mxu0 0.0
      %578 = vmatprep.subr.mxu0 0.0
      %579 = vmatpush1.msra.mxu0 0.0
      %580 = vmatprep.subr.mxu0 0.0
      %581 = vmatpush1.msra.mxu0 0.0
      %582 = vmatprep.subr.mxu0 0.0
      %583 = vmatpush1.msra.mxu0 0.0
      %584 = vmatprep.subr.mxu0 0.0
      %585 = vmatpush1.msra.mxu0 0.0
      %586 = vmatprep.subr.mxu0 0.0
      %587 = vmatpush1.msra.mxu0 0.0
      %588 = vmatprep.subr.mxu0 0.0
      %589 = vmatpush1.msra.mxu0 0.0
      %590 = vmatprep.subr.mxu0 0.0
      %591 = vmatpush1.msra.mxu0 0.0
      %592 = vmatprep.subr.mxu0 0.0
      %593 = vmatpush1.msra.mxu0 0.0
      %594 = vmatprep.subr.mxu0 0.0
      %595 = vmatpush1.msra.mxu0 0.0
      %596 = vmatprep.subr.mxu0 0.0
      %597 = vmatpush1.msra.mxu0 0.0
      %598 = vmatprep.subr.mxu0 0.0
      %599 = vmatpush1.msra.mxu0 0.0
      %600 = vmatprep.subr.mxu0 0.0
      %601 = vmatpush1.msra.mxu0 0.0
      %602 = vmatprep.subr.mxu0 0.0
      %603 = vmatpush1.msra.mxu0 0.0
      %604 = vmatprep.subr.mxu0 0.0
      %605 = vmatpush1.msra.mxu0 0.0
      %606 = vmatprep.mubr.f32.mxu0 0.0
      %607 = vmatmul.mubr.f32.gmra.mrb[0].mxu0 %v519
      %v608 = vpop.f32.mrb[0].mxu0
      %v609 = vadd.f32 0.0, %v608
      %v610 = vpop.f32.mrb[0].mxu0
      %611 = vmatprep.mubr.f32.mxu0 0.0
      %612 = vmatmul.mubr.f32.gmra.mrb[0].mxu0 %v522
      %v613 = vpop.f32.mrb[0].mxu0
      %v614 = vadd.f32 0.0, %v613
      %v615 = vpop.f32.mrb[0].mxu0
      %616 = vmatprep.mubr.f32.mxu0 0.0
      %617 = vmatmul.mubr.f32.gmra.mrb[0].mxu0 %v525
      %v618 = vpop.f32.mrb[0].mxu0
      %v619 = vadd.f32 0.0, %v618
      %v620 = vpop.f32.mrb[0].mxu0
      %621 = vmatprep.mubr.f32.mxu0 0.0
      %622 = vmatmul.mubr.f32.gmra.mrb[0].mxu0 %v528
      %v623 = vpop.f32.mrb[0].mxu0
      %v624 = vadd.f32 0.0, %v623
      %v625 = vpop.f32.mrb[0].mxu0
      %626 = vmatprep.mubr.f32.mxu0 0.0
      %627 = vmatmul.mubr.f32.gmra.mrb[0].mxu0 %v531
      %v628 = vpop.f32.mrb[0].mxu0
      %v629 = vadd.f32 0.0, %v628
      %v630 = vpop.f32.mrb[0].mxu0
      %631 = vmatprep.mubr.f32.mxu0 0.0
      %632 = vmatmul.mubr.f32.gmra.mrb[0].mxu0 %v534
      %v633 = vpop.f32.mrb[0].mxu0
      %v634 = vadd.f32 0.0, %v633
      %v635 = vpop.f32.mrb[0].mxu0
      %636 = vmatprep.mubr.f32.mxu0 0.0
      %637 = vmatmul.mubr.f32.gmra.mrb[0].mxu0 %v537
      %v638 = vpop.f32.mrb[0].mxu0
      %v639 = vadd.f32 0.0, %v638
      %v640 = vpop.f32.mrb[0].mxu0
      %641 = vmatprep.mubr.f32.mxu0 0.0
      %642 = vmatmul.mubr.f32.gmra.mrb[0].mxu0 %v540
      %v643 = vpop.f32.mrb[0].mxu0
      %v644 = vadd.f32 0.0, %v643
      %v645 = vpop.f32.mrb[0].mxu0
      %646 = vdwg.mxu0
      %v648 = vsel %vm517, %v392, 0
      %v651 = vsel %vm517, %v393, 0
      %v654 = vsel %vm517, %v394, 0
      %v657 = vsel %vm517, %v395, 0
      %v660 = vsel %vm517, %v396, 0
      %v663 = vsel %vm517, %v397, 0
      %v666 = vsel %vm517, %v398, 0
      %v669 = vsel %vm517, %v399, 0
      %671 = vmatprep.subr.mxu0 0.0
      %672 = vmatpush1.msra.mxu0 %v354
      %673 = vmatprep.subr.mxu0 0.0
      %674 = vmatpush1.msra.mxu0 %v359
      %675 = vmatprep.subr.mxu0 0.0
      %676 = vmatpush1.msra.mxu0 %v364
      %677 = vmatprep.subr.mxu0 0.0
      %678 = vmatpush1.msra.mxu0 %v369
      %679 = vmatprep.subr.mxu0 0.0
      %680 = vmatpush1.msra.mxu0 %v374
      %681 = vmatprep.subr.mxu0 0.0
      %682 = vmatpush1.msra.mxu0 %v379
      %683 = vmatprep.subr.mxu0 0.0
      %684 = vmatpush1.msra.mxu0 %v384
      %685 = vmatprep.subr.mxu0 0.0
      %686 = vmatpush1.msra.mxu0 %v389
      %687 = vmatprep.subr.mxu0 0.0
      %688 = vmatpush1.msra.mxu0 0.0
      %689 = vmatprep.subr.mxu0 0.0
      %690 = vmatpush1.msra.mxu0 0.0
      %691 = vmatprep.subr.mxu0 0.0
      %692 = vmatpush1.msra.mxu0 0.0
      %693 = vmatprep.subr.mxu0 0.0
      %694 = vmatpush1.msra.mxu0 0.0
      %695 = vmatprep.subr.mxu0 0.0
      %696 = vmatpush1.msra.mxu0 0.0
      %697 = vmatprep.subr.mxu0 0.0
      %698 = vmatpush1.msra.mxu0 0.0
      %699 = vmatprep.subr.mxu0 0.0
      %700 = vmatpush1.msra.mxu0 0.0
      %701 = vmatprep.subr.mxu0 0.0
      %702 = vmatpush1.msra.mxu0 0.0
      %703 = vmatprep.subr.mxu0 0.0
      %704 = vmatpush1.msra.mxu0 0.0
      %705 = vmatprep.subr.mxu0 0.0
      %706 = vmatpush1.msra.mxu0 0.0
      %707 = vmatprep.subr.mxu0 0.0
      %708 = vmatpush1.msra.mxu0 0.0
      %709 = vmatprep.subr.mxu0 0.0
      %710 = vmatpush1.msra.mxu0 0.0
      %711 = vmatprep.subr.mxu0 0.0
      %712 = vmatpush1.msra.mxu0 0.0
      %713 = vmatprep.subr.mxu0 0.0
      %714 = vmatpush1.msra.mxu0 0.0
      %715 = vmatprep.subr.mxu0 0.0
      %716 = vmatpush1.msra.mxu0 0.0
      %717 = vmatprep.subr.mxu0 0.0
      %718 = vmatpush1.msra.mxu0 0.0
      %719 = vmatprep.subr.mxu0 0.0
      %720 = vmatpush1.msra.mxu0 0.0
      %721 = vmatprep.subr.mxu0 0.0
      %722 = vmatpush1.msra.mxu0 0.0
      %723 = vmatprep.subr.mxu0 0.0
      %724 = vmatpush1.msra.mxu0 0.0
      %725 = vmatprep.subr.mxu0 0.0
      %726 = vmatpush1.msra.mxu0 0.0
      %727 = vmatprep.subr.mxu0 0.0
      %728 = vmatpush1.msra.mxu0 0.0
      %729 = vmatprep.subr.mxu0 0.0
      %730 = vmatpush1.msra.mxu0 0.0
      %731 = vmatprep.subr.mxu0 0.0
      %732 = vmatpush1.msra.mxu0 0.0
      %733 = vmatprep.subr.mxu0 0.0
      %734 = vmatpush1.msra.mxu0 0.0
      %735 = vmatprep.mubr.f32.mxu0 0.0
      %736 = vmatmul.mubr.f32.gmra.mrb[0].mxu0 %v648
      %v737 = vpop.f32.mrb[0].mxu0
      %v738 = vadd.f32 %v609, %v737
      %v739 = vpop.f32.mrb[0].mxu0
      %740 = vmatprep.mubr.f32.mxu0 0.0
      %741 = vmatmul.mubr.f32.gmra.mrb[0].mxu0 %v651
      %v742 = vpop.f32.mrb[0].mxu0
      %v743 = vadd.f32 %v614, %v742
      %v744 = vpop.f32.mrb[0].mxu0
      %745 = vmatprep.mubr.f32.mxu0 0.0
      %746 = vmatmul.mubr.f32.gmra.mrb[0].mxu0 %v654
      %v747 = vpop.f32.mrb[0].mxu0
      %v748 = vadd.f32 %v619, %v747
      %v749 = vpop.f32.mrb[0].mxu0
      %750 = vmatprep.mubr.f32.mxu0 0.0
      %751 = vmatmul.mubr.f32.gmra.mrb[0].mxu0 %v657
      %v752 = vpop.f32.mrb[0].mxu0
      %v753 = vadd.f32 %v624, %v752
      %v754 = vpop.f32.mrb[0].mxu0
      %755 = vmatprep.mubr.f32.mxu0 0.0
      %756 = vmatmul.mubr.f32.gmra.mrb[0].mxu0 %v660
      %v757 = vpop.f32.mrb[0].mxu0
      %v758 = vadd.f32 %v629, %v757
      %v759 = vpop.f32.mrb[0].mxu0
      %760 = vmatprep.mubr.f32.mxu0 0.0
      %761 = vmatmul.mubr.f32.gmra.mrb[0].mxu0 %v663
      %v762 = vpop.f32.mrb[0].mxu0
      %v763 = vadd.f32 %v634, %v762
      %v764 = vpop.f32.mrb[0].mxu0
      %765 = vmatprep.mubr.f32.mxu0 0.0
      %766 = vmatmul.mubr.f32.gmra.mrb[0].mxu0 %v666
      %v767 = vpop.f32.mrb[0].mxu0
      %v768 = vadd.f32 %v639, %v767
      %v769 = vpop.f32.mrb[0].mxu0
      %770 = vmatprep.mubr.f32.mxu0 0.0
      %771 = vmatmul.mubr.f32.gmra.mrb[0].mxu0 %v669
      %v772 = vpop.f32.mrb[0].mxu0
      %v773 = vadd.f32 %v644, %v772
      %v774 = vpop.f32.mrb[0].mxu0
      %775 = vdwg.mxu0
      %s776 = scalar_lea.vmem %s2, 32
      %v777 = vld [vmem:[%s776] sm:$0xff]
      %v778 = vld [vmem:[%s776 + $0x8] sm:$0xff]
      %779 = vmatprep.subr.mxu0 0.0
      %780 = vmatpush1.msra.mxu0 %v777
      %781 = vmatprep.subr.mxu0 0.0
      %782 = vmatpush1.msra.mxu0 %v778
      %783 = vmatprep.subr.mxu0 0.0
      %784 = vmatpush1.msra.mxu0 0.0
      %785 = vmatprep.subr.mxu0 0.0
      %786 = vmatpush1.msra.mxu0 0.0
      %787 = vmatprep.subr.mxu0 0.0
      %788 = vmatpush1.msra.mxu0 0.0
      %789 = vmatprep.subr.mxu0 0.0
      %790 = vmatpush1.msra.mxu0 0.0
      %791 = vmatprep.subr.mxu0 0.0
      %792 = vmatpush1.msra.mxu0 0.0
      %793 = vmatprep.subr.mxu0 0.0
      %794 = vmatpush1.msra.mxu0 0.0
      %795 = vmatprep.subr.mxu0 0.0
      %796 = vmatpush1.msra.mxu0 0.0
      %797 = vmatprep.subr.mxu0 0.0
      %798 = vmatpush1.msra.mxu0 0.0
      %799 = vmatprep.subr.mxu0 0.0
      %800 = vmatpush1.msra.mxu0 0.0
      %801 = vmatprep.subr.mxu0 0.0
      %802 = vmatpush1.msra.mxu0 0.0
      %803 = vmatprep.subr.mxu0 0.0
      %804 = vmatpush1.msra.mxu0 0.0
      %805 = vmatprep.subr.mxu0 0.0
      %806 = vmatpush1.msra.mxu0 0.0
      %807 = vmatprep.subr.mxu0 0.0
      %808 = vmatpush1.msra.mxu0 0.0
      %809 = vmatprep.subr.mxu0 0.0
      %810 = vmatpush1.msra.mxu0 0.0
      %811 = vmatprep.subr.mxu0 0.0
      %812 = vmatpush1.msra.mxu0 0.0
      %813 = vmatprep.subr.mxu0 0.0
      %814 = vmatpush1.msra.mxu0 0.0
      %815 = vmatprep.subr.mxu0 0.0
      %816 = vmatpush1.msra.mxu0 0.0
      %817 = vmatprep.subr.mxu0 0.0
      %818 = vmatpush1.msra.mxu0 0.0
      %819 = vmatprep.subr.mxu0 0.0
      %820 = vmatpush1.msra.mxu0 0.0
      %821 = vmatprep.subr.mxu0 0.0
      %822 = vmatpush1.msra.mxu0 0.0
      %823 = vmatprep.subr.mxu0 0.0
      %824 = vmatpush1.msra.mxu0 0.0
      %825 = vmatprep.subr.mxu0 0.0
      %826 = vmatpush1.msra.mxu0 0.0
      %827 = vmatprep.subr.mxu0 0.0
      %828 = vmatpush1.msra.mxu0 0.0
      %829 = vmatprep.subr.mxu0 0.0
      %830 = vmatpush1.msra.mxu0 0.0
      %831 = vmatprep.subr.mxu0 0.0
      %832 = vmatpush1.msra.mxu0 0.0
      %833 = vmatprep.subr.mxu0 0.0
      %834 = vmatpush1.msra.mxu0 0.0
      %835 = vmatprep.subr.mxu0 0.0
      %836 = vmatpush1.msra.mxu0 0.0
      %837 = vmatprep.subr.mxu0 0.0
      %838 = vmatpush1.msra.mxu0 0.0
      %839 = vmatprep.subr.mxu0 0.0
      %840 = vmatpush1.msra.mxu0 0.0
      %841 = vmatprep.subr.mxu0 0.0
      %842 = vmatpush1.msra.mxu0 0.0
      %843 = vmatprep.mubr.f32.mxu0 0.0
      %844 = vmatmul.mubr.f32.gmra.mrb[0].mxu0 %v264
      %v845 = vpop.f32.mrb[0].mxu0
      %v846 = vadd.f32 0.0, %v845
      %v847 = vpop.f32.mrb[0].mxu0
      %848 = vmatprep.mubr.f32.mxu0 0.0
      %849 = vmatmul.mubr.f32.gmra.mrb[0].mxu0 %v267
      %v850 = vpop.f32.mrb[0].mxu0
      %v851 = vadd.f32 0.0, %v850
      %v852 = vpop.f32.mrb[0].mxu0
      %853 = vmatprep.mubr.f32.mxu0 0.0
      %854 = vmatmul.mubr.f32.gmra.mrb[0].mxu0 %v270
      %v855 = vpop.f32.mrb[0].mxu0
      %v856 = vadd.f32 0.0, %v855
      %v857 = vpop.f32.mrb[0].mxu0
      %858 = vmatprep.mubr.f32.mxu0 0.0
      %859 = vmatmul.mubr.f32.gmra.mrb[0].mxu0 %v273
      %v860 = vpop.f32.mrb[0].mxu0
      %v861 = vadd.f32 0.0, %v860
      %v862 = vpop.f32.mrb[0].mxu0
      %863 = vmatprep.mubr.f32.mxu0 0.0
      %864 = vmatmul.mubr.f32.gmra.mrb[0].mxu0 %v276
      %v865 = vpop.f32.mrb[0].mxu0
      %v866 = vadd.f32 0.0, %v865
      %v867 = vpop.f32.mrb[0].mxu0
      %868 = vmatprep.mubr.f32.mxu0 0.0
      %869 = vmatmul.mubr.f32.gmra.mrb[0].mxu0 %v279
      %v870 = vpop.f32.mrb[0].mxu0
      %v871 = vadd.f32 0.0, %v870
      %v872 = vpop.f32.mrb[0].mxu0
      %873 = vmatprep.mubr.f32.mxu0 0.0
      %874 = vmatmul.mubr.f32.gmra.mrb[0].mxu0 %v282
      %v875 = vpop.f32.mrb[0].mxu0
      %v876 = vadd.f32 0.0, %v875
      %v877 = vpop.f32.mrb[0].mxu0
      %878 = vmatprep.mubr.f32.mxu0 0.0
      %879 = vmatmul.mubr.f32.gmra.mrb[0].mxu0 %v285
      %v880 = vpop.f32.mrb[0].mxu0
      %v881 = vadd.f32 0.0, %v880
      %v882 = vpop.f32.mrb[0].mxu0
      %883 = vdwg.mxu0
      %s884 = scalar_lea.vmem %s1, 128
      %v885 = vld [vmem:[%s884] sm:$0xff]
      %v886 = vld [vmem:[%s884 + $0x8] sm:$0xff]
      %v887 = vld [vmem:[%s884 + $0x10] sm:$0xff]
      %v888 = vld [vmem:[%s884 + $0x18] sm:$0xff]
      %v889 = vld [vmem:[%s884 + $0x20] sm:$0xff]
      %v890 = vld [vmem:[%s884 + $0x28] sm:$0xff]
      %v891 = vld [vmem:[%s884 + $0x30] sm:$0xff]
      %v892 = vld [vmem:[%s884 + $0x38] sm:$0xff]
      %v894 = vsel %vm517, %v885, 0
      %v897 = vsel %vm517, %v886, 0
      %v900 = vsel %vm517, %v887, 0
      %v903 = vsel %vm517, %v888, 0
      %v906 = vsel %vm517, %v889, 0
      %v909 = vsel %vm517, %v890, 0
      %v912 = vsel %vm517, %v891, 0
      %v915 = vsel %vm517, %v892, 0
      %917 = vmatprep.subr.mxu0 0.0
      %918 = vmatpush1.msra.mxu0 %v846
      %919 = vmatprep.subr.mxu0 0.0
      %920 = vmatpush1.msra.mxu0 %v851
      %921 = vmatprep.subr.mxu0 0.0
      %922 = vmatpush1.msra.mxu0 %v856
      %923 = vmatprep.subr.mxu0 0.0
      %924 = vmatpush1.msra.mxu0 %v861
      %925 = vmatprep.subr.mxu0 0.0
      %926 = vmatpush1.msra.mxu0 %v866
      %927 = vmatprep.subr.mxu0 0.0
      %928 = vmatpush1.msra.mxu0 %v871
      %929 = vmatprep.subr.mxu0 0.0
      %930 = vmatpush1.msra.mxu0 %v876
      %931 = vmatprep.subr.mxu0 0.0
      %932 = vmatpush1.msra.mxu0 %v881
      %933 = vmatprep.subr.mxu0 0.0
      %934 = vmatpush1.msra.mxu0 0.0
      %935 = vmatprep.subr.mxu0 0.0
      %936 = vmatpush1.msra.mxu0 0.0
      %937 = vmatprep.subr.mxu0 0.0
      %938 = vmatpush1.msra.mxu0 0.0
      %939 = vmatprep.subr.mxu0 0.0
      %940 = vmatpush1.msra.mxu0 0.0
      %941 = vmatprep.subr.mxu0 0.0
      %942 = vmatpush1.msra.mxu0 0.0
      %943 = vmatprep.subr.mxu0 0.0
      %944 = vmatpush1.msra.mxu0 0.0
      %945 = vmatprep.subr.mxu0 0.0
      %946 = vmatpush1.msra.mxu0 0.0
      %947 = vmatprep.subr.mxu0 0.0
      %948 = vmatpush1.msra.mxu0 0.0
      %949 = vmatprep.subr.mxu0 0.0
      %950 = vmatpush1.msra.mxu0 0.0
      %951 = vmatprep.subr.mxu0 0.0
      %952 = vmatpush1.msra.mxu0 0.0
      %953 = vmatprep.subr.mxu0 0.0
      %954 = vmatpush1.msra.mxu0 0.0
      %955 = vmatprep.subr.mxu0 0.0
      %956 = vmatpush1.msra.mxu0 0.0
      %957 = vmatprep.subr.mxu0 0.0
      %958 = vmatpush1.msra.mxu0 0.0
      %959 = vmatprep.subr.mxu0 0.0
      %960 = vmatpush1.msra.mxu0 0.0
      %961 = vmatprep.subr.mxu0 0.0
      %962 = vmatpush1.msra.mxu0 0.0
      %963 = vmatprep.subr.mxu0 0.0
      %964 = vmatpush1.msra.mxu0 0.0
      %965 = vmatprep.subr.mxu0 0.0
      %966 = vmatpush1.msra.mxu0 0.0
      %967 = vmatprep.subr.mxu0 0.0
      %968 = vmatpush1.msra.mxu0 0.0
      %969 = vmatprep.subr.mxu0 0.0
      %970 = vmatpush1.msra.mxu0 0.0
      %971 = vmatprep.subr.mxu0 0.0
      %972 = vmatpush1.msra.mxu0 0.0
      %973 = vmatprep.subr.mxu0 0.0
      %974 = vmatpush1.msra.mxu0 0.0
      %975 = vmatprep.subr.mxu0 0.0
      %976 = vmatpush1.msra.mxu0 0.0
      %977 = vmatprep.subr.mxu0 0.0
      %978 = vmatpush1.msra.mxu0 0.0
      %979 = vmatprep.subr.mxu0 0.0
      %980 = vmatpush1.msra.mxu0 0.0
      %981 = vmatprep.mubr.f32.mxu0 0.0
      %982 = vmatmul.mubr.f32.gmra.mrb[0].mxu0 %v894
      %v983 = vpop.f32.mrb[0].mxu0
      %v984 = vadd.f32 0.0, %v983
      %v985 = vpop.f32.mrb[0].mxu0
      %986 = vmatprep.mubr.f32.mxu0 0.0
      %987 = vmatmul.mubr.f32.gmra.mrb[0].mxu0 %v897
      %v988 = vpop.f32.mrb[0].mxu0
      %v989 = vadd.f32 0.0, %v988
      %v990 = vpop.f32.mrb[0].mxu0
      %991 = vmatprep.mubr.f32.mxu0 0.0
      %992 = vmatmul.mubr.f32.gmra.mrb[0].mxu0 %v900
      %v993 = vpop.f32.mrb[0].mxu0
      %v994 = vadd.f32 0.0, %v993
      %v995 = vpop.f32.mrb[0].mxu0
      %996 = vmatprep.mubr.f32.mxu0 0.0
      %997 = vmatmul.mubr.f32.gmra.mrb[0].mxu0 %v903
      %v998 = vpop.f32.mrb[0].mxu0
      %v999 = vadd.f32 0.0, %v998
      %v1000 = vpop.f32.mrb[0].mxu0
      %1001 = vmatprep.mubr.f32.mxu0 0.0
      %1002 = vmatmul.mubr.f32.gmra.mrb[0].mxu0 %v906
      %v1003 = vpop.f32.mrb[0].mxu0
      %v1004 = vadd.f32 0.0, %v1003
      %v1005 = vpop.f32.mrb[0].mxu0
      %1006 = vmatprep.mubr.f32.mxu0 0.0
      %1007 = vmatmul.mubr.f32.gmra.mrb[0].mxu0 %v909
      %v1008 = vpop.f32.mrb[0].mxu0
      %v1009 = vadd.f32 0.0, %v1008
      %v1010 = vpop.f32.mrb[0].mxu0
      %1011 = vmatprep.mubr.f32.mxu0 0.0
      %1012 = vmatmul.mubr.f32.gmra.mrb[0].mxu0 %v912
      %v1013 = vpop.f32.mrb[0].mxu0
      %v1014 = vadd.f32 0.0, %v1013
      %v1015 = vpop.f32.mrb[0].mxu0
      %1016 = vmatprep.mubr.f32.mxu0 0.0
      %1017 = vmatmul.mubr.f32.gmra.mrb[0].mxu0 %v915
      %v1018 = vpop.f32.mrb[0].mxu0
      %v1019 = vadd.f32 0.0, %v1018
      %v1020 = vpop.f32.mrb[0].mxu0
      %1021 = vdwg.mxu0
      %v1022 = vadd.f32 %v738, %v984
      %v1023 = vadd.f32 %v743, %v989
      %v1024 = vadd.f32 %v748, %v994
      %v1025 = vadd.f32 %v753, %v999
      %v1026 = vadd.f32 %v758, %v1004
      %v1027 = vadd.f32 %v763, %v1009
      %v1028 = vadd.f32 %v768, %v1014
      %v1029 = vadd.f32 %v773, %v1019
      %v1030 = vmax.f32 %v1022, 0.0
      %v1031 = vmax.f32 %v1023, 0.0
      %v1032 = vmax.f32 %v1024, 0.0
      %v1033 = vmax.f32 %v1025, 0.0
      %v1034 = vmax.f32 %v1026, 0.0
      %v1035 = vmax.f32 %v1027, 0.0
      %v1036 = vmax.f32 %v1028, 0.0
      %v1037 = vmax.f32 %v1029, 0.0
      %1038 = vst.msk [vmem:[#allocation2] sm:$0xff] %vm262, 0.0
      %1039 = vst.msk [vmem:[#allocation2 + $0x48] sm:$0xff] %vm262, 0.0
      %1040 = vst.msk [vmem:[#allocation2 + $0x8] sm:$0xff] %vm262, %v1030
      %1041 = vst.msk [vmem:[#allocation2 + $0x10] sm:$0xff] %vm262, %v1031
      %1042 = vst.msk [vmem:[#allocation2 + $0x18] sm:$0xff] %vm262, %v1032
      %1043 = vst.msk [vmem:[#allocation2 + $0x20] sm:$0xff] %vm262, %v1033
      %1044 = vst.msk [vmem:[#allocation2 + $0x28] sm:$0xff] %vm262, %v1034
      %1045 = vst.msk [vmem:[#allocation2 + $0x30] sm:$0xff] %vm262, %v1035
      %1046 = vst.msk [vmem:[#allocation2 + $0x38] sm:$0xff] %vm262, %v1036
      %1047 = vst.msk [vmem:[#allocation2 + $0x40] sm:$0xff] %vm262, %v1037
      %v1048 = vld [vmem:[%s5] sm:$0xf]
      %v1049 = vld [vmem:[#allocation2] sm:$0xff]
      %v1050 = vld [vmem:[#allocation2 + $0x8] sm:$0xff]
      %v1051 = vld [vmem:[#allocation2 + $0x10] sm:$0xff]
      %v1052 = vld [vmem:[#allocation2 + $0x18] sm:$0xff]
      %v1053 = vld [vmem:[#allocation2 + $0x20] sm:$0xff]
      %v1054 = vld [vmem:[#allocation2 + $0x28] sm:$0xff]
      %v1055 = vld [vmem:[#allocation2 + $0x30] sm:$0xff]
      %v1056 = vld [vmem:[#allocation2 + $0x38] sm:$0xff]
      %v1057 = vld [vmem:[%s3] sm:$0xff]
      %v1058 = vld [vmem:[%s3 + $0x8] sm:$0xff]
      %v1059 = vld [vmem:[#allocation2 + $0x40] sm:$0xff]
      %s1060 = scalar_lea.vmem %s3, 16
      %v1061 = vld [vmem:[%s1060] sm:$0xff]
      %v1062 = vld [vmem:[%s1060 + $0x8] sm:$0xff]
      %v1064 = vsel %vm262, %v1050, 0
      %v1067 = vsel %vm262, %v1051, 0
      %v1070 = vsel %vm262, %v1052, 0
      %v1073 = vsel %vm262, %v1053, 0
      %v1076 = vsel %vm262, %v1054, 0
      %v1079 = vsel %vm262, %v1055, 0
      %v1082 = vsel %vm262, %v1056, 0
      %v1085 = vsel %vm262, %v1059, 0
      %1087 = vmatprep.subr.mxu0 0.0
      %1088 = vmatpush1.msra.mxu0 %v1061
      %1089 = vmatprep.subr.mxu0 0.0
      %1090 = vmatpush1.msra.mxu0 %v1062
      %1091 = vmatprep.subr.mxu0 0.0
      %1092 = vmatpush1.msra.mxu0 0.0
      %1093 = vmatprep.subr.mxu0 0.0
      %1094 = vmatpush1.msra.mxu0 0.0
      %1095 = vmatprep.subr.mxu0 0.0
      %1096 = vmatpush1.msra.mxu0 0.0
      %1097 = vmatprep.subr.mxu0 0.0
      %1098 = vmatpush1.msra.mxu0 0.0
      %1099 = vmatprep.subr.mxu0 0.0
      %1100 = vmatpush1.msra.mxu0 0.0
      %1101 = vmatprep.subr.mxu0 0.0
      %1102 = vmatpush1.msra.mxu0 0.0
      %1103 = vmatprep.subr.mxu0 0.0
      %1104 = vmatpush1.msra.mxu0 0.0
      %1105 = vmatprep.subr.mxu0 0.0
      %1106 = vmatpush1.msra.mxu0 0.0
      %1107 = vmatprep.subr.mxu0 0.0
      %1108 = vmatpush1.msra.mxu0 0.0
      %1109 = vmatprep.subr.mxu0 0.0
      %1110 = vmatpush1.msra.mxu0 0.0
      %1111 = vmatprep.subr.mxu0 0.0
      %1112 = vmatpush1.msra.mxu0 0.0
      %1113 = vmatprep.subr.mxu0 0.0
      %1114 = vmatpush1.msra.mxu0 0.0
      %1115 = vmatprep.subr.mxu0 0.0
      %1116 = vmatpush1.msra.mxu0 0.0
      %1117 = vmatprep.subr.mxu0 0.0
      %1118 = vmatpush1.msra.mxu0 0.0
      %1119 = vmatprep.subr.mxu0 0.0
      %1120 = vmatpush1.msra.mxu0 0.0
      %1121 = vmatprep.subr.mxu0 0.0
      %1122 = vmatpush1.msra.mxu0 0.0
      %1123 = vmatprep.subr.mxu0 0.0
      %1124 = vmatpush1.msra.mxu0 0.0
      %1125 = vmatprep.subr.mxu0 0.0
      %1126 = vmatpush1.msra.mxu0 0.0
      %1127 = vmatprep.subr.mxu0 0.0
      %1128 = vmatpush1.msra.mxu0 0.0
      %1129 = vmatprep.subr.mxu0 0.0
      %1130 = vmatpush1.msra.mxu0 0.0
      %1131 = vmatprep.subr.mxu0 0.0
      %1132 = vmatpush1.msra.mxu0 0.0
      %1133 = vmatprep.subr.mxu0 0.0
      %1134 = vmatpush1.msra.mxu0 0.0
      %1135 = vmatprep.subr.mxu0 0.0
      %1136 = vmatpush1.msra.mxu0 0.0
      %1137 = vmatprep.subr.mxu0 0.0
      %1138 = vmatpush1.msra.mxu0 0.0
      %1139 = vmatprep.subr.mxu0 0.0
      %1140 = vmatpush1.msra.mxu0 0.0
      %1141 = vmatprep.subr.mxu0 0.0
      %1142 = vmatpush1.msra.mxu0 0.0
      %1143 = vmatprep.subr.mxu0 0.0
      %1144 = vmatpush1.msra.mxu0 0.0
      %1145 = vmatprep.subr.mxu0 0.0
      %1146 = vmatpush1.msra.mxu0 0.0
      %1147 = vmatprep.subr.mxu0 0.0
      %1148 = vmatpush1.msra.mxu0 0.0
      %1149 = vmatprep.subr.mxu0 0.0
      %1150 = vmatpush1.msra.mxu0 0.0
      %1151 = vmatprep.mubr.f32.mxu0 0.0
      %1152 = vmatmul.mubr.f32.gmra.mrb[0].mxu0 %v1064
      %v1153 = vpop.f32.mrb[0].mxu0
      %v1154 = vadd.f32 0.0, %v1153
      %v1155 = vpop.f32.mrb[0].mxu0
      %1156 = vmatprep.mubr.f32.mxu0 0.0
      %1157 = vmatmul.mubr.f32.gmra.mrb[0].mxu0 %v1067
      %v1158 = vpop.f32.mrb[0].mxu0
      %v1159 = vadd.f32 0.0, %v1158
      %v1160 = vpop.f32.mrb[0].mxu0
      %1161 = vmatprep.mubr.f32.mxu0 0.0
      %1162 = vmatmul.mubr.f32.gmra.mrb[0].mxu0 %v1070
      %v1163 = vpop.f32.mrb[0].mxu0
      %v1164 = vadd.f32 0.0, %v1163
      %v1165 = vpop.f32.mrb[0].mxu0
      %1166 = vmatprep.mubr.f32.mxu0 0.0
      %1167 = vmatmul.mubr.f32.gmra.mrb[0].mxu0 %v1073
      %v1168 = vpop.f32.mrb[0].mxu0
      %v1169 = vadd.f32 0.0, %v1168
      %v1170 = vpop.f32.mrb[0].mxu0
      %1171 = vmatprep.mubr.f32.mxu0 0.0
      %1172 = vmatmul.mubr.f32.gmra.mrb[0].mxu0 %v1076
      %v1173 = vpop.f32.mrb[0].mxu0
      %v1174 = vadd.f32 0.0, %v1173
      %v1175 = vpop.f32.mrb[0].mxu0
      %1176 = vmatprep.mubr.f32.mxu0 0.0
      %1177 = vmatmul.mubr.f32.gmra.mrb[0].mxu0 %v1079
      %v1178 = vpop.f32.mrb[0].mxu0
      %v1179 = vadd.f32 0.0, %v1178
      %v1180 = vpop.f32.mrb[0].mxu0
      %1181 = vmatprep.mubr.f32.mxu0 0.0
      %1182 = vmatmul.mubr.f32.gmra.mrb[0].mxu0 %v1082
      %v1183 = vpop.f32.mrb[0].mxu0
      %v1184 = vadd.f32 0.0, %v1183
      %v1185 = vpop.f32.mrb[0].mxu0
      %1186 = vmatprep.mubr.f32.mxu0 0.0
      %1187 = vmatmul.mubr.f32.gmra.mrb[0].mxu0 %v1085
      %v1188 = vpop.f32.mrb[0].mxu0
      %v1189 = vadd.f32 0.0, %v1188
      %v1190 = vpop.f32.mrb[0].mxu0
      %1191 = vdwg.mxu0
      %v1193 = vsel %vm262, %v1049, 0
      %1195 = vmatprep.subr.mxu0 0.0
      %1196 = vmatpush1.msra.mxu0 %v1057
      %1197 = vmatprep.subr.mxu0 0.0
      %1198 = vmatpush1.msra.mxu0 %v1058
      %1199 = vmatprep.subr.mxu0 0.0
      %1200 = vmatpush1.msra.mxu0 0.0
      %1201 = vmatprep.subr.mxu0 0.0
      %1202 = vmatpush1.msra.mxu0 0.0
      %1203 = vmatprep.subr.mxu0 0.0
      %1204 = vmatpush1.msra.mxu0 0.0
      %1205 = vmatprep.subr.mxu0 0.0
      %1206 = vmatpush1.msra.mxu0 0.0
      %1207 = vmatprep.subr.mxu0 0.0
      %1208 = vmatpush1.msra.mxu0 0.0
      %1209 = vmatprep.subr.mxu0 0.0
      %1210 = vmatpush1.msra.mxu0 0.0
      %1211 = vmatprep.subr.mxu0 0.0
      %1212 = vmatpush1.msra.mxu0 0.0
      %1213 = vmatprep.subr.mxu0 0.0
      %1214 = vmatpush1.msra.mxu0 0.0
      %1215 = vmatprep.subr.mxu0 0.0
      %1216 = vmatpush1.msra.mxu0 0.0
      %1217 = vmatprep.subr.mxu0 0.0
      %1218 = vmatpush1.msra.mxu0 0.0
      %1219 = vmatprep.subr.mxu0 0.0
      %1220 = vmatpush1.msra.mxu0 0.0
      %1221 = vmatprep.subr.mxu0 0.0
      %1222 = vmatpush1.msra.mxu0 0.0
      %1223 = vmatprep.subr.mxu0 0.0
      %1224 = vmatpush1.msra.mxu0 0.0
      %1225 = vmatprep.subr.mxu0 0.0
      %1226 = vmatpush1.msra.mxu0 0.0
      %1227 = vmatprep.subr.mxu0 0.0
      %1228 = vmatpush1.msra.mxu0 0.0
      %1229 = vmatprep.subr.mxu0 0.0
      %1230 = vmatpush1.msra.mxu0 0.0
      %1231 = vmatprep.subr.mxu0 0.0
      %1232 = vmatpush1.msra.mxu0 0.0
      %1233 = vmatprep.subr.mxu0 0.0
      %1234 = vmatpush1.msra.mxu0 0.0
      %1235 = vmatprep.subr.mxu0 0.0
      %1236 = vmatpush1.msra.mxu0 0.0
      %1237 = vmatprep.subr.mxu0 0.0
      %1238 = vmatpush1.msra.mxu0 0.0
      %1239 = vmatprep.subr.mxu0 0.0
      %1240 = vmatpush1.msra.mxu0 0.0
      %1241 = vmatprep.subr.mxu0 0.0
      %1242 = vmatpush1.msra.mxu0 0.0
      %1243 = vmatprep.subr.mxu0 0.0
      %1244 = vmatpush1.msra.mxu0 0.0
      %1245 = vmatprep.subr.mxu0 0.0
      %1246 = vmatpush1.msra.mxu0 0.0
      %1247 = vmatprep.subr.mxu0 0.0
      %1248 = vmatpush1.msra.mxu0 0.0
      %1249 = vmatprep.subr.mxu0 0.0
      %1250 = vmatpush1.msra.mxu0 0.0
      %1251 = vmatprep.subr.mxu0 0.0
      %1252 = vmatpush1.msra.mxu0 0.0
      %1253 = vmatprep.subr.mxu0 0.0
      %1254 = vmatpush1.msra.mxu0 0.0
      %1255 = vmatprep.subr.mxu0 0.0
      %1256 = vmatpush1.msra.mxu0 0.0
      %1257 = vmatprep.subr.mxu0 0.0
      %1258 = vmatpush1.msra.mxu0 0.0
      %1259 = vmatprep.mubr.f32.mxu0 0.0
      %1260 = vmatmul.mubr.f32.gmra.mrb[0].mxu0 %v1193
      %v1261 = vpop.f32.mrb[0].mxu0
      %v1262 = vadd.f32 %v1154, %v1261
      %v1263 = vpop.f32.mrb[0].mxu0
      %1264 = vmatprep.mubr.f32.mxu0 0.0
      %1265 = vmatmul.mubr.f32.gmra.mrb[0].mxu0 %v1064
      %v1266 = vpop.f32.mrb[0].mxu0
      %v1267 = vadd.f32 %v1159, %v1266
      %v1268 = vpop.f32.mrb[0].mxu0
      %1269 = vmatprep.mubr.f32.mxu0 0.0
      %1270 = vmatmul.mubr.f32.gmra.mrb[0].mxu0 %v1067
      %v1271 = vpop.f32.mrb[0].mxu0
      %v1272 = vadd.f32 %v1164, %v1271
      %v1273 = vpop.f32.mrb[0].mxu0
      %1274 = vmatprep.mubr.f32.mxu0 0.0
      %1275 = vmatmul.mubr.f32.gmra.mrb[0].mxu0 %v1070
      %v1276 = vpop.f32.mrb[0].mxu0
      %v1277 = vadd.f32 %v1169, %v1276
      %v1278 = vpop.f32.mrb[0].mxu0
      %1279 = vmatprep.mubr.f32.mxu0 0.0
      %1280 = vmatmul.mubr.f32.gmra.mrb[0].mxu0 %v1073
      %v1281 = vpop.f32.mrb[0].mxu0
      %v1282 = vadd.f32 %v1174, %v1281
      %v1283 = vpop.f32.mrb[0].mxu0
      %1284 = vmatprep.mubr.f32.mxu0 0.0
      %1285 = vmatmul.mubr.f32.gmra.mrb[0].mxu0 %v1076
      %v1286 = vpop.f32.mrb[0].mxu0
      %v1287 = vadd.f32 %v1179, %v1286
      %v1288 = vpop.f32.mrb[0].mxu0
      %1289 = vmatprep.mubr.f32.mxu0 0.0
      %1290 = vmatmul.mubr.f32.gmra.mrb[0].mxu0 %v1079
      %v1291 = vpop.f32.mrb[0].mxu0
      %v1292 = vadd.f32 %v1184, %v1291
      %v1293 = vpop.f32.mrb[0].mxu0
      %1294 = vmatprep.mubr.f32.mxu0 0.0
      %1295 = vmatmul.mubr.f32.gmra.mrb[0].mxu0 %v1082
      %v1296 = vpop.f32.mrb[0].mxu0
      %v1297 = vadd.f32 %v1189, %v1296
      %v1298 = vpop.f32.mrb[0].mxu0
      %1299 = vdwg.mxu0
      %v1300 = vld [vmem:[#allocation2 + $0x10] sm:$0xff]
      %v1301 = vld [vmem:[#allocation2 + $0x18] sm:$0xff]
      %v1302 = vld [vmem:[#allocation2 + $0x20] sm:$0xff]
      %v1303 = vld [vmem:[#allocation2 + $0x28] sm:$0xff]
      %v1304 = vld [vmem:[#allocation2 + $0x30] sm:$0xff]
      %v1305 = vld [vmem:[#allocation2 + $0x38] sm:$0xff]
      %v1306 = vld [vmem:[#allocation2 + $0x40] sm:$0xff]
      %v1307 = vld [vmem:[#allocation2 + $0x48] sm:$0xff]
      %s1308 = scalar_lea.vmem %s3, 32
      %v1309 = vld [vmem:[%s1308] sm:$0xff]
      %v1310 = vld [vmem:[%s1308 + $0x8] sm:$0xff]
      %v1312 = vsel %vm262, %v1300, 0
      %v1315 = vsel %vm262, %v1301, 0
      %v1318 = vsel %vm262, %v1302, 0
      %v1321 = vsel %vm262, %v1303, 0
      %v1324 = vsel %vm262, %v1304, 0
      %v1327 = vsel %vm262, %v1305, 0
      %v1330 = vsel %vm262, %v1306, 0
      %v1333 = vsel %vm262, %v1307, 0
      %1335 = vmatprep.subr.mxu0 0.0
      %1336 = vmatpush1.msra.mxu0 %v1309
      %1337 = vmatprep.subr.mxu0 0.0
      %1338 = vmatpush1.msra.mxu0 %v1310
      %1339 = vmatprep.subr.mxu0 0.0
      %1340 = vmatpush1.msra.mxu0 0.0
      %1341 = vmatprep.subr.mxu0 0.0
      %1342 = vmatpush1.msra.mxu0 0.0
      %1343 = vmatprep.subr.mxu0 0.0
      %1344 = vmatpush1.msra.mxu0 0.0
      %1345 = vmatprep.subr.mxu0 0.0
      %1346 = vmatpush1.msra.mxu0 0.0
      %1347 = vmatprep.subr.mxu0 0.0
      %1348 = vmatpush1.msra.mxu0 0.0
      %1349 = vmatprep.subr.mxu0 0.0
      %1350 = vmatpush1.msra.mxu0 0.0
      %1351 = vmatprep.subr.mxu0 0.0
      %1352 = vmatpush1.msra.mxu0 0.0
      %1353 = vmatprep.subr.mxu0 0.0
      %1354 = vmatpush1.msra.mxu0 0.0
      %1355 = vmatprep.subr.mxu0 0.0
      %1356 = vmatpush1.msra.mxu0 0.0
      %1357 = vmatprep.subr.mxu0 0.0
      %1358 = vmatpush1.msra.mxu0 0.0
      %1359 = vmatprep.subr.mxu0 0.0
      %1360 = vmatpush1.msra.mxu0 0.0
      %1361 = vmatprep.subr.mxu0 0.0
      %1362 = vmatpush1.msra.mxu0 0.0
      %1363 = vmatprep.subr.mxu0 0.0
      %1364 = vmatpush1.msra.mxu0 0.0
      %1365 = vmatprep.subr.mxu0 0.0
      %1366 = vmatpush1.msra.mxu0 0.0
      %1367 = vmatprep.subr.mxu0 0.0
      %1368 = vmatpush1.msra.mxu0 0.0
      %1369 = vmatprep.subr.mxu0 0.0
      %1370 = vmatpush1.msra.mxu0 0.0
      %1371 = vmatprep.subr.mxu0 0.0
      %1372 = vmatpush1.msra.mxu0 0.0
      %1373 = vmatprep.subr.mxu0 0.0
      %1374 = vmatpush1.msra.mxu0 0.0
      %1375 = vmatprep.subr.mxu0 0.0
      %1376 = vmatpush1.msra.mxu0 0.0
      %1377 = vmatprep.subr.mxu0 0.0
      %1378 = vmatpush1.msra.mxu0 0.0
      %1379 = vmatprep.subr.mxu0 0.0
      %1380 = vmatpush1.msra.mxu0 0.0
      %1381 = vmatprep.subr.mxu0 0.0
      %1382 = vmatpush1.msra.mxu0 0.0
      %1383 = vmatprep.subr.mxu0 0.0
      %1384 = vmatpush1.msra.mxu0 0.0
      %1385 = vmatprep.subr.mxu0 0.0
      %1386 = vmatpush1.msra.mxu0 0.0
      %1387 = vmatprep.subr.mxu0 0.0
      %1388 = vmatpush1.msra.mxu0 0.0
      %1389 = vmatprep.subr.mxu0 0.0
      %1390 = vmatpush1.msra.mxu0 0.0
      %1391 = vmatprep.subr.mxu0 0.0
      %1392 = vmatpush1.msra.mxu0 0.0
      %1393 = vmatprep.subr.mxu0 0.0
      %1394 = vmatpush1.msra.mxu0 0.0
      %1395 = vmatprep.subr.mxu0 0.0
      %1396 = vmatpush1.msra.mxu0 0.0
      %1397 = vmatprep.subr.mxu0 0.0
      %1398 = vmatpush1.msra.mxu0 0.0
      %1399 = vmatprep.mubr.f32.mxu0 0.0
      %1400 = vmatmul.mubr.f32.gmra.mrb[0].mxu0 %v1312
      %v1401 = vpop.f32.mrb[0].mxu0
      %v1402 = vadd.f32 0.0, %v1401
      %v1403 = vpop.f32.mrb[0].mxu0
      %1404 = vmatprep.mubr.f32.mxu0 0.0
      %1405 = vmatmul.mubr.f32.gmra.mrb[0].mxu0 %v1315
      %v1406 = vpop.f32.mrb[0].mxu0
      %v1407 = vadd.f32 0.0, %v1406
      %v1408 = vpop.f32.mrb[0].mxu0
      %1409 = vmatprep.mubr.f32.mxu0 0.0
      %1410 = vmatmul.mubr.f32.gmra.mrb[0].mxu0 %v1318
      %v1411 = vpop.f32.mrb[0].mxu0
      %v1412 = vadd.f32 0.0, %v1411
      %v1413 = vpop.f32.mrb[0].mxu0
      %1414 = vmatprep.mubr.f32.mxu0 0.0
      %1415 = vmatmul.mubr.f32.gmra.mrb[0].mxu0 %v1321
      %v1416 = vpop.f32.mrb[0].mxu0
      %v1417 = vadd.f32 0.0, %v1416
      %v1418 = vpop.f32.mrb[0].mxu0
      %1419 = vmatprep.mubr.f32.mxu0 0.0
      %1420 = vmatmul.mubr.f32.gmra.mrb[0].mxu0 %v1324
      %v1421 = vpop.f32.mrb[0].mxu0
      %v1422 = vadd.f32 0.0, %v1421
      %v1423 = vpop.f32.mrb[0].mxu0
      %1424 = vmatprep.mubr.f32.mxu0 0.0
      %1425 = vmatmul.mubr.f32.gmra.mrb[0].mxu0 %v1327
      %v1426 = vpop.f32.mrb[0].mxu0
      %v1427 = vadd.f32 0.0, %v1426
      %v1428 = vpop.f32.mrb[0].mxu0
      %1429 = vmatprep.mubr.f32.mxu0 0.0
      %1430 = vmatmul.mubr.f32.gmra.mrb[0].mxu0 %v1330
      %v1431 = vpop.f32.mrb[0].mxu0
      %v1432 = vadd.f32 0.0, %v1431
      %v1433 = vpop.f32.mrb[0].mxu0
      %1434 = vmatprep.mubr.f32.mxu0 0.0
      %1435 = vmatmul.mubr.f32.gmra.mrb[0].mxu0 %v1333
      %v1436 = vpop.f32.mrb[0].mxu0
      %v1437 = vadd.f32 0.0, %v1436
      %v1438 = vpop.f32.mrb[0].mxu0
      %1439 = vdwg.mxu0
      %v1440 = vadd.f32 %v1262, %v1402
      %v1441 = vadd.f32 %v1267, %v1407
      %v1442 = vadd.f32 %v1272, %v1412
      %v1443 = vadd.f32 %v1277, %v1417
      %v1444 = vadd.f32 %v1282, %v1422
      %v1445 = vadd.f32 %v1287, %v1427
      %v1446 = vadd.f32 %v1292, %v1432
      %v1447 = vadd.f32 %v1297, %v1437
      %v1448 = vld [vmem:[%s4] sm:$0xff]
      %v1449 = vld [vmem:[%s4 + $0x8] sm:$0xff]
      %1450 = vmatprep.subr.mxu0 0.0
      %1451 = vmatpush1.msra.mxu0 %v1448
      %1452 = vmatprep.subr.mxu0 0.0
      %1453 = vmatpush1.msra.mxu0 %v1449
      %1454 = vmatprep.subr.mxu0 0.0
      %1455 = vmatpush1.msra.mxu0 0.0
      %1456 = vmatprep.subr.mxu0 0.0
      %1457 = vmatpush1.msra.mxu0 0.0
      %1458 = vmatprep.subr.mxu0 0.0
      %1459 = vmatpush1.msra.mxu0 0.0
      %1460 = vmatprep.subr.mxu0 0.0
      %1461 = vmatpush1.msra.mxu0 0.0
      %1462 = vmatprep.subr.mxu0 0.0
      %1463 = vmatpush1.msra.mxu0 0.0
      %1464 = vmatprep.subr.mxu0 0.0
      %1465 = vmatpush1.msra.mxu0 0.0
      %1466 = vmatprep.subr.mxu0 0.0
      %1467 = vmatpush1.msra.mxu0 0.0
      %1468 = vmatprep.subr.mxu0 0.0
      %1469 = vmatpush1.msra.mxu0 0.0
      %1470 = vmatprep.subr.mxu0 0.0
      %1471 = vmatpush1.msra.mxu0 0.0
      %1472 = vmatprep.subr.mxu0 0.0
      %1473 = vmatpush1.msra.mxu0 0.0
      %1474 = vmatprep.subr.mxu0 0.0
      %1475 = vmatpush1.msra.mxu0 0.0
      %1476 = vmatprep.subr.mxu0 0.0
      %1477 = vmatpush1.msra.mxu0 0.0
      %1478 = vmatprep.subr.mxu0 0.0
      %1479 = vmatpush1.msra.mxu0 0.0
      %1480 = vmatprep.subr.mxu0 0.0
      %1481 = vmatpush1.msra.mxu0 0.0
      %1482 = vmatprep.subr.mxu0 0.0
      %1483 = vmatpush1.msra.mxu0 0.0
      %1484 = vmatprep.subr.mxu0 0.0
      %1485 = vmatpush1.msra.mxu0 0.0
      %1486 = vmatprep.subr.mxu0 0.0
      %1487 = vmatpush1.msra.mxu0 0.0
      %1488 = vmatprep.subr.mxu0 0.0
      %1489 = vmatpush1.msra.mxu0 0.0
      %1490 = vmatprep.subr.mxu0 0.0
      %1491 = vmatpush1.msra.mxu0 0.0
      %1492 = vmatprep.subr.mxu0 0.0
      %1493 = vmatpush1.msra.mxu0 0.0
      %1494 = vmatprep.subr.mxu0 0.0
      %1495 = vmatpush1.msra.mxu0 0.0
      %1496 = vmatprep.subr.mxu0 0.0
      %1497 = vmatpush1.msra.mxu0 0.0
      %1498 = vmatprep.subr.mxu0 0.0
      %1499 = vmatpush1.msra.mxu0 0.0
      %1500 = vmatprep.subr.mxu0 0.0
      %1501 = vmatpush1.msra.mxu0 0.0
      %1502 = vmatprep.subr.mxu0 0.0
      %1503 = vmatpush1.msra.mxu0 0.0
      %1504 = vmatprep.subr.mxu0 0.0
      %1505 = vmatpush1.msra.mxu0 0.0
      %1506 = vmatprep.subr.mxu0 0.0
      %1507 = vmatpush1.msra.mxu0 0.0
      %1508 = vmatprep.subr.mxu0 0.0
      %1509 = vmatpush1.msra.mxu0 0.0
      %1510 = vmatprep.subr.mxu0 0.0
      %1511 = vmatpush1.msra.mxu0 0.0
      %1512 = vmatprep.subr.mxu0 0.0
      %1513 = vmatpush1.msra.mxu0 0.0
      %1514 = vmatprep.mubr.f32.mxu0 0.0
      %1515 = vmatmul.mubr.f32.gmra.mrb[0].mxu0 %v264
      %v1516 = vpop.f32.mrb[0].mxu0
      %v1517 = vadd.f32 0.0, %v1516
      %v1518 = vpop.f32.mrb[0].mxu0
      %1519 = vmatprep.mubr.f32.mxu0 0.0
      %1520 = vmatmul.mubr.f32.gmra.mrb[0].mxu0 %v267
      %v1521 = vpop.f32.mrb[0].mxu0
      %v1522 = vadd.f32 0.0, %v1521
      %v1523 = vpop.f32.mrb[0].mxu0
      %1524 = vmatprep.mubr.f32.mxu0 0.0
      %1525 = vmatmul.mubr.f32.gmra.mrb[0].mxu0 %v270
      %v1526 = vpop.f32.mrb[0].mxu0
      %v1527 = vadd.f32 0.0, %v1526
      %v1528 = vpop.f32.mrb[0].mxu0
      %1529 = vmatprep.mubr.f32.mxu0 0.0
      %1530 = vmatmul.mubr.f32.gmra.mrb[0].mxu0 %v273
      %v1531 = vpop.f32.mrb[0].mxu0
      %v1532 = vadd.f32 0.0, %v1531
      %v1533 = vpop.f32.mrb[0].mxu0
      %1534 = vmatprep.mubr.f32.mxu0 0.0
      %1535 = vmatmul.mubr.f32.gmra.mrb[0].mxu0 %v276
      %v1536 = vpop.f32.mrb[0].mxu0
      %v1537 = vadd.f32 0.0, %v1536
      %v1538 = vpop.f32.mrb[0].mxu0
      %1539 = vmatprep.mubr.f32.mxu0 0.0
      %1540 = vmatmul.mubr.f32.gmra.mrb[0].mxu0 %v279
      %v1541 = vpop.f32.mrb[0].mxu0
      %v1542 = vadd.f32 0.0, %v1541
      %v1543 = vpop.f32.mrb[0].mxu0
      %1544 = vmatprep.mubr.f32.mxu0 0.0
      %1545 = vmatmul.mubr.f32.gmra.mrb[0].mxu0 %v282
      %v1546 = vpop.f32.mrb[0].mxu0
      %v1547 = vadd.f32 0.0, %v1546
      %v1548 = vpop.f32.mrb[0].mxu0
      %1549 = vmatprep.mubr.f32.mxu0 0.0
      %1550 = vmatmul.mubr.f32.gmra.mrb[0].mxu0 %v285
      %v1551 = vpop.f32.mrb[0].mxu0
      %v1552 = vadd.f32 0.0, %v1551
      %v1553 = vpop.f32.mrb[0].mxu0
      %1554 = vdwg.mxu0
      %v1555 = vadd.f32 %v1440, %v1517
      %v1556 = vadd.f32 %v1441, %v1522
      %v1557 = vadd.f32 %v1442, %v1527
      %v1558 = vadd.f32 %v1443, %v1532
      %v1559 = vadd.f32 %v1444, %v1537
      %v1560 = vadd.f32 %v1445, %v1542
      %v1561 = vadd.f32 %v1446, %v1547
      %v1562 = vadd.f32 %v1447, %v1552
      %v1563 = vlaneseq
      %v1564 = vshrl.u32 %v1563, 7
      %v1565 = vsub.s32 0, %v1564
      %v1566 = vrot.slane %v1048, %v1565
      %v1567 = vadd.f32 %v1555, %v1566
      %v1568 = vadd.f32 %v1556, %v1566
      %v1569 = vadd.f32 %v1557, %v1566
      %v1570 = vadd.f32 %v1558, %v1566
      %v1571 = vadd.f32 %v1559, %v1566
      %v1572 = vadd.f32 %v1560, %v1566
      %v1573 = vadd.f32 %v1561, %v1566
      %v1574 = vadd.f32 %v1562, %v1566
      %v1575 = vlaneseq
      %v1576 = vshrl.u32 %v1575, 7
      %v1577 = vsub.s32 1, %v1576
      %v1578 = vrot.slane %v1048, %v1577
      %v1579 = vadd.f32 %v1567, %v1578
      %v1580 = vadd.f32 %v1568, %v1578
      %v1581 = vadd.f32 %v1569, %v1578
      %v1582 = vadd.f32 %v1570, %v1578
      %v1583 = vadd.f32 %v1571, %v1578
      %v1584 = vadd.f32 %v1572, %v1578
      %v1585 = vadd.f32 %v1573, %v1578
      %v1586 = vadd.f32 %v1574, %v1578
      %v1587 = vmax.f32 %v1579, 0.0
      %v1588 = vmax.f32 %v1580, 0.0
      %v1589 = vmax.f32 %v1581, 0.0
      %v1590 = vmax.f32 %v1582, 0.0
      %v1591 = vmax.f32 %v1583, 0.0
      %v1592 = vmax.f32 %v1584, 0.0
      %v1593 = vmax.f32 %v1585, 0.0
      %v1594 = vmax.f32 %v1586, 0.0
      %v1595 = vsel %vm262, %v1587, 0.0
      %1596 = vadd.xlane.f32.xlu0 %v1595
      %v1597 = vpop.xlane.xlu0 %1596
      %v1598 = vsel %vm262, %v1588, 0.0
      %1599 = vadd.xlane.f32.xlu0 %v1598
      %v1600 = vpop.xlane.xlu0 %1599
      %v1601 = vsel %vm262, %v1589, 0.0
      %1602 = vadd.xlane.f32.xlu0 %v1601
      %v1603 = vpop.xlane.xlu0 %1602
      %v1604 = vsel %vm262, %v1590, 0.0
      %1605 = vadd.xlane.f32.xlu0 %v1604
      %v1606 = vpop.xlane.xlu0 %1605
      %v1607 = vsel %vm262, %v1591, 0.0
      %1608 = vadd.xlane.f32.xlu0 %v1607
      %v1609 = vpop.xlane.xlu0 %1608
      %v1610 = vsel %vm262, %v1592, 0.0
      %1611 = vadd.xlane.f32.xlu0 %v1610
      %v1612 = vpop.xlane.xlu0 %1611
      %v1613 = vsel %vm262, %v1593, 0.0
      %1614 = vadd.xlane.f32.xlu0 %v1613
      %v1615 = vpop.xlane.xlu0 %1614
      %v1616 = vsel %vm262, %v1594, 0.0
      %1617 = vadd.xlane.f32.xlu0 %v1616
      %v1618 = vpop.xlane.xlu0 %1617
      %v1619 = vrcp.pop 16.0
      %v1620 = vmul.f32 %v1597, %v1619
      %v1621 = vmul.f32 %v1600, %v1619
      %v1622 = vmul.f32 %v1603, %v1619
      %v1623 = vmul.f32 %v1606, %v1619
      %v1624 = vmul.f32 %v1609, %v1619
      %v1625 = vmul.f32 %v1612, %v1619
      %v1626 = vmul.f32 %v1615, %v1619
      %v1627 = vmul.f32 %v1618, %v1619
      %v1628 = vsub.f32 %v1587, %v1620
      %v1629 = vsub.f32 %v1588, %v1621
      %v1630 = vsub.f32 %v1589, %v1622
      %v1631 = vsub.f32 %v1590, %v1623
      %v1632 = vsub.f32 %v1591, %v1624
      %v1633 = vsub.f32 %v1592, %v1625
      %v1634 = vsub.f32 %v1593, %v1626
      %v1635 = vsub.f32 %v1594, %v1627
      %v1636 = vmul.f32 %v1628, %v1628
      %v1637 = vmul.f32 %v1629, %v1629
      %v1638 = vmul.f32 %v1630, %v1630
      %v1639 = vmul.f32 %v1631, %v1631
      %v1640 = vmul.f32 %v1632, %v1632
      %v1641 = vmul.f32 %v1633, %v1633
      %v1642 = vmul.f32 %v1634, %v1634
      %v1643 = vmul.f32 %v1635, %v1635
      %v1644 = vsel %vm262, %v1636, 0.0
      %1645 = vadd.xlane.f32.xlu0 %v1644
      %v1646 = vpop.xlane.xlu0 %1645
      %v1647 = vsel %vm262, %v1637, 0.0
      %1648 = vadd.xlane.f32.xlu0 %v1647
      %v1649 = vpop.xlane.xlu0 %1648
      %v1650 = vsel %vm262, %v1638, 0.0
      %1651 = vadd.xlane.f32.xlu0 %v1650
      %v1652 = vpop.xlane.xlu0 %1651
      %v1653 = vsel %vm262, %v1639, 0.0
      %1654 = vadd.xlane.f32.xlu0 %v1653
      %v1655 = vpop.xlane.xlu0 %1654
      %v1656 = vsel %vm262, %v1640, 0.0
      %1657 = vadd.xlane.f32.xlu0 %v1656
      %v1658 = vpop.xlane.xlu0 %1657
      %v1659 = vsel %vm262, %v1641, 0.0
      %1660 = vadd.xlane.f32.xlu0 %v1659
      %v1661 = vpop.xlane.xlu0 %1660
      %v1662 = vsel %vm262, %v1642, 0.0
      %1663 = vadd.xlane.f32.xlu0 %v1662
      %v1664 = vpop.xlane.xlu0 %1663
      %v1665 = vsel %vm262, %v1643, 0.0
      %1666 = vadd.xlane.f32.xlu0 %v1665
      %v1667 = vpop.xlane.xlu0 %1666
      %v1668 = vmul.f32 %v1646, %v1619
      %v1669 = vmul.f32 %v1649, %v1619
      %v1670 = vmul.f32 %v1652, %v1619
      %v1671 = vmul.f32 %v1655, %v1619
      %v1672 = vmul.f32 %v1658, %v1619
      %v1673 = vmul.f32 %v1661, %v1619
      %v1674 = vmul.f32 %v1664, %v1619
      %v1675 = vmul.f32 %v1667, %v1619
      %v1676 = vadd.f32 %v1668, 1e-05
      %v1677 = vadd.f32 %v1669, 1e-05
      %v1678 = vadd.f32 %v1670, 1e-05
      %v1679 = vadd.f32 %v1671, 1e-05
      %v1680 = vadd.f32 %v1672, 1e-05
      %v1681 = vadd.f32 %v1673, 1e-05
      %v1682 = vadd.f32 %v1674, 1e-05
      %v1683 = vadd.f32 %v1675, 1e-05
      %v1684 = vrsqrt.pop %v1676
      %v1685 = vrsqrt.pop %v1677
      %v1686 = vrsqrt.pop %v1678
      %v1687 = vrsqrt.pop %v1679
      %v1688 = vrsqrt.pop %v1680
      %v1689 = vrsqrt.pop %v1681
      %v1690 = vrsqrt.pop %v1682
      %v1691 = vrsqrt.pop %v1683
      %v1692 = vmul.f32 %v1628, %v1684
      %v1693 = vmul.f32 %v1629, %v1685
      %v1694 = vmul.f32 %v1630, %v1686
      %v1695 = vmul.f32 %v1631, %v1687
      %v1696 = vmul.f32 %v1632, %v1688
      %v1697 = vmul.f32 %v1633, %v1689
      %v1698 = vmul.f32 %v1634, %v1690
      %v1699 = vmul.f32 %v1635, %v1691
      %v1700 = vlaneseq
      %v1701 = vshrl.u32 %v1700, 7
      %v1702 = vsub.s32 2, %v1701
      %v1703 = vrot.slane %v1048, %v1702
      %v1704 = vmul.f32 %v1692, %v1703
      %v1705 = vmul.f32 %v1693, %v1703
      %v1706 = vmul.f32 %v1694, %v1703
      %v1707 = vmul.f32 %v1695, %v1703
      %v1708 = vmul.f32 %v1696, %v1703
      %v1709 = vmul.f32 %v1697, %v1703
      %v1710 = vmul.f32 %v1698, %v1703
      %v1711 = vmul.f32 %v1699, %v1703
      %v1712 = vlaneseq
      %v1713 = vshrl.u32 %v1712, 7
      %v1714 = vsub.s32 3, %v1713
      %v1715 = vrot.slane %v1048, %v1714
      %v1716 = vadd.f32 %v1704, %v1715
      %v1717 = vadd.f32 %v1705, %v1715
      %v1718 = vadd.f32 %v1706, %v1715
      %v1719 = vadd.f32 %v1707, %v1715
      %v1720 = vadd.f32 %v1708, %v1715
      %v1721 = vadd.f32 %v1709, %v1715
      %v1722 = vadd.f32 %v1710, %v1715
      %v1723 = vadd.f32 %v1711, %v1715
      %1724 = vst.msk [vmem:[%s251] sm:$0xff] %vm262, %v1716
      %1725 = vst.msk [vmem:[%s251 + $0x8] sm:$0xff] %vm262, %v1717
      %1726 = vst.msk [vmem:[%s251 + $0x10] sm:$0xff] %vm262, %v1718
      %1727 = vst.msk [vmem:[%s251 + $0x18] sm:$0xff] %vm262, %v1719
      %1728 = vst.msk [vmem:[%s251 + $0x20] sm:$0xff] %vm262, %v1720
      %1729 = vst.msk [vmem:[%s251 + $0x28] sm:$0xff] %vm262, %v1721
      %1730 = vst.msk [vmem:[%s251 + $0x30] sm:$0xff] %vm262, %v1722
      %1731 = vst.msk [vmem:[%s251 + $0x38] sm:$0xff] %vm262, %v1723
      %p1732 = scmp.lt.s32.totalorder %s17, 1
      %s1733 = scalar_select %p1732, %s17, 1
      %s1734 = smul.addr %s1733, 8
      %s1735 = smul.addr %s1734, 8
      %s1736 = scalar_lea.vmem %s6, %s1735
      // Predicated region
      $region45: #{fwd.3} parent=43 // pred_check
        %p1737 = pneg %p166
      $region46: #{fwd.3} parent=43 // pred_check_branch
        %1739 = sbr.rel (%p1737) target = $region48
      $region47: #{fwd.3} parent=43 // pred_region
        _
      $region48: #{fwd.3} parent=43 // pred_fallthru
        _
    $region44: #{fwd.3} parent=5 // pred_fallthru
      _
    %p1740 = scmp.le.s32.totalorder 2, %s12
    // Predicated region
    $region49: #{fwd.3} parent=5 // pred_check
      %p1741 = pneg %p1740
    $region50: #{fwd.3} parent=5 // pred_check_branch
      %1743 = sbr.rel (%p1741) target = $region52
    $region51: #{fwd.3} parent=5 // pred_region
      %s1744 = ssub.s32 %s12, 2
      // Predicated region
      $region53: #{fwd.3} parent=51 // pred_check
        %p1745 = pneg %p172
      $region54: #{fwd.3} parent=51 // pred_check_branch
        %1747 = sbr.rel (%p1745) target = $region56
      $region55: #{fwd.3} parent=51 // pred_region
        %p1748 = scmp.lt.s32.totalorder %s18, 1
        %s1749 = scalar_select %p1748, %s18, 1
        %s1750 = smul.addr %s1749, 8
        %s1751 = smul.addr %s1750, 8
        %s1752 = scalar_lea.vmem %s6, %s1751
      $region56: #{fwd.3} parent=51 // pred_fallthru
        _
    $region52: #{fwd.3} parent=5 // pred_fallthru
      _
  $region6: #{fwd.3} parent=0 // loop_footer
    %s16 = sadd.s32 1, %s12
  $region7: #{fwd.3} parent=0 // loop_footer_branch
    %11 = sbr.rel target = $region3
  $region8: #{fwd.3} parent=0 // loop_exit
    _

</llo_original>
